<compile_context>
chip_gen: v5e
topology: v5e:2x2
jax: 0.10.0
libtpu: 0.0.40
codegen_flags: <defaults>
</compile_context>

<pallas_src>
import jax
import jax.numpy as jnp
from jax.experimental import pallas as pl
from jax.experimental.pallas import tpu as pltpu

FEAT = 512
OUT_PAD = 128     # lane-dense padding for the final Linear(512, 1) output
EPS = 1e-5


def domain_classifier_kernel(h_ref, w_hbm, vec_ref, w5_ref, out_ref, wbuf, sem):
    """Refs:
       h_ref   (B, 512)       f32   input activations (VMEM)
       w_hbm   (4, 512, 512)  bf16  hidden Linear weights, (in, out) layout, HBM (pl.ANY)
       vec_ref (13, 512)      f32   rows 0-3 bias, 4-7 gamma, 8-11 beta, 12 final bias
       w5_ref  (1, 512)       bf16  final Linear weight as a row
       out_ref (B, 128)       f32   every lane holds the real (B, 1) output value
       wbuf    (2, 512, 512)  bf16  VMEM double buffer for streamed weights
       sem     (2,)                 DMA semaphores
    """
    def fetch(layer, slot):
        pltpu.make_async_copy(w_hbm.at[layer], wbuf.at[slot], sem.at[slot]).start()

    # Prefetch layer 0 weights immediately; overlaps with the h cast below.
    fetch(0, 0)

    x = h_ref[...].astype(jnp.bfloat16)               # (B, 512) bf16 MXU operand

    for i in range(4):                                # statically unrolled (4 layers)
        slot = i & 1
        # Issue next layer's weight DMA before waiting on the current one so it
        # overlaps this layer's matmul + BN.
        if i + 1 < 4:
            fetch(i + 1, 1 - slot)
        pltpu.make_async_copy(w_hbm.at[i], wbuf.at[slot], sem.at[slot]).wait()

        w = wbuf[slot]                                # (512, 512) bf16
        b = vec_ref[i:i + 1, :]                       # (1, 512) f32
        g = vec_ref[4 + i:5 + i, :]                   # (1, 512) f32
        beta = vec_ref[8 + i:9 + i, :]                # (1, 512) f32

        # Linear: bf16 MXU matmul, f32 accumulation.
        z = jnp.dot(x, w, preferred_element_type=jnp.float32) + b

        # BatchNorm1d (training-mode batch stats) fused into scale/shift, then ReLU.
        # (Two-pass variance kept for numerical stability; switch to one-pass
        #  sum/sum-of-squares only in the future batch-tiled version.)
        mean = jnp.mean(z, axis=0, keepdims=True)
        var = jnp.mean((z - mean) ** 2, axis=0, keepdims=True)
        s = g * jax.lax.rsqrt(var + EPS)              # (1, 512)
        t = beta - mean * s                           # (1, 512)
        y = jnp.maximum(z * s + t, 0.0)               # f32 (B, 512)

        x = y.astype(jnp.bfloat16)                    # next layer's MXU operand

    # Final Linear(512, 1): elementwise multiply + cross-lane reduction (XLU),
    # avoiding any zero-padded weight DMA; result broadcast across 128 lanes for an
    # unmasked lane-dense store.
    xf = x.astype(jnp.float32)                        # (B, 512)
    w5 = w5_ref[...].astype(jnp.float32)              # (1, 512)
    val = jnp.sum(xf * w5, axis=-1, keepdims=True)    # (B, 1)
    out_ref[...] = val + vec_ref[12:13, 0:OUT_PAD]    # (B,1)+(1,128) -> (B,128)


@jax.jit
def domain_classifier_forward(h, w_hidden, vecs, w5_row):
    B = h.shape[0]

    flops = 2 * B * FEAT * FEAT * 4 + 2 * B * FEAT
    bytes_accessed = (
        B * FEAT * 4                 # h (f32)
        + w_hidden.size * 2          # hidden weights (bf16, streamed)
        + vecs.size * 4              # packed bias/gamma/beta/final-bias
        + w5_row.size * 2            # final weight row (bf16)
        + B * OUT_PAD * 4            # padded output
    )
    cost = pl.CostEstimate(flops=flops, transcendentals=4 * FEAT,
                           bytes_accessed=bytes_accessed)

    # Live VMEM: 1 MiB weight double-buffer + ~6 KiB/row of activations.  With the
    # 32 MiB scoped limit below, B up to a few thousand fits; beyond that use the
    # batch-tiled design (TODO above).  v7x physical VMEM is 64 MiB total.
    out_padded = pl.pallas_call(
        domain_classifier_kernel,
        out_shape=jax.ShapeDtypeStruct((B, OUT_PAD), jnp.float32),
        in_specs=[
            pl.BlockSpec(memory_space=pltpu.MemorySpace.VMEM),   # h
            pl.BlockSpec(memory_space=pl.ANY),                   # w_hidden (HBM, streamed)
            pl.BlockSpec(memory_space=pltpu.MemorySpace.VMEM),   # vecs
            pl.BlockSpec(memory_space=pltpu.MemorySpace.VMEM),   # w5 row
        ],
        out_specs=pl.BlockSpec(memory_space=pltpu.MemorySpace.VMEM),
        scratch_shapes=[
            pltpu.VMEM((2, FEAT, FEAT), jnp.bfloat16),           # weight double buffer
            pltpu.SemaphoreType.DMA((2,)),
        ],
        compiler_params=pltpu.CompilerParams(vmem_limit_bytes=32 * 1024 * 1024),
        cost_estimate=cost,
    )(h, w_hidden, vecs, w5_row)

    # TODO(synk): drop this slice if the consumer can take the lane-padded (B,128) slab.
    return out_padded[:, :1]


def init_params(key):
    """PyTorch-default-style init (U(-1/sqrt(fan_in), 1/sqrt(fan_in)) for Linear,
    gamma=1 / beta=0 for BatchNorm), packed for the kernel."""
    bound = FEAT ** -0.5
    keys = jax.random.split(key, 10)
    ws, bs = [], []
    k = 0
    for _ in range(4):
        ws.append(jax.random.uniform(keys[k], (FEAT, FEAT), jnp.float32, -bound, bound))
        bs.append(jax.random.uniform(keys[k + 1], (FEAT,), jnp.float32, -bound, bound))
        k += 2
    w5 = jax.random.uniform(keys[k], (1, FEAT), jnp.float32, -bound, bound)
    b5 = jax.random.uniform(keys[k + 1], (), jnp.float32, -bound, bound)

    w_hidden = jnp.stack(ws).astype(jnp.bfloat16)                # (4, 512, 512) bf16
    gammas = jnp.ones((4, FEAT), jnp.float32)
    betas = jnp.zeros((4, FEAT), jnp.float32)
    b5_row = jnp.full((1, FEAT), b5, jnp.float32)
    vecs = jnp.concatenate([jnp.stack(bs), gammas, betas, b5_row], axis=0)  # (13, 512)
    w5_row = w5.astype(jnp.bfloat16)                             # (1, 512) bf16
    return w_hidden, vecs, w5_row


def reference_forward(h, w_hidden, vecs, w5_row):
    """Pure-JAX reference mirroring the kernel's stored dtypes (bf16 weights and
    inter-layer activations, f32 accumulation + BN math). Training-mode BatchNorm1d."""
    x = h.astype(jnp.bfloat16)
    for i in range(4):
        w = w_hidden[i].astype(jnp.float32)
        z = x.astype(jnp.float32) @ w + vecs[i:i + 1]
        mean = jnp.mean(z, axis=0, keepdims=True)
        var = jnp.mean((z - mean) ** 2, axis=0, keepdims=True)
        xhat = (z - mean) * jax.lax.rsqrt(var + EPS)
        y = vecs[4 + i:5 + i] * xhat + vecs[8 + i:9 + i]
        x = jnp.maximum(y, 0.0).astype(jnp.bfloat16)
    xf = x.astype(jnp.float32)
    out = jnp.sum(xf * w5_row.astype(jnp.float32), axis=-1, keepdims=True)
    return out + vecs[12:13, 0:1]


if __name__ == "__main__":
    key = jax.random.PRNGKey(0)
    k_in, k_param = jax.random.split(key)

    B = 8  # small demo batch (BatchNorm batch statistics computed over the whole batch)
    h = jax.random.normal(k_in, (B, FEAT), jnp.float32)
    params = init_params(k_param)

    out = domain_classifier_forward(h, *params)
    out = jax.block_until_ready(out)
    assert out.shape == (B, 1)

    ref = reference_forward(h, *params)
    max_diff = float(jnp.max(jnp.abs(out - ref)))
    assert jnp.allclose(out, ref, atol=2e-3, rtol=2e-3), f"max abs diff {max_diff}"
    print("KERNEL_OK")
</pallas_src>

<mosaic_0001>
module attributes {stable_mosaic.version = 11 : i64} {
  func.func @domain_classifier_kernel(%arg0: memref<8x512xf32, #tpu.memory_space<vmem>>, %arg1: memref<4x512x512xbf16, #tpu.memory_space<any>>, %arg2: memref<13x512xf32, #tpu.memory_space<vmem>>, %arg3: memref<1x512xbf16, #tpu.memory_space<vmem>>, %arg4: memref<8x128xf32, #tpu.memory_space<vmem>>, %arg5: memref<2x512x512xbf16, #tpu.memory_space<vmem>>, %arg6: memref<2x!tpu.dma_semaphore, #tpu.memory_space<semaphore_mem>>) attributes {dimension_semantics = [], scalar_prefetch = 0 : i64, scratch_operands = 2 : i64, tpu.core_type = #tpu.core_type<tc>} {
    %c0_i32 = arith.constant 0 : i32
    %c0_i32_0 = arith.constant 0 : i32
    %c0_i32_1 = arith.constant 0 : i32
    %c0_i32_2 = arith.constant 0 : i32
    %c0_i32_3 = arith.constant 0 : i32
    %0 = tpu.memref_slice %arg1[%c0_i32, %c0_i32_2, %c0_i32_3] : memref<4x512x512xbf16, #tpu.memory_space<any>> -> memref<1x512x512xbf16, #tpu.memory_space<any>>
    %1 = tpu.memref_squeeze %0 : memref<1x512x512xbf16, #tpu.memory_space<any>> -> memref<512x512xbf16, #tpu.memory_space<any>>
    %c0_i32_4 = arith.constant 0 : i32
    %c0_i32_5 = arith.constant 0 : i32
    %2 = tpu.memref_slice %arg5[%c0_i32_0, %c0_i32_4, %c0_i32_5] : memref<2x512x512xbf16, #tpu.memory_space<vmem>> -> memref<1x512x512xbf16, #tpu.memory_space<vmem>>
    %3 = tpu.memref_squeeze %2 : memref<1x512x512xbf16, #tpu.memory_space<vmem>> -> memref<512x512xbf16, #tpu.memory_space<vmem>>
    %4 = tpu.memref_slice %arg6[%c0_i32_1] : memref<2x!tpu.dma_semaphore, #tpu.memory_space<semaphore_mem>> -> memref<1x!tpu.dma_semaphore, #tpu.memory_space<semaphore_mem>>
    %5 = tpu.memref_squeeze %4 : memref<1x!tpu.dma_semaphore, #tpu.memory_space<semaphore_mem>> -> memref<!tpu.dma_semaphore, #tpu.memory_space<semaphore_mem>>
    tpu.enqueue_dma source(%1 : memref<512x512xbf16, #tpu.memory_space<any>>) target(%3 : memref<512x512xbf16, #tpu.memory_space<vmem>>) target_semaphore(%5 : memref<!tpu.dma_semaphore, #tpu.memory_space<semaphore_mem>>)
    %c0 = arith.constant 0 : index
    %c0_6 = arith.constant 0 : index
    %6 = vector.load %arg0[%c0, %c0_6] : memref<8x512xf32, #tpu.memory_space<vmem>>, vector<8x512xf32>
    %7 = arith.truncf %6 : vector<8x512xf32> to vector<8x512xbf16>
    %c1_i32 = arith.constant 1 : i32
    %c1_i32_7 = arith.constant 1 : i32
    %c1_i32_8 = arith.constant 1 : i32
    %c0_i32_9 = arith.constant 0 : i32
    %c0_i32_10 = arith.constant 0 : i32
    %8 = tpu.memref_slice %arg1[%c1_i32, %c0_i32_9, %c0_i32_10] : memref<4x512x512xbf16, #tpu.memory_space<any>> -> memref<1x512x512xbf16, #tpu.memory_space<any>>
    %9 = tpu.memref_squeeze %8 : memref<1x512x512xbf16, #tpu.memory_space<any>> -> memref<512x512xbf16, #tpu.memory_space<any>>
    %c0_i32_11 = arith.constant 0 : i32
    %c0_i32_12 = arith.constant 0 : i32
    %10 = tpu.memref_slice %arg5[%c1_i32_7, %c0_i32_11, %c0_i32_12] : memref<2x512x512xbf16, #tpu.memory_space<vmem>> -> memref<1x512x512xbf16, #tpu.memory_space<vmem>>
    %11 = tpu.memref_squeeze %10 : memref<1x512x512xbf16, #tpu.memory_space<vmem>> -> memref<512x512xbf16, #tpu.memory_space<vmem>>
    %12 = tpu.memref_slice %arg6[%c1_i32_8] : memref<2x!tpu.dma_semaphore, #tpu.memory_space<semaphore_mem>> -> memref<1x!tpu.dma_semaphore, #tpu.memory_space<semaphore_mem>>
    %13 = tpu.memref_squeeze %12 : memref<1x!tpu.dma_semaphore, #tpu.memory_space<semaphore_mem>> -> memref<!tpu.dma_semaphore, #tpu.memory_space<semaphore_mem>>
    tpu.enqueue_dma source(%9 : memref<512x512xbf16, #tpu.memory_space<any>>) target(%11 : memref<512x512xbf16, #tpu.memory_space<vmem>>) target_semaphore(%13 : memref<!tpu.dma_semaphore, #tpu.memory_space<semaphore_mem>>)
    %c0_i32_13 = arith.constant 0 : i32
    %c0_i32_14 = arith.constant 0 : i32
    %c0_i32_15 = arith.constant 0 : i32
    %c0_i32_16 = arith.constant 0 : i32
    %c0_i32_17 = arith.constant 0 : i32
    %14 = tpu.memref_slice %arg1[%c0_i32_13, %c0_i32_16, %c0_i32_17] : memref<4x512x512xbf16, #tpu.memory_space<any>> -> memref<1x512x512xbf16, #tpu.memory_space<any>>
    %15 = tpu.memref_squeeze %14 : memref<1x512x512xbf16, #tpu.memory_space<any>> -> memref<512x512xbf16, #tpu.memory_space<any>>
    %c0_i32_18 = arith.constant 0 : i32
    %c0_i32_19 = arith.constant 0 : i32
    %16 = tpu.memref_slice %arg5[%c0_i32_14, %c0_i32_18, %c0_i32_19] : memref<2x512x512xbf16, #tpu.memory_space<vmem>> -> memref<1x512x512xbf16, #tpu.memory_space<vmem>>
    %17 = tpu.memref_squeeze %16 : memref<1x512x512xbf16, #tpu.memory_space<vmem>> -> memref<512x512xbf16, #tpu.memory_space<vmem>>
    %18 = tpu.memref_slice %arg6[%c0_i32_15] : memref<2x!tpu.dma_semaphore, #tpu.memory_space<semaphore_mem>> -> memref<1x!tpu.dma_semaphore, #tpu.memory_space<semaphore_mem>>
    %19 = tpu.memref_squeeze %18 : memref<1x!tpu.dma_semaphore, #tpu.memory_space<semaphore_mem>> -> memref<!tpu.dma_semaphore, #tpu.memory_space<semaphore_mem>>
    tpu.wait_dma2 semaphore(%19 : memref<!tpu.dma_semaphore, #tpu.memory_space<semaphore_mem>>) src(%15 : memref<512x512xbf16, #tpu.memory_space<any>>) dst(%17 : memref<512x512xbf16, #tpu.memory_space<vmem>>)
    %c0_20 = arith.constant 0 : index
    %c0_21 = arith.constant 0 : index
    %c0_22 = arith.constant 0 : index
    %20 = vector.load %arg5[%c0_20, %c0_21, %c0_22] : memref<2x512x512xbf16, #tpu.memory_space<vmem>>, vector<1x512x512xbf16>
    %21 = vector.shape_cast %20 : vector<1x512x512xbf16> to vector<512x512xbf16>
    %c0_23 = arith.constant 0 : index
    %c0_24 = arith.constant 0 : index
    %22 = vector.load %arg2[%c0_23, %c0_24] : memref<13x512xf32, #tpu.memory_space<vmem>>, vector<1x512xf32>
    %c4 = arith.constant 4 : index
    %c0_25 = arith.constant 0 : index
    %23 = vector.load %arg2[%c4, %c0_25] : memref<13x512xf32, #tpu.memory_space<vmem>>, vector<1x512xf32>
    %c8 = arith.constant 8 : index
    %c0_26 = arith.constant 0 : index
    %24 = vector.load %arg2[%c8, %c0_26] : memref<13x512xf32, #tpu.memory_space<vmem>>, vector<1x512xf32>
    %cst = arith.constant dense<0.000000e+00> : vector<8x512xf32>
    %25 = tpu.matmul %7, %21, %cst {dimension_numbers = #tpu.dot_dimension_numbers<[1], [0], [0], [1], [0, 0, 1, 1], [], []>} : vector<8x512xbf16>, vector<512x512xbf16>, vector<8x512xf32> -> vector<8x512xf32>
    %26 = vector.broadcast %22 : vector<1x512xf32> to vector<8x512xf32>
    %27 = arith.addf %25, %26 : vector<8x512xf32>
    %cst_27 = arith.constant dense<0.000000e+00> : vector<512xf32>
    %28 = vector.multi_reduction <add>, %27, %cst_27 [0] : vector<8x512xf32> to vector<512xf32>
    %29 = vector.shape_cast %28 : vector<512xf32> to vector<1x512xf32>
    %cst_28 = arith.constant 8.000000e+00 : f32
    %30 = vector.broadcast %cst_28 : f32 to vector<1x512xf32>
    %31 = arith.divf %29, %30 : vector<1x512xf32>
    %32 = vector.broadcast %31 : vector<1x512xf32> to vector<8x512xf32>
    %33 = arith.subf %27, %32 : vector<8x512xf32>
    %34 = arith.mulf %33, %33 : vector<8x512xf32>
    %cst_29 = arith.constant dense<0.000000e+00> : vector<512xf32>
    %35 = vector.multi_reduction <add>, %34, %cst_29 [0] : vector<8x512xf32> to vector<512xf32>
    %36 = vector.shape_cast %35 : vector<512xf32> to vector<1x512xf32>
    %cst_30 = arith.constant 8.000000e+00 : f32
    %37 = vector.broadcast %cst_30 : f32 to vector<1x512xf32>
    %38 = arith.divf %36, %37 : vector<1x512xf32>
    %cst_31 = arith.constant 9.99999974E-6 : f32
    %39 = vector.broadcast %cst_31 : f32 to vector<1x512xf32>
    %40 = arith.addf %38, %39 : vector<1x512xf32>
    %41 = math.rsqrt %40 : vector<1x512xf32>
    %42 = arith.mulf %23, %41 : vector<1x512xf32>
    %43 = arith.mulf %31, %42 : vector<1x512xf32>
    %44 = arith.subf %24, %43 : vector<1x512xf32>
    %45 = vector.broadcast %42 : vector<1x512xf32> to vector<8x512xf32>
    %46 = arith.mulf %27, %45 : vector<8x512xf32>
    %47 = vector.broadcast %44 : vector<1x512xf32> to vector<8x512xf32>
    %48 = arith.addf %46, %47 : vector<8x512xf32>
    %cst_32 = arith.constant 0.000000e+00 : f32
    %49 = vector.broadcast %cst_32 : f32 to vector<8x512xf32>
    %50 = arith.maximumf %48, %49 : vector<8x512xf32>
    %51 = arith.truncf %50 : vector<8x512xf32> to vector<8x512xbf16>
    %c2_i32 = arith.constant 2 : i32
    %c0_i32_33 = arith.constant 0 : i32
    %c0_i32_34 = arith.constant 0 : i32
    %c0_i32_35 = arith.constant 0 : i32
    %c0_i32_36 = arith.constant 0 : i32
    %52 = tpu.memref_slice %arg1[%c2_i32, %c0_i32_35, %c0_i32_36] : memref<4x512x512xbf16, #tpu.memory_space<any>> -> memref<1x512x512xbf16, #tpu.memory_space<any>>
    %53 = tpu.memref_squeeze %52 : memref<1x512x512xbf16, #tpu.memory_space<any>> -> memref<512x512xbf16, #tpu.memory_space<any>>
    %c0_i32_37 = arith.constant 0 : i32
    %c0_i32_38 = arith.constant 0 : i32
    %54 = tpu.memref_slice %arg5[%c0_i32_33, %c0_i32_37, %c0_i32_38] : memref<2x512x512xbf16, #tpu.memory_space<vmem>> -> memref<1x512x512xbf16, #tpu.memory_space<vmem>>
    %55 = tpu.memref_squeeze %54 : memref<1x512x512xbf16, #tpu.memory_space<vmem>> -> memref<512x512xbf16, #tpu.memory_space<vmem>>
    %56 = tpu.memref_slice %arg6[%c0_i32_34] : memref<2x!tpu.dma_semaphore, #tpu.memory_space<semaphore_mem>> -> memref<1x!tpu.dma_semaphore, #tpu.memory_space<semaphore_mem>>
    %57 = tpu.memref_squeeze %56 : memref<1x!tpu.dma_semaphore, #tpu.memory_space<semaphore_mem>> -> memref<!tpu.dma_semaphore, #tpu.memory_space<semaphore_mem>>
    tpu.enqueue_dma source(%53 : memref<512x512xbf16, #tpu.memory_space<any>>) target(%55 : memref<512x512xbf16, #tpu.memory_space<vmem>>) target_semaphore(%57 : memref<!tpu.dma_semaphore, #tpu.memory_space<semaphore_mem>>)
    %c1_i32_39 = arith.constant 1 : i32
    %c1_i32_40 = arith.constant 1 : i32
    %c1_i32_41 = arith.constant 1 : i32
    %c0_i32_42 = arith.constant 0 : i32
    %c0_i32_43 = arith.constant 0 : i32
    %58 = tpu.memref_slice %arg1[%c1_i32_39, %c0_i32_42, %c0_i32_43] : memref<4x512x512xbf16, #tpu.memory_space<any>> -> memref<1x512x512xbf16, #tpu.memory_space<any>>
    %59 = tpu.memref_squeeze %58 : memref<1x512x512xbf16, #tpu.memory_space<any>> -> memref<512x512xbf16, #tpu.memory_space<any>>
    %c0_i32_44 = arith.constant 0 : i32
    %c0_i32_45 = arith.constant 0 : i32
    %60 = tpu.memref_slice %arg5[%c1_i32_40, %c0_i32_44, %c0_i32_45] : memref<2x512x512xbf16, #tpu.memory_space<vmem>> -> memref<1x512x512xbf16, #tpu.memory_space<vmem>>
    %61 = tpu.memref_squeeze %60 : memref<1x512x512xbf16, #tpu.memory_space<vmem>> -> memref<512x512xbf16, #tpu.memory_space<vmem>>
    %62 = tpu.memref_slice %arg6[%c1_i32_41] : memref<2x!tpu.dma_semaphore, #tpu.memory_space<semaphore_mem>> -> memref<1x!tpu.dma_semaphore, #tpu.memory_space<semaphore_mem>>
    %63 = tpu.memref_squeeze %62 : memref<1x!tpu.dma_semaphore, #tpu.memory_space<semaphore_mem>> -> memref<!tpu.dma_semaphore, #tpu.memory_space<semaphore_mem>>
    tpu.wait_dma2 semaphore(%63 : memref<!tpu.dma_semaphore, #tpu.memory_space<semaphore_mem>>) src(%59 : memref<512x512xbf16, #tpu.memory_space<any>>) dst(%61 : memref<512x512xbf16, #tpu.memory_space<vmem>>)
    %c1 = arith.constant 1 : index
    %c0_46 = arith.constant 0 : index
    %c0_47 = arith.constant 0 : index
    %64 = vector.load %arg5[%c1, %c0_46, %c0_47] : memref<2x512x512xbf16, #tpu.memory_space<vmem>>, vector<1x512x512xbf16>
    %65 = vector.shape_cast %64 : vector<1x512x512xbf16> to vector<512x512xbf16>
    %c1_48 = arith.constant 1 : index
    %c0_49 = arith.constant 0 : index
    %66 = vector.load %arg2[%c1_48, %c0_49] : memref<13x512xf32, #tpu.memory_space<vmem>>, vector<1x512xf32>
    %c5 = arith.constant 5 : index
    %c0_50 = arith.constant 0 : index
    %67 = vector.load %arg2[%c5, %c0_50] : memref<13x512xf32, #tpu.memory_space<vmem>>, vector<1x512xf32>
    %c9 = arith.constant 9 : index
    %c0_51 = arith.constant 0 : index
    %68 = vector.load %arg2[%c9, %c0_51] : memref<13x512xf32, #tpu.memory_space<vmem>>, vector<1x512xf32>
    %cst_52 = arith.constant dense<0.000000e+00> : vector<8x512xf32>
    %69 = tpu.matmul %51, %65, %cst_52 {dimension_numbers = #tpu.dot_dimension_numbers<[1], [0], [0], [1], [0, 0, 1, 1], [], []>} : vector<8x512xbf16>, vector<512x512xbf16>, vector<8x512xf32> -> vector<8x512xf32>
    %70 = vector.broadcast %66 : vector<1x512xf32> to vector<8x512xf32>
    %71 = arith.addf %69, %70 : vector<8x512xf32>
    %cst_53 = arith.constant dense<0.000000e+00> : vector<512xf32>
    %72 = vector.multi_reduction <add>, %71, %cst_53 [0] : vector<8x512xf32> to vector<512xf32>
    %73 = vector.shape_cast %72 : vector<512xf32> to vector<1x512xf32>
    %cst_54 = arith.constant 8.000000e+00 : f32
    %74 = vector.broadcast %cst_54 : f32 to vector<1x512xf32>
    %75 = arith.divf %73, %74 : vector<1x512xf32>
    %76 = vector.broadcast %75 : vector<1x512xf32> to vector<8x512xf32>
    %77 = arith.subf %71, %76 : vector<8x512xf32>
    %78 = arith.mulf %77, %77 : vector<8x512xf32>
    %cst_55 = arith.constant dense<0.000000e+00> : vector<512xf32>
    %79 = vector.multi_reduction <add>, %78, %cst_55 [0] : vector<8x512xf32> to vector<512xf32>
    %80 = vector.shape_cast %79 : vector<512xf32> to vector<1x512xf32>
    %cst_56 = arith.constant 8.000000e+00 : f32
    %81 = vector.broadcast %cst_56 : f32 to vector<1x512xf32>
    %82 = arith.divf %80, %81 : vector<1x512xf32>
    %cst_57 = arith.constant 9.99999974E-6 : f32
    %83 = vector.broadcast %cst_57 : f32 to vector<1x512xf32>
    %84 = arith.addf %82, %83 : vector<1x512xf32>
    %85 = math.rsqrt %84 : vector<1x512xf32>
    %86 = arith.mulf %67, %85 : vector<1x512xf32>
    %87 = arith.mulf %75, %86 : vector<1x512xf32>
    %88 = arith.subf %68, %87 : vector<1x512xf32>
    %89 = vector.broadcast %86 : vector<1x512xf32> to vector<8x512xf32>
    %90 = arith.mulf %71, %89 : vector<8x512xf32>
    %91 = vector.broadcast %88 : vector<1x512xf32> to vector<8x512xf32>
    %92 = arith.addf %90, %91 : vector<8x512xf32>
    %cst_58 = arith.constant 0.000000e+00 : f32
    %93 = vector.broadcast %cst_58 : f32 to vector<8x512xf32>
    %94 = arith.maximumf %92, %93 : vector<8x512xf32>
    %95 = arith.truncf %94 : vector<8x512xf32> to vector<8x512xbf16>
    %c3_i32 = arith.constant 3 : i32
    %c1_i32_59 = arith.constant 1 : i32
    %c1_i32_60 = arith.constant 1 : i32
    %c0_i32_61 = arith.constant 0 : i32
    %c0_i32_62 = arith.constant 0 : i32
    %96 = tpu.memref_slice %arg1[%c3_i32, %c0_i32_61, %c0_i32_62] : memref<4x512x512xbf16, #tpu.memory_space<any>> -> memref<1x512x512xbf16, #tpu.memory_space<any>>
    %97 = tpu.memref_squeeze %96 : memref<1x512x512xbf16, #tpu.memory_space<any>> -> memref<512x512xbf16, #tpu.memory_space<any>>
    %c0_i32_63 = arith.constant 0 : i32
    %c0_i32_64 = arith.constant 0 : i32
    %98 = tpu.memref_slice %arg5[%c1_i32_59, %c0_i32_63, %c0_i32_64] : memref<2x512x512xbf16, #tpu.memory_space<vmem>> -> memref<1x512x512xbf16, #tpu.memory_space<vmem>>
    %99 = tpu.memref_squeeze %98 : memref<1x512x512xbf16, #tpu.memory_space<vmem>> -> memref<512x512xbf16, #tpu.memory_space<vmem>>
    %100 = tpu.memref_slice %arg6[%c1_i32_60] : memref<2x!tpu.dma_semaphore, #tpu.memory_space<semaphore_mem>> -> memref<1x!tpu.dma_semaphore, #tpu.memory_space<semaphore_mem>>
    %101 = tpu.memref_squeeze %100 : memref<1x!tpu.dma_semaphore, #tpu.memory_space<semaphore_mem>> -> memref<!tpu.dma_semaphore, #tpu.memory_space<semaphore_mem>>
    tpu.enqueue_dma source(%97 : memref<512x512xbf16, #tpu.memory_space<any>>) target(%99 : memref<512x512xbf16, #tpu.memory_space<vmem>>) target_semaphore(%101 : memref<!tpu.dma_semaphore, #tpu.memory_space<semaphore_mem>>)
    %c2_i32_65 = arith.constant 2 : i32
    %c0_i32_66 = arith.constant 0 : i32
    %c0_i32_67 = arith.constant 0 : i32
    %c0_i32_68 = arith.constant 0 : i32
    %c0_i32_69 = arith.constant 0 : i32
    %102 = tpu.memref_slice %arg1[%c2_i32_65, %c0_i32_68, %c0_i32_69] : memref<4x512x512xbf16, #tpu.memory_space<any>> -> memref<1x512x512xbf16, #tpu.memory_space<any>>
    %103 = tpu.memref_squeeze %102 : memref<1x512x512xbf16, #tpu.memory_space<any>> -> memref<512x512xbf16, #tpu.memory_space<any>>
    %c0_i32_70 = arith.constant 0 : i32
    %c0_i32_71 = arith.constant 0 : i32
    %104 = tpu.memref_slice %arg5[%c0_i32_66, %c0_i32_70, %c0_i32_71] : memref<2x512x512xbf16, #tpu.memory_space<vmem>> -> memref<1x512x512xbf16, #tpu.memory_space<vmem>>
    %105 = tpu.memref_squeeze %104 : memref<1x512x512xbf16, #tpu.memory_space<vmem>> -> memref<512x512xbf16, #tpu.memory_space<vmem>>
    %106 = tpu.memref_slice %arg6[%c0_i32_67] : memref<2x!tpu.dma_semaphore, #tpu.memory_space<semaphore_mem>> -> memref<1x!tpu.dma_semaphore, #tpu.memory_space<semaphore_mem>>
    %107 = tpu.memref_squeeze %106 : memref<1x!tpu.dma_semaphore, #tpu.memory_space<semaphore_mem>> -> memref<!tpu.dma_semaphore, #tpu.memory_space<semaphore_mem>>
    tpu.wait_dma2 semaphore(%107 : memref<!tpu.dma_semaphore, #tpu.memory_space<semaphore_mem>>) src(%103 : memref<512x512xbf16, #tpu.memory_space<any>>) dst(%105 : memref<512x512xbf16, #tpu.memory_space<vmem>>)
    %c0_72 = arith.constant 0 : index
    %c0_73 = arith.constant 0 : index
    %c0_74 = arith.constant 0 : index
    %108 = vector.load %arg5[%c0_72, %c0_73, %c0_74] : memref<2x512x512xbf16, #tpu.memory_space<vmem>>, vector<1x512x512xbf16>
    %109 = vector.shape_cast %108 : vector<1x512x512xbf16> to vector<512x512xbf16>
    %c2 = arith.constant 2 : index
    %c0_75 = arith.constant 0 : index
    %110 = vector.load %arg2[%c2, %c0_75] : memref<13x512xf32, #tpu.memory_space<vmem>>, vector<1x512xf32>
    %c6 = arith.constant 6 : index
    %c0_76 = arith.constant 0 : index
    %111 = vector.load %arg2[%c6, %c0_76] : memref<13x512xf32, #tpu.memory_space<vmem>>, vector<1x512xf32>
    %c10 = arith.constant 10 : index
    %c0_77 = arith.constant 0 : index
    %112 = vector.load %arg2[%c10, %c0_77] : memref<13x512xf32, #tpu.memory_space<vmem>>, vector<1x512xf32>
    %cst_78 = arith.constant dense<0.000000e+00> : vector<8x512xf32>
    %113 = tpu.matmul %95, %109, %cst_78 {dimension_numbers = #tpu.dot_dimension_numbers<[1], [0], [0], [1], [0, 0, 1, 1], [], []>} : vector<8x512xbf16>, vector<512x512xbf16>, vector<8x512xf32> -> vector<8x512xf32>
    %114 = vector.broadcast %110 : vector<1x512xf32> to vector<8x512xf32>
    %115 = arith.addf %113, %114 : vector<8x512xf32>
    %cst_79 = arith.constant dense<0.000000e+00> : vector<512xf32>
    %116 = vector.multi_reduction <add>, %115, %cst_79 [0] : vector<8x512xf32> to vector<512xf32>
    %117 = vector.shape_cast %116 : vector<512xf32> to vector<1x512xf32>
    %cst_80 = arith.constant 8.000000e+00 : f32
    %118 = vector.broadcast %cst_80 : f32 to vector<1x512xf32>
    %119 = arith.divf %117, %118 : vector<1x512xf32>
    %120 = vector.broadcast %119 : vector<1x512xf32> to vector<8x512xf32>
    %121 = arith.subf %115, %120 : vector<8x512xf32>
    %122 = arith.mulf %121, %121 : vector<8x512xf32>
    %cst_81 = arith.constant dense<0.000000e+00> : vector<512xf32>
    %123 = vector.multi_reduction <add>, %122, %cst_81 [0] : vector<8x512xf32> to vector<512xf32>
    %124 = vector.shape_cast %123 : vector<512xf32> to vector<1x512xf32>
    %cst_82 = arith.constant 8.000000e+00 : f32
    %125 = vector.broadcast %cst_82 : f32 to vector<1x512xf32>
    %126 = arith.divf %124, %125 : vector<1x512xf32>
    %cst_83 = arith.constant 9.99999974E-6 : f32
    %127 = vector.broadcast %cst_83 : f32 to vector<1x512xf32>
    %128 = arith.addf %126, %127 : vector<1x512xf32>
    %129 = math.rsqrt %128 : vector<1x512xf32>
    %130 = arith.mulf %111, %129 : vector<1x512xf32>
    %131 = arith.mulf %119, %130 : vector<1x512xf32>
    %132 = arith.subf %112, %131 : vector<1x512xf32>
    %133 = vector.broadcast %130 : vector<1x512xf32> to vector<8x512xf32>
    %134 = arith.mulf %115, %133 : vector<8x512xf32>
    %135 = vector.broadcast %132 : vector<1x512xf32> to vector<8x512xf32>
    %136 = arith.addf %134, %135 : vector<8x512xf32>
    %cst_84 = arith.constant 0.000000e+00 : f32
    %137 = vector.broadcast %cst_84 : f32 to vector<8x512xf32>
    %138 = arith.maximumf %136, %137 : vector<8x512xf32>
    %139 = arith.truncf %138 : vector<8x512xf32> to vector<8x512xbf16>
    %c3_i32_85 = arith.constant 3 : i32
    %c1_i32_86 = arith.constant 1 : i32
    %c1_i32_87 = arith.constant 1 : i32
    %c0_i32_88 = arith.constant 0 : i32
    %c0_i32_89 = arith.constant 0 : i32
    %140 = tpu.memref_slice %arg1[%c3_i32_85, %c0_i32_88, %c0_i32_89] : memref<4x512x512xbf16, #tpu.memory_space<any>> -> memref<1x512x512xbf16, #tpu.memory_space<any>>
    %141 = tpu.memref_squeeze %140 : memref<1x512x512xbf16, #tpu.memory_space<any>> -> memref<512x512xbf16, #tpu.memory_space<any>>
    %c0_i32_90 = arith.constant 0 : i32
    %c0_i32_91 = arith.constant 0 : i32
    %142 = tpu.memref_slice %arg5[%c1_i32_86, %c0_i32_90, %c0_i32_91] : memref<2x512x512xbf16, #tpu.memory_space<vmem>> -> memref<1x512x512xbf16, #tpu.memory_space<vmem>>
    %143 = tpu.memref_squeeze %142 : memref<1x512x512xbf16, #tpu.memory_space<vmem>> -> memref<512x512xbf16, #tpu.memory_space<vmem>>
    %144 = tpu.memref_slice %arg6[%c1_i32_87] : memref<2x!tpu.dma_semaphore, #tpu.memory_space<semaphore_mem>> -> memref<1x!tpu.dma_semaphore, #tpu.memory_space<semaphore_mem>>
    %145 = tpu.memref_squeeze %144 : memref<1x!tpu.dma_semaphore, #tpu.memory_space<semaphore_mem>> -> memref<!tpu.dma_semaphore, #tpu.memory_space<semaphore_mem>>
    tpu.wait_dma2 semaphore(%145 : memref<!tpu.dma_semaphore, #tpu.memory_space<semaphore_mem>>) src(%141 : memref<512x512xbf16, #tpu.memory_space<any>>) dst(%143 : memref<512x512xbf16, #tpu.memory_space<vmem>>)
    %c1_92 = arith.constant 1 : index
    %c0_93 = arith.constant 0 : index
    %c0_94 = arith.constant 0 : index
    %146 = vector.load %arg5[%c1_92, %c0_93, %c0_94] : memref<2x512x512xbf16, #tpu.memory_space<vmem>>, vector<1x512x512xbf16>
    %147 = vector.shape_cast %146 : vector<1x512x512xbf16> to vector<512x512xbf16>
    %c3 = arith.constant 3 : index
    %c0_95 = arith.constant 0 : index
    %148 = vector.load %arg2[%c3, %c0_95] : memref<13x512xf32, #tpu.memory_space<vmem>>, vector<1x512xf32>
    %c7 = arith.constant 7 : index
    %c0_96 = arith.constant 0 : index
    %149 = vector.load %arg2[%c7, %c0_96] : memref<13x512xf32, #tpu.memory_space<vmem>>, vector<1x512xf32>
    %c11 = arith.constant 11 : index
    %c0_97 = arith.constant 0 : index
    %150 = vector.load %arg2[%c11, %c0_97] : memref<13x512xf32, #tpu.memory_space<vmem>>, vector<1x512xf32>
    %cst_98 = arith.constant dense<0.000000e+00> : vector<8x512xf32>
    %151 = tpu.matmul %139, %147, %cst_98 {dimension_numbers = #tpu.dot_dimension_numbers<[1], [0], [0], [1], [0, 0, 1, 1], [], []>} : vector<8x512xbf16>, vector<512x512xbf16>, vector<8x512xf32> -> vector<8x512xf32>
    %152 = vector.broadcast %148 : vector<1x512xf32> to vector<8x512xf32>
    %153 = arith.addf %151, %152 : vector<8x512xf32>
    %cst_99 = arith.constant dense<0.000000e+00> : vector<512xf32>
    %154 = vector.multi_reduction <add>, %153, %cst_99 [0] : vector<8x512xf32> to vector<512xf32>
    %155 = vector.shape_cast %154 : vector<512xf32> to vector<1x512xf32>
    %cst_100 = arith.constant 8.000000e+00 : f32
    %156 = vector.broadcast %cst_100 : f32 to vector<1x512xf32>
    %157 = arith.divf %155, %156 : vector<1x512xf32>
    %158 = vector.broadcast %157 : vector<1x512xf32> to vector<8x512xf32>
    %159 = arith.subf %153, %158 : vector<8x512xf32>
    %160 = arith.mulf %159, %159 : vector<8x512xf32>
    %cst_101 = arith.constant dense<0.000000e+00> : vector<512xf32>
    %161 = vector.multi_reduction <add>, %160, %cst_101 [0] : vector<8x512xf32> to vector<512xf32>
    %162 = vector.shape_cast %161 : vector<512xf32> to vector<1x512xf32>
    %cst_102 = arith.constant 8.000000e+00 : f32
    %163 = vector.broadcast %cst_102 : f32 to vector<1x512xf32>
    %164 = arith.divf %162, %163 : vector<1x512xf32>
    %cst_103 = arith.constant 9.99999974E-6 : f32
    %165 = vector.broadcast %cst_103 : f32 to vector<1x512xf32>
    %166 = arith.addf %164, %165 : vector<1x512xf32>
    %167 = math.rsqrt %166 : vector<1x512xf32>
    %168 = arith.mulf %149, %167 : vector<1x512xf32>
    %169 = arith.mulf %157, %168 : vector<1x512xf32>
    %170 = arith.subf %150, %169 : vector<1x512xf32>
    %171 = vector.broadcast %168 : vector<1x512xf32> to vector<8x512xf32>
    %172 = arith.mulf %153, %171 : vector<8x512xf32>
    %173 = vector.broadcast %170 : vector<1x512xf32> to vector<8x512xf32>
    %174 = arith.addf %172, %173 : vector<8x512xf32>
    %cst_104 = arith.constant 0.000000e+00 : f32
    %175 = vector.broadcast %cst_104 : f32 to vector<8x512xf32>
    %176 = arith.maximumf %174, %175 : vector<8x512xf32>
    %177 = arith.truncf %176 : vector<8x512xf32> to vector<8x512xbf16>
    %178 = arith.extf %177 : vector<8x512xbf16> to vector<8x512xf32>
    %c0_105 = arith.constant 0 : index
    %c0_106 = arith.constant 0 : index
    %179 = vector.load %arg3[%c0_105, %c0_106] : memref<1x512xbf16, #tpu.memory_space<vmem>>, vector<1x512xbf16>
    %180 = arith.extf %179 : vector<1x512xbf16> to vector<1x512xf32>
    %181 = vector.broadcast %180 : vector<1x512xf32> to vector<8x512xf32>
    %182 = arith.mulf %178, %181 : vector<8x512xf32>
    %cst_107 = arith.constant dense<0.000000e+00> : vector<8xf32>
    %183 = vector.multi_reduction <add>, %182, %cst_107 [1] : vector<8x512xf32> to vector<8xf32>
    %184 = vector.shape_cast %183 : vector<8xf32> to vector<8x1xf32>
    %c12 = arith.constant 12 : index
    %c0_108 = arith.constant 0 : index
    %185 = vector.load %arg2[%c12, %c0_108] : memref<13x512xf32, #tpu.memory_space<vmem>>, vector<1x128xf32>
    %186 = vector.broadcast %184 : vector<8x1xf32> to vector<8x128xf32>
    %187 = vector.broadcast %185 : vector<1x128xf32> to vector<8x128xf32>
    %188 = arith.addf %186, %187 : vector<8x128xf32>
    %c0_109 = arith.constant 0 : index
    %c0_110 = arith.constant 0 : index
    %189 = vector.load %arg4[%c0_109, %c0_110] : memref<8x128xf32, #tpu.memory_space<vmem>>, vector<8x128xf32>
    tpu.vector_store %arg4[%c0_109, %c0_110], %188 {strides = array<i32>} : memref<8x128xf32, #tpu.memory_space<vmem>>, vector<8x128xf32>,
    return
  }
}

</mosaic_0001>

<llo_original>
// kernel: domain_classifier_forward.1
$region0: #{domain_classifier_forward.1}
  #allocation0 [shape = 'u32[]', space=smem, size = 0x4, offset = 0x4, fixed_abs, tag = 'smem constant byte address 0x4 - core index']
  #allocation1 [shape = 'u32[72,128]{1,0:T(1,128)}', space=vmem, size = 0x9000, scoped, tag = 'internal scratch']
  #allocation2 [shape = 'bf16[2,512,512]{2,1,0:T(8,128)(2,1)}', space=vmem, size = 0x100000, scoped, tag = 'scratch operand']
  #allocation3 [shape = 's32[2]{0}', space=sflag, size = 0x8, scoped, tag = 'scratch operand']
  #allocation9 [shape = 's32[]', space=sflag, size = 0x4, offset = 0, fixed_abs, tag = 'sflag constant byte address 0x0 - dummy sync flag']
  #allocation10 [shape = 's32[]', space=sflag, size = 0x4, offset = 0, fixed_abs, tag = 'sflag constant byte address 0x0 - dummy sync flag']
  #allocation11 [shape = 'u32[]', space=smem, size = 0x4, offset = 0x44, fixed_abs, tag = 'smem constant byte address 0x44 - assertion arg 0']
  #allocation12 [shape = 'u32[]', space=smem, size = 0x4, offset = 0x48, fixed_abs, tag = 'smem constant byte address 0x48 - assertion arg 1']
  #allocation13 [shape = 's32[]', space=sflag, size = 0x4, offset = 0, fixed_abs, tag = 'sflag constant byte address 0x0 - dummy sync flag']
  #allocation14 [shape = 's32[]', space=sflag, size = 0x4, offset = 0, fixed_abs, tag = 'sflag constant byte address 0x0 - dummy sync flag']
  #allocation15 [shape = 's32[]', space=sflag, size = 0x4, offset = 0, fixed_abs, tag = 'sflag constant byte address 0x0 - dummy sync flag']
  #allocation16 [shape = 's32[]', space=sflag, size = 0x4, offset = 0, fixed_abs, tag = 'sflag constant byte address 0x0 - dummy sync flag']
  #allocation17 [shape = 's32[]', space=sflag, size = 0x4, offset = 0, fixed_abs, tag = 'sflag constant byte address 0x0 - dummy sync flag']
  #allocation18 [shape = 's32[]', space=sflag, size = 0x4, offset = 0, fixed_abs, tag = 'sflag constant byte address 0x0 - dummy sync flag']
  %s0 = inlined_call_operand.hbm [shape: f32[8,512], index: 0, kind: input, shape index: {}]
  %s1 = inlined_call_operand.hbm [shape: bf16[4,512,512], index: 1, kind: input, shape index: {}]
  %s2 = inlined_call_operand.hbm [shape: f32[13,512], index: 2, kind: input, shape index: {}]
  %s3 = inlined_call_operand.hbm [shape: bf16[1,512], index: 3, kind: input, shape index: {}]
  %s4 = inlined_call_operand.vmem [shape: f32[8,128], index: 4, kind: output, shape index: {}]
  %s5 = sld [smem:[#allocation0]]
  $region50: #{domain_classifier_forward.1} parent=0
    _
  %s7 = ssub.s32 1, %s5
  %s8 = scalar_select 0, %s7, %s5
  $region1: #{domain_classifier_forward.1} parent=0
    #allocation4 [shape = 'u8[16384]{0}', space=vmem, size = 0x4000, scoped, tag = 'input window, operand 0, single buffered']
    #allocation5 [shape = 's32[1]{0}', space=sflag, size = 0x4, scoped, tag = 'scoped memory for domain_classifier_forward.1']
    #allocation6 [shape = 'u8[32768]{0}', space=vmem, size = 0x8000, scoped, tag = 'input window, operand 2, single buffered']
    #allocation7 [shape = 's32[1]{0}', space=sflag, size = 0x4, scoped, tag = 'scoped memory for domain_classifier_forward.1']
    #allocation8 [shape = 'u8[2048]{0}', space=vmem, size = 0x800, scoped, tag = 'input window, operand 3, single buffered']
    %9 = vsyncpa [#allocation5], 0
    %10 = vsyncpa [#allocation7], 0
    // Predicated region
    $region2: #{domain_classifier_forward.1} parent=1 // pred_check
      _
    $region3: #{domain_classifier_forward.1} parent=1 // pred_check_branch
      %12 = sbr.rel (0) target = $region5
    $region4: #{domain_classifier_forward.1} parent=1 // pred_region
      %14 = vsyncadd [#allocation5], 0
      %s16 = sshll.u32 %s0, 4
      %s17 = int_to_ptr.hbm [resolvable:$true] %s16
      %s18 = sshll.u32 [#allocation4], 4
      %s19 = int_to_ptr.vmem [resolvable:$true] %s18
      %21 = dma.hbm_to_vmem [thread:$0]  %s17, 512, %s19, [#allocation5]
    $region5: #{domain_classifier_forward.1} parent=1 // pred_fallthru
      _
    // Predicated region
    $region6: #{domain_classifier_forward.1} parent=1 // pred_check
      _
    $region7: #{domain_classifier_forward.1} parent=1 // pred_check_branch
      %23 = sbr.rel (0) target = $region9
    $region8: #{domain_classifier_forward.1} parent=1 // pred_region
      %25 = vsyncadd [#allocation7], 0
      %s26 = sshll.u32 %s2, 4
      %s27 = int_to_ptr.hbm [resolvable:$true] %s26
      %s28 = sshll.u32 [#allocation6], 4
      %s29 = int_to_ptr.vmem [resolvable:$true] %s28
      %34 = dma.hbm_to_vmem [thread:$0]  %s27, 1024, %s29, [#allocation7], 512, 512, 32
    $region9: #{domain_classifier_forward.1} parent=1 // pred_fallthru
      _
    // Predicated region
    $region10: #{domain_classifier_forward.1} parent=1 // pred_check
      _
    $region11: #{domain_classifier_forward.1} parent=1 // pred_check_branch
      %36 = sbr.rel (0) target = $region13
    $region12: #{domain_classifier_forward.1} parent=1 // pred_region
      %38 = vsyncadd [#allocation7], 0
      %s40 = sshll.u32 %s3, 4
      %s41 = int_to_ptr.hbm [resolvable:$true] %s40
      %s42 = sshll.u32 [#allocation8], 4
      %s43 = int_to_ptr.vmem [resolvable:$true] %s42
      %45 = dma.hbm_to_vmem [thread:$0]  %s41, 64, %s43, [#allocation7]
    $region13: #{domain_classifier_forward.1} parent=1 // pred_fallthru
      _
    // Predicated region
    $region14: #{domain_classifier_forward.1} parent=1 // pred_check
      _
    $region15: #{domain_classifier_forward.1} parent=1 // pred_check_branch
      %47 = sbr.rel (0) target = $region17
    $region16: #{domain_classifier_forward.1} parent=1 // pred_region
      %49 = dma.done [#allocation5], 512
    $region17: #{domain_classifier_forward.1} parent=1 // pred_fallthru
      _
    // Predicated region
    $region18: #{domain_classifier_forward.1} parent=1 // pred_check
      _
    $region19: #{domain_classifier_forward.1} parent=1 // pred_check_branch
      %51 = sbr.rel (0) target = $region21
    $region20: #{domain_classifier_forward.1} parent=1 // pred_region
      %53 = dma.done [#allocation7], 1024
    $region21: #{domain_classifier_forward.1} parent=1 // pred_fallthru
      _
    // Predicated region
    $region22: #{domain_classifier_forward.1} parent=1 // pred_check
      _
    $region23: #{domain_classifier_forward.1} parent=1 // pred_check_branch
      %55 = sbr.rel (0) target = $region25
    $region24: #{domain_classifier_forward.1} parent=1 // pred_region
      %57 = dma.done [#allocation7], 64
    $region25: #{domain_classifier_forward.1} parent=1 // pred_fallthru
      _
    // Predicated region
    $region26: #{domain_classifier_forward.1} parent=1 // pred_check
      _
    $region27: #{domain_classifier_forward.1} parent=1 // pred_check_branch
      %59 = sbr.rel target = $region29
    $region28: #{domain_classifier_forward.1} parent=1 // pred_region
      %60 = sst [smem:[#allocation11]] [#allocation10]
      %61 = sst [smem:[#allocation12]] [#allocation9]
    $region29: #{domain_classifier_forward.1} parent=1 // pred_fallthru
      _
    %63 = shalt.err (0)
    %s65 = sshll.u32 %s1, 4
    %s66 = int_to_ptr.hbm [resolvable:$true] %s65
    %s67 = sshll.u32 [#allocation2], 4
    %s68 = int_to_ptr.vmem [resolvable:$true] %s67
    %70 = dma.hbm_to_vmem [thread:$0]  %s66, 16384, %s68, [#allocation3]
    %v71 = vld [vmem:[#allocation4] sm:$0xff]
    %v72 = vld [vmem:[#allocation4 + $0x8] sm:$0xff]
    %v73 = vld [vmem:[#allocation4 + $0x10] sm:$0xff]
    %v74 = vld [vmem:[#allocation4 + $0x18] sm:$0xff]
    %v75 = vpack.c.bf16 %v71, %v71
    %v76 = vpack.c.bf16 %v72, %v72
    %v77 = vpack.c.bf16 %v73, %v73
    %v78 = vpack.c.bf16 %v74, %v74
    %s79 = scalar_lea.hbm %s1, 1024
    %s80 = scalar_lea.vmem [#allocation2], 1024
    %s81 = scalar_lea.sflag [#allocation3], 1
    // Predicated region
    $region30: #{domain_classifier_forward.1} parent=1 // pred_check
      _
    $region31: #{domain_classifier_forward.1} parent=1 // pred_check_branch
      %83 = sbr.rel target = $region33
    $region32: #{domain_classifier_forward.1} parent=1 // pred_region
      %84 = sst [smem:[#allocation11]] [#allocation14]
      %85 = sst [smem:[#allocation12]] [#allocation13]
    $region33: #{domain_classifier_forward.1} parent=1 // pred_fallthru
      _
    %87 = shalt.err (0)
    %s89 = sshll.u32 %s79, 4
    %s90 = int_to_ptr.hbm [resolvable:$true] %s89
    %s91 = sshll.u32 %s80, 4
    %s92 = int_to_ptr.vmem [resolvable:$true] %s91
    %94 = dma.hbm_to_vmem [thread:$0]  %s90, 16384, %s92, %s81
    %s95 = smul.u32 4, 64
    %s96 = smul.u32 %s95, 4
    %s97 = sshll.u32 %s96, 4
    %98 = dma.done [#allocation3], %s97
    %v99 = vld [vmem:[#allocation2] sm:$0xff]
    %v100 = vld [vmem:[#allocation2 + $0x8] sm:$0xff]
    %v101 = vld [vmem:[#allocation2 + $0x10] sm:$0xff]
    %v102 = vld [vmem:[#allocation2 + $0x18] sm:$0xff]
    %v103 = vld [vmem:[#allocation2 + $0x20] sm:$0xff]
    %v104 = vld [vmem:[#allocation2 + $0x28] sm:$0xff]
    %v105 = vld [vmem:[#allocation2 + $0x30] sm:$0xff]
    %v106 = vld [vmem:[#allocation2 + $0x38] sm:$0xff]
    %v107 = vld [vmem:[#allocation2 + $0x40] sm:$0xff]
    %v108 = vld [vmem:[#allocation2 + $0x48] sm:$0xff]
    %v109 = vld [vmem:[#allocation2 + $0x50] sm:$0xff]
    %v110 = vld [vmem:[#allocation2 + $0x58] sm:$0xff]
    %v111 = vld [vmem:[#allocation2 + $0x60] sm:$0xff]
    %v112 = vld [vmem:[#allocation2 + $0x68] sm:$0xff]
    %v113 = vld [vmem:[#allocation2 + $0x70] sm:$0xff]
    %v114 = vld [vmem:[#allocation2 + $0x78] sm:$0xff]
    %v115 = vld [vmem:[#allocation2 + $0x80] sm:$0xff]
    %v116 = vld [vmem:[#allocation2 + $0x88] sm:$0xff]
    %v117 = vld [vmem:[#allocation2 + $0x90] sm:$0xff]
    %v118 = vld [vmem:[#allocation2 + $0x98] sm:$0xff]
    %v119 = vld [vmem:[#allocation2 + $0xa0] sm:$0xff]
    %v120 = vld [vmem:[#allocation2 + $0xa8] sm:$0xff]
    %v121 = vld [vmem:[#allocation2 + $0xb0] sm:$0xff]
    %v122 = vld [vmem:[#allocation2 + $0xb8] sm:$0xff]
    %v123 = vld [vmem:[#allocation2 + $0xc0] sm:$0xff]
    %v124 = vld [vmem:[#allocation2 + $0xc8] sm:$0xff]
    %v125 = vld [vmem:[#allocation2 + $0xd0] sm:$0xff]
    %v126 = vld [vmem:[#allocation2 + $0xd8] sm:$0xff]
    %v127 = vld [vmem:[#allocation2 + $0xe0] sm:$0xff]
    %v128 = vld [vmem:[#allocation2 + $0xe8] sm:$0xff]
    %v129 = vld [vmem:[#allocation2 + $0xf0] sm:$0xff]
    %v130 = vld [vmem:[#allocation2 + $0xf8] sm:$0xff]
    %v131 = vld [vmem:[#allocation2 + $0x100] sm:$0xff]
    %v132 = vld [vmem:[#allocation2 + $0x108] sm:$0xff]
    %v133 = vld [vmem:[#allocation2 + $0x110] sm:$0xff]
    %v134 = vld [vmem:[#allocation2 + $0x118] sm:$0xff]
    %v135 = vld [vmem:[#allocation2 + $0x120] sm:$0xff]
    %v136 = vld [vmem:[#allocation2 + $0x128] sm:$0xff]
    %v137 = vld [vmem:[#allocation2 + $0x130] sm:$0xff]
    %v138 = vld [vmem:[#allocation2 + $0x138] sm:$0xff]
    %v139 = vld [vmem:[#allocation2 + $0x140] sm:$0xff]
    %v140 = vld [vmem:[#allocation2 + $0x148] sm:$0xff]
    %v141 = vld [vmem:[#allocation2 + $0x150] sm:$0xff]
    %v142 = vld [vmem:[#allocation2 + $0x158] sm:$0xff]
    %v143 = vld [vmem:[#allocation2 + $0x160] sm:$0xff]
    %v144 = vld [vmem:[#allocation2 + $0x168] sm:$0xff]
    %v145 = vld [vmem:[#allocation2 + $0x170] sm:$0xff]
    %v146 = vld [vmem:[#allocation2 + $0x178] sm:$0xff]
    %v147 = vld [vmem:[#allocation2 + $0x180] sm:$0xff]
    %v148 = vld [vmem:[#allocation2 + $0x188] sm:$0xff]
    %v149 = vld [vmem:[#allocation2 + $0x190] sm:$0xff]
    %v150 = vld [vmem:[#allocation2 + $0x198] sm:$0xff]
    %v151 = vld [vmem:[#allocation2 + $0x1a0] sm:$0xff]
    %v152 = vld [vmem:[#allocation2 + $0x1a8] sm:$0xff]
    %v153 = vld [vmem:[#allocation2 + $0x1b0] sm:$0xff]
    %v154 = vld [vmem:[#allocation2 + $0x1b8] sm:$0xff]
    %v155 = vld [vmem:[#allocation2 + $0x1c0] sm:$0xff]
    %v156 = vld [vmem:[#allocation2 + $0x1c8] sm:$0xff]
    %v157 = vld [vmem:[#allocation2 + $0x1d0] sm:$0xff]
    %v158 = vld [vmem:[#allocation2 + $0x1d8] sm:$0xff]
    %v159 = vld [vmem:[#allocation2 + $0x1e0] sm:$0xff]
    %v160 = vld [vmem:[#allocation2 + $0x1e8] sm:$0xff]
    %v161 = vld [vmem:[#allocation2 + $0x1f0] sm:$0xff]
    %v162 = vld [vmem:[#allocation2 + $0x1f8] sm:$0xff]
    %v163 = vld [vmem:[#allocation2 + $0x200] sm:$0xff]
    %v164 = vld [vmem:[#allocation2 + $0x208] sm:$0xff]
    %v165 = vld [vmem:[#allocation2 + $0x210] sm:$0xff]
    %v166 = vld [vmem:[#allocation2 + $0x218] sm:$0xff]
    %v167 = vld [vmem:[#allocation2 + $0x220] sm:$0xff]
    %v168 = vld [vmem:[#allocation2 + $0x228] sm:$0xff]
    %v169 = vld [vmem:[#allocation2 + $0x230] sm:$0xff]
    %v170 = vld [vmem:[#allocation2 + $0x238] sm:$0xff]
    %v171 = vld [vmem:[#allocation2 + $0x240] sm:$0xff]
    %v172 = vld [vmem:[#allocation2 + $0x248] sm:$0xff]
    %v173 = vld [vmem:[#allocation2 + $0x250] sm:$0xff]
    %v174 = vld [vmem:[#allocation2 + $0x258] sm:$0xff]
    %v175 = vld [vmem:[#allocation2 + $0x260] sm:$0xff]
    %v176 = vld [vmem:[#allocation2 + $0x268] sm:$0xff]
    %v177 = vld [vmem:[#allocation2 + $0x270] sm:$0xff]
    %v178 = vld [vmem:[#allocation2 + $0x278] sm:$0xff]
    %v179 = vld [vmem:[#allocation2 + $0x280] sm:$0xff]
    %v180 = vld [vmem:[#allocation2 + $0x288] sm:$0xff]
    %v181 = vld [vmem:[#allocation2 + $0x290] sm:$0xff]
    %v182 = vld [vmem:[#allocation2 + $0x298] sm:$0xff]
    %v183 = vld [vmem:[#allocation2 + $0x2a0] sm:$0xff]
    %v184 = vld [vmem:[#allocation2 + $0x2a8] sm:$0xff]
    %v185 = vld [vmem:[#allocation2 + $0x2b0] sm:$0xff]
    %v186 = vld [vmem:[#allocation2 + $0x2b8] sm:$0xff]
    %v187 = vld [vmem:[#allocation2 + $0x2c0] sm:$0xff]
    %v188 = vld [vmem:[#allocation2 + $0x2c8] sm:$0xff]
    %v189 = vld [vmem:[#allocation2 + $0x2d0] sm:$0xff]
    %v190 = vld [vmem:[#allocation2 + $0x2d8] sm:$0xff]
    %v191 = vld [vmem:[#allocation2 + $0x2e0] sm:$0xff]
    %v192 = vld [vmem:[#allocation2 + $0x2e8] sm:$0xff]
    %v193 = vld [vmem:[#allocation2 + $0x2f0] sm:$0xff]
    %v194 = vld [vmem:[#allocation2 + $0x2f8] sm:$0xff]
    %v195 = vld [vmem:[#allocation2 + $0x300] sm:$0xff]
    %v196 = vld [vmem:[#allocation2 + $0x308] sm:$0xff]
    %v197 = vld [vmem:[#allocation2 + $0x310] sm:$0xff]
    %v198 = vld [vmem:[#allocation2 + $0x318] sm:$0xff]
    %v199 = vld [vmem:[#allocation2 + $0x320] sm:$0xff]
    %v200 = vld [vmem:[#allocation2 + $0x328] sm:$0xff]
    %v201 = vld [vmem:[#allocation2 + $0x330] sm:$0xff]
    %v202 = vld [vmem:[#allocation2 + $0x338] sm:$0xff]
    %v203 = vld [vmem:[#allocation2 + $0x340] sm:$0xff]
    %v204 = vld [vmem:[#allocation2 + $0x348] sm:$0xff]
    %v205 = vld [vmem:[#allocation2 + $0x350] sm:$0xff]
    %v206 = vld [vmem:[#allocation2 + $0x358] sm:$0xff]
    %v207 = vld [vmem:[#allocation2 + $0x360] sm:$0xff]
    %v208 = vld [vmem:[#allocation2 + $0x368] sm:$0xff]
    %v209 = vld [vmem:[#allocation2 + $0x370] sm:$0xff]
    %v210 = vld [vmem:[#allocation2 + $0x378] sm:$0xff]
    %v211 = vld [vmem:[#allocation2 + $0x380] sm:$0xff]
    %v212 = vld [vmem:[#allocation2 + $0x388] sm:$0xff]
    %v213 = vld [vmem:[#allocation2 + $0x390] sm:$0xff]
    %v214 = vld [vmem:[#allocation2 + $0x398] sm:$0xff]
    %v215 = vld [vmem:[#allocation2 + $0x3a0] sm:$0xff]
    %v216 = vld [vmem:[#allocation2 + $0x3a8] sm:$0xff]
    %v217 = vld [vmem:[#allocation2 + $0x3b0] sm:$0xff]
    %v218 = vld [vmem:[#allocation2 + $0x3b8] sm:$0xff]
    %v219 = vld [vmem:[#allocation2 + $0x3c0] sm:$0xff]
    %v220 = vld [vmem:[#allocation2 + $0x3c8] sm:$0xff]
    %v221 = vld [vmem:[#allocation2 + $0x3d0] sm:$0xff]
    %v222 = vld [vmem:[#allocation2 + $0x3d8] sm:$0xff]
    %v223 = vld [vmem:[#allocation2 + $0x3e0] sm:$0xff]
    %v224 = vld [vmem:[#allocation2 + $0x3e8] sm:$0xff]
    %v225 = vld [vmem:[#allocation2 + $0x3f0] sm:$0xff]
    %v226 = vld [vmem:[#allocation2 + $0x3f8] sm:$0xff]
    %v227 = vld [vmem:[#allocation6] ss:$8 sm:$0xf]
    %s228 = scalar_lea.vmem [#allocation6], 4
    %v229 = vld [vmem:[%s228] ss:$8 sm:$0xf]
    %s230 = scalar_lea.vmem [#allocation6], 32
    %v231 = vld [vmem:[%s230] ss:$8 sm:$0xf]
    %v233 = vperm.slane %v227, 0
    %v234 = vperm.slane %v227, 1
    %v235 = vperm.slane %v227, 2
    %v236 = vperm.slane %v227, 3
    %v369 = vunpack.c.l.b16 %v99
    %v370 = vunpack.c.h.b16 %v99
    %v371 = vunpack.c.l.b16 %v100
    %v372 = vunpack.c.h.b16 %v100
    %v373 = vunpack.c.l.b16 %v101
    %v374 = vunpack.c.h.b16 %v101
    %v375 = vunpack.c.l.b16 %v102
    %v376 = vunpack.c.h.b16 %v102
    %v377 = vunpack.c.l.b16 %v103
    %v378 = vunpack.c.h.b16 %v103
    %v379 = vunpack.c.l.b16 %v104
    %v380 = vunpack.c.h.b16 %v104
    %v381 = vunpack.c.l.b16 %v105
    %v382 = vunpack.c.h.b16 %v105
    %v383 = vunpack.c.l.b16 %v106
    %v384 = vunpack.c.h.b16 %v106
    %v385 = vunpack.c.l.b16 %v107
    %v386 = vunpack.c.h.b16 %v107
    %v387 = vunpack.c.l.b16 %v108
    %v388 = vunpack.c.h.b16 %v108
    %v389 = vunpack.c.l.b16 %v109
    %v390 = vunpack.c.h.b16 %v109
    %v391 = vunpack.c.l.b16 %v110
    %v392 = vunpack.c.h.b16 %v110
    %v393 = vunpack.c.l.b16 %v111
    %v394 = vunpack.c.h.b16 %v111
    %v395 = vunpack.c.l.b16 %v112
    %v396 = vunpack.c.h.b16 %v112
    %v397 = vunpack.c.l.b16 %v113
    %v398 = vunpack.c.h.b16 %v113
    %v399 = vunpack.c.l.b16 %v114
    %v400 = vunpack.c.h.b16 %v114
    %v401 = vunpack.c.l.b16 %v115
    %v402 = vunpack.c.h.b16 %v115
    %v403 = vunpack.c.l.b16 %v116
    %v404 = vunpack.c.h.b16 %v116
    %v405 = vunpack.c.l.b16 %v117
    %v406 = vunpack.c.h.b16 %v117
    %v407 = vunpack.c.l.b16 %v118
    %v408 = vunpack.c.h.b16 %v118
    %v409 = vunpack.c.l.b16 %v119
    %v410 = vunpack.c.h.b16 %v119
    %v411 = vunpack.c.l.b16 %v120
    %v412 = vunpack.c.h.b16 %v120
    %v413 = vunpack.c.l.b16 %v121
    %v414 = vunpack.c.h.b16 %v121
    %v415 = vunpack.c.l.b16 %v122
    %v416 = vunpack.c.h.b16 %v122
    %v417 = vunpack.c.l.b16 %v123
    %v418 = vunpack.c.h.b16 %v123
    %v419 = vunpack.c.l.b16 %v124
    %v420 = vunpack.c.h.b16 %v124
    %v421 = vunpack.c.l.b16 %v125
    %v422 = vunpack.c.h.b16 %v125
    %v423 = vunpack.c.l.b16 %v126
    %v424 = vunpack.c.h.b16 %v126
    %v425 = vunpack.c.l.b16 %v127
    %v426 = vunpack.c.h.b16 %v127
    %v427 = vunpack.c.l.b16 %v128
    %v428 = vunpack.c.h.b16 %v128
    %v429 = vunpack.c.l.b16 %v129
    %v430 = vunpack.c.h.b16 %v129
    %v431 = vunpack.c.l.b16 %v130
    %v432 = vunpack.c.h.b16 %v130
    %v433 = vunpack.c.l.b16 %v131
    %v434 = vunpack.c.h.b16 %v131
    %v435 = vunpack.c.l.b16 %v132
    %v436 = vunpack.c.h.b16 %v132
    %v437 = vunpack.c.l.b16 %v133
    %v438 = vunpack.c.h.b16 %v133
    %v439 = vunpack.c.l.b16 %v134
    %v440 = vunpack.c.h.b16 %v134
    %v441 = vunpack.c.l.b16 %v135
    %v442 = vunpack.c.h.b16 %v135
    %v443 = vunpack.c.l.b16 %v136
    %v444 = vunpack.c.h.b16 %v136
    %v445 = vunpack.c.l.b16 %v137
    %v446 = vunpack.c.h.b16 %v137
    %v447 = vunpack.c.l.b16 %v138
    %v448 = vunpack.c.h.b16 %v138
    %v449 = vunpack.c.l.b16 %v139
    %v450 = vunpack.c.h.b16 %v139
    %v451 = vunpack.c.l.b16 %v140
    %v452 = vunpack.c.h.b16 %v140
    %v453 = vunpack.c.l.b16 %v141
    %v454 = vunpack.c.h.b16 %v141
    %v455 = vunpack.c.l.b16 %v142
    %v456 = vunpack.c.h.b16 %v142
    %v457 = vunpack.c.l.b16 %v143
    %v458 = vunpack.c.h.b16 %v143
    %v459 = vunpack.c.l.b16 %v144
    %v460 = vunpack.c.h.b16 %v144
    %v461 = vunpack.c.l.b16 %v145
    %v462 = vunpack.c.h.b16 %v145
    %v463 = vunpack.c.l.b16 %v146
    %v464 = vunpack.c.h.b16 %v146
    %v465 = vunpack.c.l.b16 %v147
    %v466 = vunpack.c.h.b16 %v147
    %v467 = vunpack.c.l.b16 %v148
    %v468 = vunpack.c.h.b16 %v148
    %v469 = vunpack.c.l.b16 %v149
    %v470 = vunpack.c.h.b16 %v149
    %v471 = vunpack.c.l.b16 %v150
    %v472 = vunpack.c.h.b16 %v150
    %v473 = vunpack.c.l.b16 %v151
    %v474 = vunpack.c.h.b16 %v151
    %v475 = vunpack.c.l.b16 %v152
    %v476 = vunpack.c.h.b16 %v152
    %v477 = vunpack.c.l.b16 %v153
    %v478 = vunpack.c.h.b16 %v153
    %v479 = vunpack.c.l.b16 %v154
    %v480 = vunpack.c.h.b16 %v154
    %v481 = vunpack.c.l.b16 %v155
    %v482 = vunpack.c.h.b16 %v155
    %v483 = vunpack.c.l.b16 %v156
    %v484 = vunpack.c.h.b16 %v156
    %v485 = vunpack.c.l.b16 %v157
    %v486 = vunpack.c.h.b16 %v157
    %v487 = vunpack.c.l.b16 %v158
    %v488 = vunpack.c.h.b16 %v158
    %v489 = vunpack.c.l.b16 %v159
    %v490 = vunpack.c.h.b16 %v159
    %v491 = vunpack.c.l.b16 %v160
    %v492 = vunpack.c.h.b16 %v160
    %v493 = vunpack.c.l.b16 %v161
    %v494 = vunpack.c.h.b16 %v161
    %v495 = vunpack.c.l.b16 %v162
    %v496 = vunpack.c.h.b16 %v162
    %v497 = vunpack.c.l.b16 %v163
    %v498 = vunpack.c.h.b16 %v163
    %v499 = vunpack.c.l.b16 %v164
    %v500 = vunpack.c.h.b16 %v164
    %v501 = vunpack.c.l.b16 %v165
    %v502 = vunpack.c.h.b16 %v165
    %v503 = vunpack.c.l.b16 %v166
    %v504 = vunpack.c.h.b16 %v166
    %v505 = vunpack.c.l.b16 %v167
    %v506 = vunpack.c.h.b16 %v167
    %v507 = vunpack.c.l.b16 %v168
    %v508 = vunpack.c.h.b16 %v168
    %v509 = vunpack.c.l.b16 %v169
    %v510 = vunpack.c.h.b16 %v169
    %v511 = vunpack.c.l.b16 %v170
    %v512 = vunpack.c.h.b16 %v170
    %v513 = vunpack.c.l.b16 %v171
    %v514 = vunpack.c.h.b16 %v171
    %v515 = vunpack.c.l.b16 %v172
    %v516 = vunpack.c.h.b16 %v172
    %v517 = vunpack.c.l.b16 %v173
    %v518 = vunpack.c.h.b16 %v173
    %v519 = vunpack.c.l.b16 %v174
    %v520 = vunpack.c.h.b16 %v174
    %v521 = vunpack.c.l.b16 %v175
    %v522 = vunpack.c.h.b16 %v175
    %v523 = vunpack.c.l.b16 %v176
    %v524 = vunpack.c.h.b16 %v176
    %v525 = vunpack.c.l.b16 %v177
    %v526 = vunpack.c.h.b16 %v177
    %v527 = vunpack.c.l.b16 %v178
    %v528 = vunpack.c.h.b16 %v178
    %v529 = vunpack.c.l.b16 %v179
    %v530 = vunpack.c.h.b16 %v179
    %v531 = vunpack.c.l.b16 %v180
    %v532 = vunpack.c.h.b16 %v180
    %v533 = vunpack.c.l.b16 %v181
    %v534 = vunpack.c.h.b16 %v181
    %v535 = vunpack.c.l.b16 %v182
    %v536 = vunpack.c.h.b16 %v182
    %v537 = vunpack.c.l.b16 %v183
    %v538 = vunpack.c.h.b16 %v183
    %v539 = vunpack.c.l.b16 %v184
    %v540 = vunpack.c.h.b16 %v184
    %v541 = vunpack.c.l.b16 %v185
    %v542 = vunpack.c.h.b16 %v185
    %v543 = vunpack.c.l.b16 %v186
    %v544 = vunpack.c.h.b16 %v186
    %v545 = vunpack.c.l.b16 %v187
    %v546 = vunpack.c.h.b16 %v187
    %v547 = vunpack.c.l.b16 %v188
    %v548 = vunpack.c.h.b16 %v188
    %v549 = vunpack.c.l.b16 %v189
    %v550 = vunpack.c.h.b16 %v189
    %v551 = vunpack.c.l.b16 %v190
    %v552 = vunpack.c.h.b16 %v190
    %v553 = vunpack.c.l.b16 %v191
    %v554 = vunpack.c.h.b16 %v191
    %v555 = vunpack.c.l.b16 %v192
    %v556 = vunpack.c.h.b16 %v192
    %v557 = vunpack.c.l.b16 %v193
    %v558 = vunpack.c.h.b16 %v193
    %v559 = vunpack.c.l.b16 %v194
    %v560 = vunpack.c.h.b16 %v194
    %v561 = vunpack.c.l.b16 %v195
    %v562 = vunpack.c.h.b16 %v195
    %v563 = vunpack.c.l.b16 %v196
    %v564 = vunpack.c.h.b16 %v196
    %v565 = vunpack.c.l.b16 %v197
    %v566 = vunpack.c.h.b16 %v197
    %v567 = vunpack.c.l.b16 %v198
    %v568 = vunpack.c.h.b16 %v198
    %v569 = vunpack.c.l.b16 %v199
    %v570 = vunpack.c.h.b16 %v199
    %v571 = vunpack.c.l.b16 %v200
    %v572 = vunpack.c.h.b16 %v200
    %v573 = vunpack.c.l.b16 %v201
    %v574 = vunpack.c.h.b16 %v201
    %v575 = vunpack.c.l.b16 %v202
    %v576 = vunpack.c.h.b16 %v202
    %v577 = vunpack.c.l.b16 %v203
    %v578 = vunpack.c.h.b16 %v203
    %v579 = vunpack.c.l.b16 %v204
    %v580 = vunpack.c.h.b16 %v204
    %v581 = vunpack.c.l.b16 %v205
    %v582 = vunpack.c.h.b16 %v205
    %v583 = vunpack.c.l.b16 %v206
    %v584 = vunpack.c.h.b16 %v206
    %v585 = vunpack.c.l.b16 %v207
    %v586 = vunpack.c.h.b16 %v207
    %v587 = vunpack.c.l.b16 %v208
    %v588 = vunpack.c.h.b16 %v208
    %v589 = vunpack.c.l.b16 %v209
    %v590 = vunpack.c.h.b16 %v209
    %v591 = vunpack.c.l.b16 %v210
    %v592 = vunpack.c.h.b16 %v210
    %v593 = vunpack.c.l.b16 %v211
    %v594 = vunpack.c.h.b16 %v211
    %v595 = vunpack.c.l.b16 %v212
    %v596 = vunpack.c.h.b16 %v212
    %v597 = vunpack.c.l.b16 %v213
    %v598 = vunpack.c.h.b16 %v213
    %v599 = vunpack.c.l.b16 %v214
    %v600 = vunpack.c.h.b16 %v214
    %v601 = vunpack.c.l.b16 %v215
    %v602 = vunpack.c.h.b16 %v215
    %v603 = vunpack.c.l.b16 %v216
    %v604 = vunpack.c.h.b16 %v216
    %v605 = vunpack.c.l.b16 %v217
    %v606 = vunpack.c.h.b16 %v217
    %v607 = vunpack.c.l.b16 %v218
    %v608 = vunpack.c.h.b16 %v218
    %v609 = vunpack.c.l.b16 %v219
    %v610 = vunpack.c.h.b16 %v219
    %v611 = vunpack.c.l.b16 %v220
    %v612 = vunpack.c.h.b16 %v220
    %v613 = vunpack.c.l.b16 %v221
    %v614 = vunpack.c.h.b16 %v221
    %v615 = vunpack.c.l.b16 %v222
    %v616 = vunpack.c.h.b16 %v222
    %v617 = vunpack.c.l.b16 %v223
    %v618 = vunpack.c.h.b16 %v223
    %v619 = vunpack.c.l.b16 %v224
    %v620 = vunpack.c.h.b16 %v224
    %v621 = vunpack.c.l.b16 %v225
    %v622 = vunpack.c.h.b16 %v225
    %v623 = vunpack.c.l.b16 %v226
    %v624 = vunpack.c.h.b16 %v226
    %v625 = vpack.c.b16 %v373, %v369
    %v626 = vpack.c.b16 %v374, %v370
    %v627 = vpack.c.b16 %v375, %v371
    %v628 = vpack.c.b16 %v376, %v372
    %v629 = vpack.c.b16 %v381, %v377
    %v630 = vpack.c.b16 %v382, %v378
    %v631 = vpack.c.b16 %v383, %v379
    %v632 = vpack.c.b16 %v384, %v380
    %v633 = vpack.c.b16 %v389, %v385
    %v634 = vpack.c.b16 %v390, %v386
    %v635 = vpack.c.b16 %v391, %v387
    %v636 = vpack.c.b16 %v392, %v388
    %v637 = vpack.c.b16 %v397, %v393
    %v638 = vpack.c.b16 %v398, %v394
    %v639 = vpack.c.b16 %v399, %v395
    %v640 = vpack.c.b16 %v400, %v396
    %v641 = vpack.c.b16 %v405, %v401
    %v642 = vpack.c.b16 %v406, %v402
    %v643 = vpack.c.b16 %v407, %v403
    %v644 = vpack.c.b16 %v408, %v404
    %v645 = vpack.c.b16 %v413, %v409
    %v646 = vpack.c.b16 %v414, %v410
    %v647 = vpack.c.b16 %v415, %v411
    %v648 = vpack.c.b16 %v416, %v412
    %v649 = vpack.c.b16 %v421, %v417
    %v650 = vpack.c.b16 %v422, %v418
    %v651 = vpack.c.b16 %v423, %v419
    %v652 = vpack.c.b16 %v424, %v420
    %v653 = vpack.c.b16 %v429, %v425
    %v654 = vpack.c.b16 %v430, %v426
    %v655 = vpack.c.b16 %v431, %v427
    %v656 = vpack.c.b16 %v432, %v428
    %v657 = vpack.c.b16 %v437, %v433
    %v658 = vpack.c.b16 %v438, %v434
    %v659 = vpack.c.b16 %v439, %v435
    %v660 = vpack.c.b16 %v440, %v436
    %v661 = vpack.c.b16 %v445, %v441
    %v662 = vpack.c.b16 %v446, %v442
    %v663 = vpack.c.b16 %v447, %v443
    %v664 = vpack.c.b16 %v448, %v444
    %v665 = vpack.c.b16 %v453, %v449
    %v666 = vpack.c.b16 %v454, %v450
    %v667 = vpack.c.b16 %v455, %v451
    %v668 = vpack.c.b16 %v456, %v452
    %v669 = vpack.c.b16 %v461, %v457
    %v670 = vpack.c.b16 %v462, %v458
    %v671 = vpack.c.b16 %v463, %v459
    %v672 = vpack.c.b16 %v464, %v460
    %v673 = vpack.c.b16 %v469, %v465
    %v674 = vpack.c.b16 %v470, %v466
    %v675 = vpack.c.b16 %v471, %v467
    %v676 = vpack.c.b16 %v472, %v468
    %v677 = vpack.c.b16 %v477, %v473
    %v678 = vpack.c.b16 %v478, %v474
    %v679 = vpack.c.b16 %v479, %v475
    %v680 = vpack.c.b16 %v480, %v476
    %v681 = vpack.c.b16 %v485, %v481
    %v682 = vpack.c.b16 %v486, %v482
    %v683 = vpack.c.b16 %v487, %v483
    %v684 = vpack.c.b16 %v488, %v484
    %v685 = vpack.c.b16 %v493, %v489
    %v686 = vpack.c.b16 %v494, %v490
    %v687 = vpack.c.b16 %v495, %v491
    %v688 = vpack.c.b16 %v496, %v492
    %v689 = vpack.c.b16 %v501, %v497
    %v690 = vpack.c.b16 %v502, %v498
    %v691 = vpack.c.b16 %v503, %v499
    %v692 = vpack.c.b16 %v504, %v500
    %v693 = vpack.c.b16 %v509, %v505
    %v694 = vpack.c.b16 %v510, %v506
    %v695 = vpack.c.b16 %v511, %v507
    %v696 = vpack.c.b16 %v512, %v508
    %v697 = vpack.c.b16 %v517, %v513
    %v698 = vpack.c.b16 %v518, %v514
    %v699 = vpack.c.b16 %v519, %v515
    %v700 = vpack.c.b16 %v520, %v516
    %v701 = vpack.c.b16 %v525, %v521
    %v702 = vpack.c.b16 %v526, %v522
    %v703 = vpack.c.b16 %v527, %v523
    %v704 = vpack.c.b16 %v528, %v524
    %v705 = vpack.c.b16 %v533, %v529
    %v706 = vpack.c.b16 %v534, %v530
    %v707 = vpack.c.b16 %v535, %v531
    %v708 = vpack.c.b16 %v536, %v532
    %v709 = vpack.c.b16 %v541, %v537
    %v710 = vpack.c.b16 %v542, %v538
    %v711 = vpack.c.b16 %v543, %v539
    %v712 = vpack.c.b16 %v544, %v540
    %v713 = vpack.c.b16 %v549, %v545
    %v714 = vpack.c.b16 %v550, %v546
    %v715 = vpack.c.b16 %v551, %v547
    %v716 = vpack.c.b16 %v552, %v548
    %v717 = vpack.c.b16 %v557, %v553
    %v718 = vpack.c.b16 %v558, %v554
    %v719 = vpack.c.b16 %v559, %v555
    %v720 = vpack.c.b16 %v560, %v556
    %v721 = vpack.c.b16 %v565, %v561
    %v722 = vpack.c.b16 %v566, %v562
    %v723 = vpack.c.b16 %v567, %v563
    %v724 = vpack.c.b16 %v568, %v564
    %v725 = vpack.c.b16 %v573, %v569
    %v726 = vpack.c.b16 %v574, %v570
    %v727 = vpack.c.b16 %v575, %v571
    %v728 = vpack.c.b16 %v576, %v572
    %v729 = vpack.c.b16 %v581, %v577
    %v730 = vpack.c.b16 %v582, %v578
    %v731 = vpack.c.b16 %v583, %v579
    %v732 = vpack.c.b16 %v584, %v580
    %v733 = vpack.c.b16 %v589, %v585
    %v734 = vpack.c.b16 %v590, %v586
    %v735 = vpack.c.b16 %v591, %v587
    %v736 = vpack.c.b16 %v592, %v588
    %v737 = vpack.c.b16 %v597, %v593
    %v738 = vpack.c.b16 %v598, %v594
    %v739 = vpack.c.b16 %v599, %v595
    %v740 = vpack.c.b16 %v600, %v596
    %v741 = vpack.c.b16 %v605, %v601
    %v742 = vpack.c.b16 %v606, %v602
    %v743 = vpack.c.b16 %v607, %v603
    %v744 = vpack.c.b16 %v608, %v604
    %v745 = vpack.c.b16 %v613, %v609
    %v746 = vpack.c.b16 %v614, %v610
    %v747 = vpack.c.b16 %v615, %v611
    %v748 = vpack.c.b16 %v616, %v612
    %v749 = vpack.c.b16 %v621, %v617
    %v750 = vpack.c.b16 %v622, %v618
    %v751 = vpack.c.b16 %v623, %v619
    %v752 = vpack.c.b16 %v624, %v620
    %881 = vmatpush.bf16.msra.mxu0 %v653
    %882 = vmatpush.bf16.msra.mxu0 %v649
    %883 = vmatpush.bf16.msra.mxu0 %v645
    %884 = vmatpush.bf16.msra.mxu0 %v641
    %885 = vmatpush.bf16.msra.mxu0 %v637
    %886 = vmatpush.bf16.msra.mxu0 %v633
    %887 = vmatpush.bf16.msra.mxu0 %v629
    %888 = vmatpush.bf16.msra.mxu0 %v625
    %889 = vmatmul.bf16.gmra.mxu0 %v75
    %v890 = vpop.f32.mrf.mxu0
    %v891 = vadd.f32 %v233, %v890
    %v892 = vpop.f32.mrf.mxu0
    %893 = vdwg.mxu0
    %894 = vmatpush.bf16.msra.mxu0 %v685
    %895 = vmatpush.bf16.msra.mxu0 %v681
    %896 = vmatpush.bf16.msra.mxu0 %v677
    %897 = vmatpush.bf16.msra.mxu0 %v673
    %898 = vmatpush.bf16.msra.mxu0 %v669
    %899 = vmatpush.bf16.msra.mxu0 %v665
    %900 = vmatpush.bf16.msra.mxu0 %v661
    %901 = vmatpush.bf16.msra.mxu0 %v657
    %902 = vmatmul.bf16.gmra.mxu0 %v76
    %v903 = vpop.f32.mrf.mxu0
    %v904 = vadd.f32 %v891, %v903
    %v905 = vpop.f32.mrf.mxu0
    %906 = vdwg.mxu0
    %907 = vmatpush.bf16.msra.mxu0 %v717
    %908 = vmatpush.bf16.msra.mxu0 %v713
    %909 = vmatpush.bf16.msra.mxu0 %v709
    %910 = vmatpush.bf16.msra.mxu0 %v705
    %911 = vmatpush.bf16.msra.mxu0 %v701
    %912 = vmatpush.bf16.msra.mxu0 %v697
    %913 = vmatpush.bf16.msra.mxu0 %v693
    %914 = vmatpush.bf16.msra.mxu0 %v689
    %915 = vmatmul.bf16.gmra.mxu0 %v77
    %v916 = vpop.f32.mrf.mxu0
    %v917 = vadd.f32 %v904, %v916
    %v918 = vpop.f32.mrf.mxu0
    %919 = vdwg.mxu0
    %920 = vmatpush.bf16.msra.mxu0 %v749
    %921 = vmatpush.bf16.msra.mxu0 %v745
    %922 = vmatpush.bf16.msra.mxu0 %v741
    %923 = vmatpush.bf16.msra.mxu0 %v737
    %924 = vmatpush.bf16.msra.mxu0 %v733
    %925 = vmatpush.bf16.msra.mxu0 %v729
    %926 = vmatpush.bf16.msra.mxu0 %v725
    %927 = vmatpush.bf16.msra.mxu0 %v721
    %928 = vmatmul.bf16.gmra.mxu0 %v78
    %v929 = vpop.f32.mrf.mxu0
    %v930 = vadd.f32 %v917, %v929
    %v931 = vpop.f32.mrf.mxu0
    %932 = vdwg.mxu0
    %933 = vmatpush.bf16.msra.mxu0 %v654
    %934 = vmatpush.bf16.msra.mxu0 %v650
    %935 = vmatpush.bf16.msra.mxu0 %v646
    %936 = vmatpush.bf16.msra.mxu0 %v642
    %937 = vmatpush.bf16.msra.mxu0 %v638
    %938 = vmatpush.bf16.msra.mxu0 %v634
    %939 = vmatpush.bf16.msra.mxu0 %v630
    %940 = vmatpush.bf16.msra.mxu0 %v626
    %941 = vmatmul.bf16.gmra.mxu0 %v75
    %v942 = vpop.f32.mrf.mxu0
    %v943 = vadd.f32 %v234, %v942
    %v944 = vpop.f32.mrf.mxu0
    %945 = vdwg.mxu0
    %946 = vmatpush.bf16.msra.mxu0 %v686
    %947 = vmatpush.bf16.msra.mxu0 %v682
    %948 = vmatpush.bf16.msra.mxu0 %v678
    %949 = vmatpush.bf16.msra.mxu0 %v674
    %950 = vmatpush.bf16.msra.mxu0 %v670
    %951 = vmatpush.bf16.msra.mxu0 %v666
    %952 = vmatpush.bf16.msra.mxu0 %v662
    %953 = vmatpush.bf16.msra.mxu0 %v658
    %954 = vmatmul.bf16.gmra.mxu0 %v76
    %v955 = vpop.f32.mrf.mxu0
    %v956 = vadd.f32 %v943, %v955
    %v957 = vpop.f32.mrf.mxu0
    %958 = vdwg.mxu0
    %959 = vmatpush.bf16.msra.mxu0 %v718
    %960 = vmatpush.bf16.msra.mxu0 %v714
    %961 = vmatpush.bf16.msra.mxu0 %v710
    %962 = vmatpush.bf16.msra.mxu0 %v706
    %963 = vmatpush.bf16.msra.mxu0 %v702
    %964 = vmatpush.bf16.msra.mxu0 %v698
    %965 = vmatpush.bf16.msra.mxu0 %v694
    %966 = vmatpush.bf16.msra.mxu0 %v690
    %967 = vmatmul.bf16.gmra.mxu0 %v77
    %v968 = vpop.f32.mrf.mxu0
    %v969 = vadd.f32 %v956, %v968
    %v970 = vpop.f32.mrf.mxu0
    %971 = vdwg.mxu0
    %972 = vmatpush.bf16.msra.mxu0 %v750
    %973 = vmatpush.bf16.msra.mxu0 %v746
    %974 = vmatpush.bf16.msra.mxu0 %v742
    %975 = vmatpush.bf16.msra.mxu0 %v738
    %976 = vmatpush.bf16.msra.mxu0 %v734
    %977 = vmatpush.bf16.msra.mxu0 %v730
    %978 = vmatpush.bf16.msra.mxu0 %v726
    %979 = vmatpush.bf16.msra.mxu0 %v722
    %980 = vmatmul.bf16.gmra.mxu0 %v78
    %v981 = vpop.f32.mrf.mxu0
    %v982 = vadd.f32 %v969, %v981
    %v983 = vpop.f32.mrf.mxu0
    %984 = vdwg.mxu0
    %985 = vmatpush.bf16.msra.mxu0 %v655
    %986 = vmatpush.bf16.msra.mxu0 %v651
    %987 = vmatpush.bf16.msra.mxu0 %v647
    %988 = vmatpush.bf16.msra.mxu0 %v643
    %989 = vmatpush.bf16.msra.mxu0 %v639
    %990 = vmatpush.bf16.msra.mxu0 %v635
    %991 = vmatpush.bf16.msra.mxu0 %v631
    %992 = vmatpush.bf16.msra.mxu0 %v627
    %993 = vmatmul.bf16.gmra.mxu0 %v75
    %v994 = vpop.f32.mrf.mxu0
    %v995 = vadd.f32 %v235, %v994
    %v996 = vpop.f32.mrf.mxu0
    %997 = vdwg.mxu0
    %998 = vmatpush.bf16.msra.mxu0 %v687
    %999 = vmatpush.bf16.msra.mxu0 %v683
    %1000 = vmatpush.bf16.msra.mxu0 %v679
    %1001 = vmatpush.bf16.msra.mxu0 %v675
    %1002 = vmatpush.bf16.msra.mxu0 %v671
    %1003 = vmatpush.bf16.msra.mxu0 %v667
    %1004 = vmatpush.bf16.msra.mxu0 %v663
    %1005 = vmatpush.bf16.msra.mxu0 %v659
    %1006 = vmatmul.bf16.gmra.mxu0 %v76
    %v1007 = vpop.f32.mrf.mxu0
    %v1008 = vadd.f32 %v995, %v1007
    %v1009 = vpop.f32.mrf.mxu0
    %1010 = vdwg.mxu0
    %1011 = vmatpush.bf16.msra.mxu0 %v719
    %1012 = vmatpush.bf16.msra.mxu0 %v715
    %1013 = vmatpush.bf16.msra.mxu0 %v711
    %1014 = vmatpush.bf16.msra.mxu0 %v707
    %1015 = vmatpush.bf16.msra.mxu0 %v703
    %1016 = vmatpush.bf16.msra.mxu0 %v699
    %1017 = vmatpush.bf16.msra.mxu0 %v695
    %1018 = vmatpush.bf16.msra.mxu0 %v691
    %1019 = vmatmul.bf16.gmra.mxu0 %v77
    %v1020 = vpop.f32.mrf.mxu0
    %v1021 = vadd.f32 %v1008, %v1020
    %v1022 = vpop.f32.mrf.mxu0
    %1023 = vdwg.mxu0
    %1024 = vmatpush.bf16.msra.mxu0 %v751
    %1025 = vmatpush.bf16.msra.mxu0 %v747
    %1026 = vmatpush.bf16.msra.mxu0 %v743
    %1027 = vmatpush.bf16.msra.mxu0 %v739
    %1028 = vmatpush.bf16.msra.mxu0 %v735
    %1029 = vmatpush.bf16.msra.mxu0 %v731
    %1030 = vmatpush.bf16.msra.mxu0 %v727
    %1031 = vmatpush.bf16.msra.mxu0 %v723
    %1032 = vmatmul.bf16.gmra.mxu0 %v78
    %v1033 = vpop.f32.mrf.mxu0
    %v1034 = vadd.f32 %v1021, %v1033
    %v1035 = vpop.f32.mrf.mxu0
    %1036 = vdwg.mxu0
    %1037 = vmatpush.bf16.msra.mxu0 %v656
    %1038 = vmatpush.bf16.msra.mxu0 %v652
    %1039 = vmatpush.bf16.msra.mxu0 %v648
    %1040 = vmatpush.bf16.msra.mxu0 %v644
    %1041 = vmatpush.bf16.msra.mxu0 %v640
    %1042 = vmatpush.bf16.msra.mxu0 %v636
    %1043 = vmatpush.bf16.msra.mxu0 %v632
    %1044 = vmatpush.bf16.msra.mxu0 %v628
    %1045 = vmatmul.bf16.gmra.mxu0 %v75
    %v1046 = vpop.f32.mrf.mxu0
    %v1047 = vadd.f32 %v236, %v1046
    %v1048 = vpop.f32.mrf.mxu0
    %1049 = vdwg.mxu0
    %1050 = vmatpush.bf16.msra.mxu0 %v688
    %1051 = vmatpush.bf16.msra.mxu0 %v684
    %1052 = vmatpush.bf16.msra.mxu0 %v680
    %1053 = vmatpush.bf16.msra.mxu0 %v676
    %1054 = vmatpush.bf16.msra.mxu0 %v672
    %1055 = vmatpush.bf16.msra.mxu0 %v668
    %1056 = vmatpush.bf16.msra.mxu0 %v664
    %1057 = vmatpush.bf16.msra.mxu0 %v660
    %1058 = vmatmul.bf16.gmra.mxu0 %v76
    %v1059 = vpop.f32.mrf.mxu0
    %v1060 = vadd.f32 %v1047, %v1059
    %v1061 = vpop.f32.mrf.mxu0
    %1062 = vdwg.mxu0
    %1063 = vmatpush.bf16.msra.mxu0 %v720
    %1064 = vmatpush.bf16.msra.mxu0 %v716
    %1065 = vmatpush.bf16.msra.mxu0 %v712
    %1066 = vmatpush.bf16.msra.mxu0 %v708
    %1067 = vmatpush.bf16.msra.mxu0 %v704
    %1068 = vmatpush.bf16.msra.mxu0 %v700
    %1069 = vmatpush.bf16.msra.mxu0 %v696
    %1070 = vmatpush.bf16.msra.mxu0 %v692
    %1071 = vmatmul.bf16.gmra.mxu0 %v77
    %v1072 = vpop.f32.mrf.mxu0
    %v1073 = vadd.f32 %v1060, %v1072
    %v1074 = vpop.f32.mrf.mxu0
    %1075 = vdwg.mxu0
    %1076 = vmatpush.bf16.msra.mxu0 %v752
    %1077 = vmatpush.bf16.msra.mxu0 %v748
    %1078 = vmatpush.bf16.msra.mxu0 %v744
    %1079 = vmatpush.bf16.msra.mxu0 %v740
    %1080 = vmatpush.bf16.msra.mxu0 %v736
    %1081 = vmatpush.bf16.msra.mxu0 %v732
    %1082 = vmatpush.bf16.msra.mxu0 %v728
    %1083 = vmatpush.bf16.msra.mxu0 %v724
    %1084 = vmatmul.bf16.gmra.mxu0 %v78
    %v1085 = vpop.f32.mrf.mxu0
    %v1086 = vadd.f32 %v1073, %v1085
    %v1087 = vpop.f32.mrf.mxu0
    %1088 = vdwg.mxu0
    %v1089 = vrot.slane %v930, 4
    %v1090 = vadd.f32 %v930, %v1089
    %v1091 = vrot.slane %v1090, 2
    %v1092 = vadd.f32 %v1090, %v1091
    %v1093 = vrot.slane %v1092, 1
    %v1094 = vadd.f32 %v1092, %v1093
    %v1095 = vrot.slane %v982, 4
    %v1096 = vadd.f32 %v982, %v1095
    %v1097 = vrot.slane %v1096, 2
    %v1098 = vadd.f32 %v1096, %v1097
    %v1099 = vrot.slane %v1098, 1
    %v1100 = vadd.f32 %v1098, %v1099
    %v1101 = vrot.slane %v1034, 4
    %v1102 = vadd.f32 %v1034, %v1101
    %v1103 = vrot.slane %v1102, 2
    %v1104 = vadd.f32 %v1102, %v1103
    %v1105 = vrot.slane %v1104, 1
    %v1106 = vadd.f32 %v1104, %v1105
    %v1107 = vrot.slane %v1086, 4
    %v1108 = vadd.f32 %v1086, %v1107
    %v1109 = vrot.slane %v1108, 2
    %v1110 = vadd.f32 %v1108, %v1109
    %v1111 = vrot.slane %v1110, 1
    %v1112 = vadd.f32 %v1110, %v1111
    %v1113 = vrcp.pop 8.0
    %v1114 = vmul.f32 8.0, %v1113
    %v1115 = vsub.f32 1.0, %v1114
    %v1116 = vmul.f32 %v1113, %v1115
    %v1117 = vadd.f32 %v1113, %v1116
    %vm1118 = vweird.f32 %v1113
    %v1119 = vsel %vm1118, %v1113, %v1117
    %v1120 = vmul.f32 %v1094, %v1119
    %v1121 = vmul.f32 %v1100, %v1119
    %v1122 = vmul.f32 %v1106, %v1119
    %v1123 = vmul.f32 %v1112, %v1119
    %v1124 = vsub.f32 %v930, %v1120
    %v1125 = vsub.f32 %v982, %v1121
    %v1126 = vsub.f32 %v1034, %v1122
    %v1127 = vsub.f32 %v1086, %v1123
    %v1128 = vmul.f32 %v1124, %v1124
    %v1129 = vmul.f32 %v1125, %v1125
    %v1130 = vmul.f32 %v1126, %v1126
    %v1131 = vmul.f32 %v1127, %v1127
    %v1132 = vrot.slane %v1128, 4
    %v1133 = vadd.f32 %v1128, %v1132
    %v1134 = vrot.slane %v1133, 2
    %v1135 = vadd.f32 %v1133, %v1134
    %v1136 = vrot.slane %v1135, 1
    %v1137 = vadd.f32 %v1135, %v1136
    %v1138 = vrot.slane %v1129, 4
    %v1139 = vadd.f32 %v1129, %v1138
    %v1140 = vrot.slane %v1139, 2
    %v1141 = vadd.f32 %v1139, %v1140
    %v1142 = vrot.slane %v1141, 1
    %v1143 = vadd.f32 %v1141, %v1142
    %v1144 = vrot.slane %v1130, 4
    %v1145 = vadd.f32 %v1130, %v1144
    %v1146 = vrot.slane %v1145, 2
    %v1147 = vadd.f32 %v1145, %v1146
    %v1148 = vrot.slane %v1147, 1
    %v1149 = vadd.f32 %v1147, %v1148
    %v1150 = vrot.slane %v1131, 4
    %v1151 = vadd.f32 %v1131, %v1150
    %v1152 = vrot.slane %v1151, 2
    %v1153 = vadd.f32 %v1151, %v1152
    %v1154 = vrot.slane %v1153, 1
    %v1155 = vadd.f32 %v1153, %v1154
    %v1156 = vmul.f32 %v1137, %v1119
    %v1157 = vmul.f32 %v1143, %v1119
    %v1158 = vmul.f32 %v1149, %v1119
    %v1159 = vmul.f32 %v1155, %v1119
    %v1160 = vadd.f32 %v1156, 1e-05
    %v1161 = vadd.f32 %v1157, 1e-05
    %v1162 = vadd.f32 %v1158, 1e-05
    %v1163 = vadd.f32 %v1159, 1e-05
    %v1164 = vrsqrt.pop %v1160
    %v1165 = vmul.f32 %v1164, %v1160
    %v1166 = vmul.f32 %v1165, %v1164
    %v1167 = vmul.f32 0.5, %v1166
    %v1168 = vsub.f32 1.5, %v1167
    %v1169 = vmul.f32 %v1164, %v1168
    %vm1170 = vweird.f32 %v1160
    %vm1171 = vweird.f32 %v1164
    %vm1172 = vmor %vm1170, %vm1171
    %v1173 = vsel %vm1172, %v1164, %v1169
    %v1174 = vrsqrt.pop %v1161
    %v1175 = vmul.f32 %v1174, %v1161
    %v1176 = vmul.f32 %v1175, %v1174
    %v1177 = vmul.f32 0.5, %v1176
    %v1178 = vsub.f32 1.5, %v1177
    %v1179 = vmul.f32 %v1174, %v1178
    %vm1180 = vweird.f32 %v1161
    %vm1181 = vweird.f32 %v1174
    %vm1182 = vmor %vm1180, %vm1181
    %v1183 = vsel %vm1182, %v1174, %v1179
    %v1184 = vrsqrt.pop %v1162
    %v1185 = vmul.f32 %v1184, %v1162
    %v1186 = vmul.f32 %v1185, %v1184
    %v1187 = vmul.f32 0.5, %v1186
    %v1188 = vsub.f32 1.5, %v1187
    %v1189 = vmul.f32 %v1184, %v1188
    %vm1190 = vweird.f32 %v1162
    %vm1191 = vweird.f32 %v1184
    %vm1192 = vmor %vm1190, %vm1191
    %v1193 = vsel %vm1192, %v1184, %v1189
    %v1194 = vrsqrt.pop %v1163
    %v1195 = vmul.f32 %v1194, %v1163
    %v1196 = vmul.f32 %v1195, %v1194
    %v1197 = vmul.f32 0.5, %v1196
    %v1198 = vsub.f32 1.5, %v1197
    %v1199 = vmul.f32 %v1194, %v1198
    %vm1200 = vweird.f32 %v1163
    %vm1201 = vweird.f32 %v1194
    %vm1202 = vmor %vm1200, %vm1201
    %v1203 = vsel %vm1202, %v1194, %v1199
    %v1208 = vrot.slane %v1183, 7
    %v1209 = vrot.slane %v1193, 6
    %v1210 = vrot.slane %v1203, 5
    %vm1211 = vcmask 1040384
    %v1212 = vsel %vm1211, %v1173, %v1208
    %vm1213 = vcmask 1042434
    %v1214 = vsel %vm1213, %v1209, %v1210
    %vm1215 = vcmask 1041408
    %v1216 = vsel %vm1215, %v1212, %v1214
    %v1218 = vmul.f32 %v229, %v1216
    %v1220 = vperm.slane %v1218, 0
    %v1221 = vperm.slane %v1218, 1
    %v1222 = vperm.slane %v1218, 2
    %v1223 = vperm.slane %v1218, 3
    %v1228 = vmul.f32 %v1120, %v1220
    %v1229 = vmul.f32 %v1121, %v1221
    %v1230 = vmul.f32 %v1122, %v1222
    %v1231 = vmul.f32 %v1123, %v1223
    %v1236 = vrot.slane %v1229, 7
    %v1237 = vrot.slane %v1230, 6
    %v1238 = vrot.slane %v1231, 5
    %v1239 = vsel %vm1211, %v1228, %v1236
    %v1240 = vsel %vm1213, %v1237, %v1238
    %v1241 = vsel %vm1215, %v1239, %v1240
    %v1243 = vsub.f32 %v231, %v1241
    %v1244 = vmul.f32 %v930, %v1220
    %v1245 = vmul.f32 %v982, %v1221
    %v1246 = vmul.f32 %v1034, %v1222
    %v1247 = vmul.f32 %v1086, %v1223
    %v1249 = vperm.slane %v1243, 0
    %v1250 = vperm.slane %v1243, 1
    %v1251 = vperm.slane %v1243, 2
    %v1252 = vperm.slane %v1243, 3
    %v1257 = vadd.f32 %v1244, %v1249
    %v1258 = vadd.f32 %v1245, %v1250
    %v1259 = vadd.f32 %v1246, %v1251
    %v1260 = vadd.f32 %v1247, %v1252
    %v1261 = vmax.f32 %v1257, 0.0
    %v1262 = vmax.f32 %v1258, 0.0
    %v1263 = vmax.f32 %v1259, 0.0
    %v1264 = vmax.f32 %v1260, 0.0
    %v1265 = vpack.c.bf16 %v1261, %v1261
    %v1266 = vpack.c.bf16 %v1262, %v1262
    %v1267 = vpack.c.bf16 %v1263, %v1263
    %v1268 = vpack.c.bf16 %v1264, %v1264
    %s1269 = scalar_lea.hbm %s1, 2048
    // Predicated region
    $region34: #{domain_classifier_forward.1} parent=1 // pred_check
      _
    $region35: #{domain_classifier_forward.1} parent=1 // pred_check_branch
      %1271 = sbr.rel target = $region37
    $region36: #{domain_classifier_forward.1} parent=1 // pred_region
      %1272 = sst [smem:[#allocation11]] [#allocation16]
      %1273 = sst [smem:[#allocation12]] [#allocation15]
    $region37: #{domain_classifier_forward.1} parent=1 // pred_fallthru
      _
    %1275 = shalt.err (0)
    %s1277 = sshll.u32 %s1269, 4
    %s1278 = int_to_ptr.hbm [resolvable:$true] %s1277
    %s1279 = sshll.u32 [#allocation2], 4
    %s1280 = int_to_ptr.vmem [resolvable:$true] %s1279
    %1282 = dma.hbm_to_vmem [thread:$0]  %s1278, 16384, %s1280, [#allocation3]
    %s1283 = sshll.u32 %s96, 4
    %1284 = dma.done %s81, %s1283
    %v1285 = vld [vmem:[%s80] sm:$0xff]
    %v1286 = vld [vmem:[%s80 + $0x8] sm:$0xff]
    %v1287 = vld [vmem:[%s80 + $0x10] sm:$0xff]
    %v1288 = vld [vmem:[%s80 + $0x18] sm:$0xff]
    %v1289 = vld [vmem:[%s80 + $0x20] sm:$0xff]
    %v1290 = vld [vmem:[%s80 + $0x28] sm:$0xff]
    %v1291 = vld [vmem:[%s80 + $0x30] sm:$0xff]
    %v1292 = vld [vmem:[%s80 + $0x38] sm:$0xff]
    %v1293 = vld [vmem:[%s80 + $0x40] sm:$0xff]
    %v1294 = vld [vmem:[%s80 + $0x48] sm:$0xff]
    %v1295 = vld [vmem:[%s80 + $0x50] sm:$0xff]
    %v1296 = vld [vmem:[%s80 + $0x58] sm:$0xff]
    %v1297 = vld [vmem:[%s80 + $0x60] sm:$0xff]
    %v1298 = vld [vmem:[%s80 + $0x68] sm:$0xff]
    %v1299 = vld [vmem:[%s80 + $0x70] sm:$0xff]
    %v1300 = vld [vmem:[%s80 + $0x78] sm:$0xff]
    %v1301 = vld [vmem:[%s80 + $0x80] sm:$0xff]
    %v1302 = vld [vmem:[%s80 + $0x88] sm:$0xff]
    %v1303 = vld [vmem:[%s80 + $0x90] sm:$0xff]
    %v1304 = vld [vmem:[%s80 + $0x98] sm:$0xff]
    %v1305 = vld [vmem:[%s80 + $0xa0] sm:$0xff]
    %v1306 = vld [vmem:[%s80 + $0xa8] sm:$0xff]
    %v1307 = vld [vmem:[%s80 + $0xb0] sm:$0xff]
    %v1308 = vld [vmem:[%s80 + $0xb8] sm:$0xff]
    %v1309 = vld [vmem:[%s80 + $0xc0] sm:$0xff]
    %v1310 = vld [vmem:[%s80 + $0xc8] sm:$0xff]
    %v1311 = vld [vmem:[%s80 + $0xd0] sm:$0xff]
    %v1312 = vld [vmem:[%s80 + $0xd8] sm:$0xff]
    %v1313 = vld [vmem:[%s80 + $0xe0] sm:$0xff]
    %v1314 = vld [vmem:[%s80 + $0xe8] sm:$0xff]
    %v1315 = vld [vmem:[%s80 + $0xf0] sm:$0xff]
    %v1316 = vld [vmem:[%s80 + $0xf8] sm:$0xff]
    %v1317 = vld [vmem:[%s80 + $0x100] sm:$0xff]
    %v1318 = vld [vmem:[%s80 + $0x108] sm:$0xff]
    %v1319 = vld [vmem:[%s80 + $0x110] sm:$0xff]
    %v1320 = vld [vmem:[%s80 + $0x118] sm:$0xff]
    %v1321 = vld [vmem:[%s80 + $0x120] sm:$0xff]
    %v1322 = vld [vmem:[%s80 + $0x128] sm:$0xff]
    %v1323 = vld [vmem:[%s80 + $0x130] sm:$0xff]
    %v1324 = vld [vmem:[%s80 + $0x138] sm:$0xff]
    %v1325 = vld [vmem:[%s80 + $0x140] sm:$0xff]
    %v1326 = vld [vmem:[%s80 + $0x148] sm:$0xff]
    %v1327 = vld [vmem:[%s80 + $0x150] sm:$0xff]
    %v1328 = vld [vmem:[%s80 + $0x158] sm:$0xff]
    %v1329 = vld [vmem:[%s80 + $0x160] sm:$0xff]
    %v1330 = vld [vmem:[%s80 + $0x168] sm:$0xff]
    %v1331 = vld [vmem:[%s80 + $0x170] sm:$0xff]
    %v1332 = vld [vmem:[%s80 + $0x178] sm:$0xff]
    %v1333 = vld [vmem:[%s80 + $0x180] sm:$0xff]
    %v1334 = vld [vmem:[%s80 + $0x188] sm:$0xff]
    %v1335 = vld [vmem:[%s80 + $0x190] sm:$0xff]
    %v1336 = vld [vmem:[%s80 + $0x198] sm:$0xff]
    %v1337 = vld [vmem:[%s80 + $0x1a0] sm:$0xff]
    %v1338 = vld [vmem:[%s80 + $0x1a8] sm:$0xff]
    %v1339 = vld [vmem:[%s80 + $0x1b0] sm:$0xff]
    %v1340 = vld [vmem:[%s80 + $0x1b8] sm:$0xff]
    %v1341 = vld [vmem:[%s80 + $0x1c0] sm:$0xff]
    %v1342 = vld [vmem:[%s80 + $0x1c8] sm:$0xff]
    %v1343 = vld [vmem:[%s80 + $0x1d0] sm:$0xff]
    %v1344 = vld [vmem:[%s80 + $0x1d8] sm:$0xff]
    %v1345 = vld [vmem:[%s80 + $0x1e0] sm:$0xff]
    %v1346 = vld [vmem:[%s80 + $0x1e8] sm:$0xff]
    %v1347 = vld [vmem:[%s80 + $0x1f0] sm:$0xff]
    %v1348 = vld [vmem:[%s80 + $0x1f8] sm:$0xff]
    %v1349 = vld [vmem:[%s80 + $0x200] sm:$0xff]
    %v1350 = vld [vmem:[%s80 + $0x208] sm:$0xff]
    %v1351 = vld [vmem:[%s80 + $0x210] sm:$0xff]
    %v1352 = vld [vmem:[%s80 + $0x218] sm:$0xff]
    %v1353 = vld [vmem:[%s80 + $0x220] sm:$0xff]
    %v1354 = vld [vmem:[%s80 + $0x228] sm:$0xff]
    %v1355 = vld [vmem:[%s80 + $0x230] sm:$0xff]
    %v1356 = vld [vmem:[%s80 + $0x238] sm:$0xff]
    %v1357 = vld [vmem:[%s80 + $0x240] sm:$0xff]
    %v1358 = vld [vmem:[%s80 + $0x248] sm:$0xff]
    %v1359 = vld [vmem:[%s80 + $0x250] sm:$0xff]
    %v1360 = vld [vmem:[%s80 + $0x258] sm:$0xff]
    %v1361 = vld [vmem:[%s80 + $0x260] sm:$0xff]
    %v1362 = vld [vmem:[%s80 + $0x268] sm:$0xff]
    %v1363 = vld [vmem:[%s80 + $0x270] sm:$0xff]
    %v1364 = vld [vmem:[%s80 + $0x278] sm:$0xff]
    %v1365 = vld [vmem:[%s80 + $0x280] sm:$0xff]
    %v1366 = vld [vmem:[%s80 + $0x288] sm:$0xff]
    %v1367 = vld [vmem:[%s80 + $0x290] sm:$0xff]
    %v1368 = vld [vmem:[%s80 + $0x298] sm:$0xff]
    %v1369 = vld [vmem:[%s80 + $0x2a0] sm:$0xff]
    %v1370 = vld [vmem:[%s80 + $0x2a8] sm:$0xff]
    %v1371 = vld [vmem:[%s80 + $0x2b0] sm:$0xff]
    %v1372 = vld [vmem:[%s80 + $0x2b8] sm:$0xff]
    %v1373 = vld [vmem:[%s80 + $0x2c0] sm:$0xff]
    %v1374 = vld [vmem:[%s80 + $0x2c8] sm:$0xff]
    %v1375 = vld [vmem:[%s80 + $0x2d0] sm:$0xff]
    %v1376 = vld [vmem:[%s80 + $0x2d8] sm:$0xff]
    %v1377 = vld [vmem:[%s80 + $0x2e0] sm:$0xff]
    %v1378 = vld [vmem:[%s80 + $0x2e8] sm:$0xff]
    %v1379 = vld [vmem:[%s80 + $0x2f0] sm:$0xff]
    %v1380 = vld [vmem:[%s80 + $0x2f8] sm:$0xff]
    %v1381 = vld [vmem:[%s80 + $0x300] sm:$0xff]
    %v1382 = vld [vmem:[%s80 + $0x308] sm:$0xff]
    %v1383 = vld [vmem:[%s80 + $0x310] sm:$0xff]
    %v1384 = vld [vmem:[%s80 + $0x318] sm:$0xff]
    %v1385 = vld [vmem:[%s80 + $0x320] sm:$0xff]
    %v1386 = vld [vmem:[%s80 + $0x328] sm:$0xff]
    %v1387 = vld [vmem:[%s80 + $0x330] sm:$0xff]
    %v1388 = vld [vmem:[%s80 + $0x338] sm:$0xff]
    %v1389 = vld [vmem:[%s80 + $0x340] sm:$0xff]
    %v1390 = vld [vmem:[%s80 + $0x348] sm:$0xff]
    %v1391 = vld [vmem:[%s80 + $0x350] sm:$0xff]
    %v1392 = vld [vmem:[%s80 + $0x358] sm:$0xff]
    %v1393 = vld [vmem:[%s80 + $0x360] sm:$0xff]
    %v1394 = vld [vmem:[%s80 + $0x368] sm:$0xff]
    %v1395 = vld [vmem:[%s80 + $0x370] sm:$0xff]
    %v1396 = vld [vmem:[%s80 + $0x378] sm:$0xff]
    %v1397 = vld [vmem:[%s80 + $0x380] sm:$0xff]
    %v1398 = vld [vmem:[%s80 + $0x388] sm:$0xff]
    %v1399 = vld [vmem:[%s80 + $0x390] sm:$0xff]
    %v1400 = vld [vmem:[%s80 + $0x398] sm:$0xff]
    %v1401 = vld [vmem:[%s80 + $0x3a0] sm:$0xff]
    %v1402 = vld [vmem:[%s80 + $0x3a8] sm:$0xff]
    %v1403 = vld [vmem:[%s80 + $0x3b0] sm:$0xff]
    %v1404 = vld [vmem:[%s80 + $0x3b8] sm:$0xff]
    %v1405 = vld [vmem:[%s80 + $0x3c0] sm:$0xff]
    %v1406 = vld [vmem:[%s80 + $0x3c8] sm:$0xff]
    %v1407 = vld [vmem:[%s80 + $0x3d0] sm:$0xff]
    %v1408 = vld [vmem:[%s80 + $0x3d8] sm:$0xff]
    %v1409 = vld [vmem:[%s80 + $0x3e0] sm:$0xff]
    %v1410 = vld [vmem:[%s80 + $0x3e8] sm:$0xff]
    %v1411 = vld [vmem:[%s80 + $0x3f0] sm:$0xff]
    %v1412 = vld [vmem:[%s80 + $0x3f8] sm:$0xff]
    %s1413 = scalar_lea.vmem [#allocation6], 1
    %v1414 = vld [vmem:[%s1413] ss:$8 sm:$0xf]
    %s1415 = scalar_lea.vmem [#allocation6], 5
    %v1416 = vld [vmem:[%s1415] ss:$8 sm:$0xf]
    %s1417 = scalar_lea.vmem [#allocation6], 33
    %v1418 = vld [vmem:[%s1417] ss:$8 sm:$0xf]
    %v1420 = vperm.slane %v1414, 0
    %v1421 = vperm.slane %v1414, 1
    %v1422 = vperm.slane %v1414, 2
    %v1423 = vperm.slane %v1414, 3
    %v1556 = vunpack.c.l.b16 %v1285
    %v1557 = vunpack.c.h.b16 %v1285
    %v1558 = vunpack.c.l.b16 %v1286
    %v1559 = vunpack.c.h.b16 %v1286
    %v1560 = vunpack.c.l.b16 %v1287
    %v1561 = vunpack.c.h.b16 %v1287
    %v1562 = vunpack.c.l.b16 %v1288
    %v1563 = vunpack.c.h.b16 %v1288
    %v1564 = vunpack.c.l.b16 %v1289
    %v1565 = vunpack.c.h.b16 %v1289
    %v1566 = vunpack.c.l.b16 %v1290
    %v1567 = vunpack.c.h.b16 %v1290
    %v1568 = vunpack.c.l.b16 %v1291
    %v1569 = vunpack.c.h.b16 %v1291
    %v1570 = vunpack.c.l.b16 %v1292
    %v1571 = vunpack.c.h.b16 %v1292
    %v1572 = vunpack.c.l.b16 %v1293
    %v1573 = vunpack.c.h.b16 %v1293
    %v1574 = vunpack.c.l.b16 %v1294
    %v1575 = vunpack.c.h.b16 %v1294
    %v1576 = vunpack.c.l.b16 %v1295
    %v1577 = vunpack.c.h.b16 %v1295
    %v1578 = vunpack.c.l.b16 %v1296
    %v1579 = vunpack.c.h.b16 %v1296
    %v1580 = vunpack.c.l.b16 %v1297
    %v1581 = vunpack.c.h.b16 %v1297
    %v1582 = vunpack.c.l.b16 %v1298
    %v1583 = vunpack.c.h.b16 %v1298
    %v1584 = vunpack.c.l.b16 %v1299
    %v1585 = vunpack.c.h.b16 %v1299
    %v1586 = vunpack.c.l.b16 %v1300
    %v1587 = vunpack.c.h.b16 %v1300
    %v1588 = vunpack.c.l.b16 %v1301
    %v1589 = vunpack.c.h.b16 %v1301
    %v1590 = vunpack.c.l.b16 %v1302
    %v1591 = vunpack.c.h.b16 %v1302
    %v1592 = vunpack.c.l.b16 %v1303
    %v1593 = vunpack.c.h.b16 %v1303
    %v1594 = vunpack.c.l.b16 %v1304
    %v1595 = vunpack.c.h.b16 %v1304
    %v1596 = vunpack.c.l.b16 %v1305
    %v1597 = vunpack.c.h.b16 %v1305
    %v1598 = vunpack.c.l.b16 %v1306
    %v1599 = vunpack.c.h.b16 %v1306
    %v1600 = vunpack.c.l.b16 %v1307
    %v1601 = vunpack.c.h.b16 %v1307
    %v1602 = vunpack.c.l.b16 %v1308
    %v1603 = vunpack.c.h.b16 %v1308
    %v1604 = vunpack.c.l.b16 %v1309
    %v1605 = vunpack.c.h.b16 %v1309
    %v1606 = vunpack.c.l.b16 %v1310
    %v1607 = vunpack.c.h.b16 %v1310
    %v1608 = vunpack.c.l.b16 %v1311
    %v1609 = vunpack.c.h.b16 %v1311
    %v1610 = vunpack.c.l.b16 %v1312
    %v1611 = vunpack.c.h.b16 %v1312
    %v1612 = vunpack.c.l.b16 %v1313
    %v1613 = vunpack.c.h.b16 %v1313
    %v1614 = vunpack.c.l.b16 %v1314
    %v1615 = vunpack.c.h.b16 %v1314
    %v1616 = vunpack.c.l.b16 %v1315
    %v1617 = vunpack.c.h.b16 %v1315
    %v1618 = vunpack.c.l.b16 %v1316
    %v1619 = vunpack.c.h.b16 %v1316
    %v1620 = vunpack.c.l.b16 %v1317
    %v1621 = vunpack.c.h.b16 %v1317
    %v1622 = vunpack.c.l.b16 %v1318
    %v1623 = vunpack.c.h.b16 %v1318
    %v1624 = vunpack.c.l.b16 %v1319
    %v1625 = vunpack.c.h.b16 %v1319
    %v1626 = vunpack.c.l.b16 %v1320
    %v1627 = vunpack.c.h.b16 %v1320
    %v1628 = vunpack.c.l.b16 %v1321
    %v1629 = vunpack.c.h.b16 %v1321
    %v1630 = vunpack.c.l.b16 %v1322
    %v1631 = vunpack.c.h.b16 %v1322
    %v1632 = vunpack.c.l.b16 %v1323
    %v1633 = vunpack.c.h.b16 %v1323
    %v1634 = vunpack.c.l.b16 %v1324
    %v1635 = vunpack.c.h.b16 %v1324
    %v1636 = vunpack.c.l.b16 %v1325
    %v1637 = vunpack.c.h.b16 %v1325
    %v1638 = vunpack.c.l.b16 %v1326
    %v1639 = vunpack.c.h.b16 %v1326
    %v1640 = vunpack.c.l.b16 %v1327
    %v1641 = vunpack.c.h.b16 %v1327
    %v1642 = vunpack.c.l.b16 %v1328
    %v1643 = vunpack.c.h.b16 %v1328
    %v1644 = vunpack.c.l.b16 %v1329
    %v1645 = vunpack.c.h.b16 %v1329
    %v1646 = vunpack.c.l.b16 %v1330
    %v1647 = vunpack.c.h.b16 %v1330
    %v1648 = vunpack.c.l.b16 %v1331
    %v1649 = vunpack.c.h.b16 %v1331
    %v1650 = vunpack.c.l.b16 %v1332
    %v1651 = vunpack.c.h.b16 %v1332
    %v1652 = vunpack.c.l.b16 %v1333
    %v1653 = vunpack.c.h.b16 %v1333
    %v1654 = vunpack.c.l.b16 %v1334
    %v1655 = vunpack.c.h.b16 %v1334
    %v1656 = vunpack.c.l.b16 %v1335
    %v1657 = vunpack.c.h.b16 %v1335
    %v1658 = vunpack.c.l.b16 %v1336
    %v1659 = vunpack.c.h.b16 %v1336
    %v1660 = vunpack.c.l.b16 %v1337
    %v1661 = vunpack.c.h.b16 %v1337
    %v1662 = vunpack.c.l.b16 %v1338
    %v1663 = vunpack.c.h.b16 %v1338
    %v1664 = vunpack.c.l.b16 %v1339
    %v1665 = vunpack.c.h.b16 %v1339
    %v1666 = vunpack.c.l.b16 %v1340
    %v1667 = vunpack.c.h.b16 %v1340
    %v1668 = vunpack.c.l.b16 %v1341
    %v1669 = vunpack.c.h.b16 %v1341
    %v1670 = vunpack.c.l.b16 %v1342
    %v1671 = vunpack.c.h.b16 %v1342
    %v1672 = vunpack.c.l.b16 %v1343
    %v1673 = vunpack.c.h.b16 %v1343
    %v1674 = vunpack.c.l.b16 %v1344
    %v1675 = vunpack.c.h.b16 %v1344
    %v1676 = vunpack.c.l.b16 %v1345
    %v1677 = vunpack.c.h.b16 %v1345
    %v1678 = vunpack.c.l.b16 %v1346
    %v1679 = vunpack.c.h.b16 %v1346
    %v1680 = vunpack.c.l.b16 %v1347
    %v1681 = vunpack.c.h.b16 %v1347
    %v1682 = vunpack.c.l.b16 %v1348
    %v1683 = vunpack.c.h.b16 %v1348
    %v1684 = vunpack.c.l.b16 %v1349
    %v1685 = vunpack.c.h.b16 %v1349
    %v1686 = vunpack.c.l.b16 %v1350
    %v1687 = vunpack.c.h.b16 %v1350
    %v1688 = vunpack.c.l.b16 %v1351
    %v1689 = vunpack.c.h.b16 %v1351
    %v1690 = vunpack.c.l.b16 %v1352
    %v1691 = vunpack.c.h.b16 %v1352
    %v1692 = vunpack.c.l.b16 %v1353
    %v1693 = vunpack.c.h.b16 %v1353
    %v1694 = vunpack.c.l.b16 %v1354
    %v1695 = vunpack.c.h.b16 %v1354
    %v1696 = vunpack.c.l.b16 %v1355
    %v1697 = vunpack.c.h.b16 %v1355
    %v1698 = vunpack.c.l.b16 %v1356
    %v1699 = vunpack.c.h.b16 %v1356
    %v1700 = vunpack.c.l.b16 %v1357
    %v1701 = vunpack.c.h.b16 %v1357
    %v1702 = vunpack.c.l.b16 %v1358
    %v1703 = vunpack.c.h.b16 %v1358
    %v1704 = vunpack.c.l.b16 %v1359
    %v1705 = vunpack.c.h.b16 %v1359
    %v1706 = vunpack.c.l.b16 %v1360
    %v1707 = vunpack.c.h.b16 %v1360
    %v1708 = vunpack.c.l.b16 %v1361
    %v1709 = vunpack.c.h.b16 %v1361
    %v1710 = vunpack.c.l.b16 %v1362
    %v1711 = vunpack.c.h.b16 %v1362
    %v1712 = vunpack.c.l.b16 %v1363
    %v1713 = vunpack.c.h.b16 %v1363
    %v1714 = vunpack.c.l.b16 %v1364
    %v1715 = vunpack.c.h.b16 %v1364
    %v1716 = vunpack.c.l.b16 %v1365
    %v1717 = vunpack.c.h.b16 %v1365
    %v1718 = vunpack.c.l.b16 %v1366
    %v1719 = vunpack.c.h.b16 %v1366
    %v1720 = vunpack.c.l.b16 %v1367
    %v1721 = vunpack.c.h.b16 %v1367
    %v1722 = vunpack.c.l.b16 %v1368
    %v1723 = vunpack.c.h.b16 %v1368
    %v1724 = vunpack.c.l.b16 %v1369
    %v1725 = vunpack.c.h.b16 %v1369
    %v1726 = vunpack.c.l.b16 %v1370
    %v1727 = vunpack.c.h.b16 %v1370
    %v1728 = vunpack.c.l.b16 %v1371
    %v1729 = vunpack.c.h.b16 %v1371
    %v1730 = vunpack.c.l.b16 %v1372
    %v1731 = vunpack.c.h.b16 %v1372
    %v1732 = vunpack.c.l.b16 %v1373
    %v1733 = vunpack.c.h.b16 %v1373
    %v1734 = vunpack.c.l.b16 %v1374
    %v1735 = vunpack.c.h.b16 %v1374
    %v1736 = vunpack.c.l.b16 %v1375
    %v1737 = vunpack.c.h.b16 %v1375
    %v1738 = vunpack.c.l.b16 %v1376
    %v1739 = vunpack.c.h.b16 %v1376
    %v1740 = vunpack.c.l.b16 %v1377
    %v1741 = vunpack.c.h.b16 %v1377
    %v1742 = vunpack.c.l.b16 %v1378
    %v1743 = vunpack.c.h.b16 %v1378
    %v1744 = vunpack.c.l.b16 %v1379
    %v1745 = vunpack.c.h.b16 %v1379
    %v1746 = vunpack.c.l.b16 %v1380
    %v1747 = vunpack.c.h.b16 %v1380
    %v1748 = vunpack.c.l.b16 %v1381
    %v1749 = vunpack.c.h.b16 %v1381
    %v1750 = vunpack.c.l.b16 %v1382
    %v1751 = vunpack.c.h.b16 %v1382
    %v1752 = vunpack.c.l.b16 %v1383
    %v1753 = vunpack.c.h.b16 %v1383
    %v1754 = vunpack.c.l.b16 %v1384
    %v1755 = vunpack.c.h.b16 %v1384
    %v1756 = vunpack.c.l.b16 %v1385
    %v1757 = vunpack.c.h.b16 %v1385
    %v1758 = vunpack.c.l.b16 %v1386
    %v1759 = vunpack.c.h.b16 %v1386
    %v1760 = vunpack.c.l.b16 %v1387
    %v1761 = vunpack.c.h.b16 %v1387
    %v1762 = vunpack.c.l.b16 %v1388
    %v1763 = vunpack.c.h.b16 %v1388
    %v1764 = vunpack.c.l.b16 %v1389
    %v1765 = vunpack.c.h.b16 %v1389
    %v1766 = vunpack.c.l.b16 %v1390
    %v1767 = vunpack.c.h.b16 %v1390
    %v1768 = vunpack.c.l.b16 %v1391
    %v1769 = vunpack.c.h.b16 %v1391
    %v1770 = vunpack.c.l.b16 %v1392
    %v1771 = vunpack.c.h.b16 %v1392
    %v1772 = vunpack.c.l.b16 %v1393
    %v1773 = vunpack.c.h.b16 %v1393
    %v1774 = vunpack.c.l.b16 %v1394
    %v1775 = vunpack.c.h.b16 %v1394
    %v1776 = vunpack.c.l.b16 %v1395
    %v1777 = vunpack.c.h.b16 %v1395
    %v1778 = vunpack.c.l.b16 %v1396
    %v1779 = vunpack.c.h.b16 %v1396
    %v1780 = vunpack.c.l.b16 %v1397
    %v1781 = vunpack.c.h.b16 %v1397
    %v1782 = vunpack.c.l.b16 %v1398
    %v1783 = vunpack.c.h.b16 %v1398
    %v1784 = vunpack.c.l.b16 %v1399
    %v1785 = vunpack.c.h.b16 %v1399
    %v1786 = vunpack.c.l.b16 %v1400
    %v1787 = vunpack.c.h.b16 %v1400
    %v1788 = vunpack.c.l.b16 %v1401
    %v1789 = vunpack.c.h.b16 %v1401
    %v1790 = vunpack.c.l.b16 %v1402
    %v1791 = vunpack.c.h.b16 %v1402
    %v1792 = vunpack.c.l.b16 %v1403
    %v1793 = vunpack.c.h.b16 %v1403
    %v1794 = vunpack.c.l.b16 %v1404
    %v1795 = vunpack.c.h.b16 %v1404
    %v1796 = vunpack.c.l.b16 %v1405
    %v1797 = vunpack.c.h.b16 %v1405
    %v1798 = vunpack.c.l.b16 %v1406
    %v1799 = vunpack.c.h.b16 %v1406
    %v1800 = vunpack.c.l.b16 %v1407
    %v1801 = vunpack.c.h.b16 %v1407
    %v1802 = vunpack.c.l.b16 %v1408
    %v1803 = vunpack.c.h.b16 %v1408
    %v1804 = vunpack.c.l.b16 %v1409
    %v1805 = vunpack.c.h.b16 %v1409
    %v1806 = vunpack.c.l.b16 %v1410
    %v1807 = vunpack.c.h.b16 %v1410
    %v1808 = vunpack.c.l.b16 %v1411
    %v1809 = vunpack.c.h.b16 %v1411
    %v1810 = vunpack.c.l.b16 %v1412
    %v1811 = vunpack.c.h.b16 %v1412
    %v1812 = vpack.c.b16 %v1560, %v1556
    %v1813 = vpack.c.b16 %v1561, %v1557
    %v1814 = vpack.c.b16 %v1562, %v1558
    %v1815 = vpack.c.b16 %v1563, %v1559
    %v1816 = vpack.c.b16 %v1568, %v1564
    %v1817 = vpack.c.b16 %v1569, %v1565
    %v1818 = vpack.c.b16 %v1570, %v1566
    %v1819 = vpack.c.b16 %v1571, %v1567
    %v1820 = vpack.c.b16 %v1576, %v1572
    %v1821 = vpack.c.b16 %v1577, %v1573
    %v1822 = vpack.c.b16 %v1578, %v1574
    %v1823 = vpack.c.b16 %v1579, %v1575
    %v1824 = vpack.c.b16 %v1584, %v1580
    %v1825 = vpack.c.b16 %v1585, %v1581
    %v1826 = vpack.c.b16 %v1586, %v1582
    %v1827 = vpack.c.b16 %v1587, %v1583
    %v1828 = vpack.c.b16 %v1592, %v1588
    %v1829 = vpack.c.b16 %v1593, %v1589
    %v1830 = vpack.c.b16 %v1594, %v1590
    %v1831 = vpack.c.b16 %v1595, %v1591
    %v1832 = vpack.c.b16 %v1600, %v1596
    %v1833 = vpack.c.b16 %v1601, %v1597
    %v1834 = vpack.c.b16 %v1602, %v1598
    %v1835 = vpack.c.b16 %v1603, %v1599
    %v1836 = vpack.c.b16 %v1608, %v1604
    %v1837 = vpack.c.b16 %v1609, %v1605
    %v1838 = vpack.c.b16 %v1610, %v1606
    %v1839 = vpack.c.b16 %v1611, %v1607
    %v1840 = vpack.c.b16 %v1616, %v1612
    %v1841 = vpack.c.b16 %v1617, %v1613
    %v1842 = vpack.c.b16 %v1618, %v1614
    %v1843 = vpack.c.b16 %v1619, %v1615
    %v1844 = vpack.c.b16 %v1624, %v1620
    %v1845 = vpack.c.b16 %v1625, %v1621
    %v1846 = vpack.c.b16 %v1626, %v1622
    %v1847 = vpack.c.b16 %v1627, %v1623
    %v1848 = vpack.c.b16 %v1632, %v1628
    %v1849 = vpack.c.b16 %v1633, %v1629
    %v1850 = vpack.c.b16 %v1634, %v1630
    %v1851 = vpack.c.b16 %v1635, %v1631
    %v1852 = vpack.c.b16 %v1640, %v1636
    %v1853 = vpack.c.b16 %v1641, %v1637
    %v1854 = vpack.c.b16 %v1642, %v1638
    %v1855 = vpack.c.b16 %v1643, %v1639
    %v1856 = vpack.c.b16 %v1648, %v1644
    %v1857 = vpack.c.b16 %v1649, %v1645
    %v1858 = vpack.c.b16 %v1650, %v1646
    %v1859 = vpack.c.b16 %v1651, %v1647
    %v1860 = vpack.c.b16 %v1656, %v1652
    %v1861 = vpack.c.b16 %v1657, %v1653
    %v1862 = vpack.c.b16 %v1658, %v1654
    %v1863 = vpack.c.b16 %v1659, %v1655
    %v1864 = vpack.c.b16 %v1664, %v1660
    %v1865 = vpack.c.b16 %v1665, %v1661
    %v1866 = vpack.c.b16 %v1666, %v1662
    %v1867 = vpack.c.b16 %v1667, %v1663
    %v1868 = vpack.c.b16 %v1672, %v1668
    %v1869 = vpack.c.b16 %v1673, %v1669
    %v1870 = vpack.c.b16 %v1674, %v1670
    %v1871 = vpack.c.b16 %v1675, %v1671
    %v1872 = vpack.c.b16 %v1680, %v1676
    %v1873 = vpack.c.b16 %v1681, %v1677
    %v1874 = vpack.c.b16 %v1682, %v1678
    %v1875 = vpack.c.b16 %v1683, %v1679
    %v1876 = vpack.c.b16 %v1688, %v1684
    %v1877 = vpack.c.b16 %v1689, %v1685
    %v1878 = vpack.c.b16 %v1690, %v1686
    %v1879 = vpack.c.b16 %v1691, %v1687
    %v1880 = vpack.c.b16 %v1696, %v1692
    %v1881 = vpack.c.b16 %v1697, %v1693
    %v1882 = vpack.c.b16 %v1698, %v1694
    %v1883 = vpack.c.b16 %v1699, %v1695
    %v1884 = vpack.c.b16 %v1704, %v1700
    %v1885 = vpack.c.b16 %v1705, %v1701
    %v1886 = vpack.c.b16 %v1706, %v1702
    %v1887 = vpack.c.b16 %v1707, %v1703
    %v1888 = vpack.c.b16 %v1712, %v1708
    %v1889 = vpack.c.b16 %v1713, %v1709
    %v1890 = vpack.c.b16 %v1714, %v1710
    %v1891 = vpack.c.b16 %v1715, %v1711
    %v1892 = vpack.c.b16 %v1720, %v1716
    %v1893 = vpack.c.b16 %v1721, %v1717
    %v1894 = vpack.c.b16 %v1722, %v1718
    %v1895 = vpack.c.b16 %v1723, %v1719
    %v1896 = vpack.c.b16 %v1728, %v1724
    %v1897 = vpack.c.b16 %v1729, %v1725
    %v1898 = vpack.c.b16 %v1730, %v1726
    %v1899 = vpack.c.b16 %v1731, %v1727
    %v1900 = vpack.c.b16 %v1736, %v1732
    %v1901 = vpack.c.b16 %v1737, %v1733
    %v1902 = vpack.c.b16 %v1738, %v1734
    %v1903 = vpack.c.b16 %v1739, %v1735
    %v1904 = vpack.c.b16 %v1744, %v1740
    %v1905 = vpack.c.b16 %v1745, %v1741
    %v1906 = vpack.c.b16 %v1746, %v1742
    %v1907 = vpack.c.b16 %v1747, %v1743
    %v1908 = vpack.c.b16 %v1752, %v1748
    %v1909 = vpack.c.b16 %v1753, %v1749
    %v1910 = vpack.c.b16 %v1754, %v1750
    %v1911 = vpack.c.b16 %v1755, %v1751
    %v1912 = vpack.c.b16 %v1760, %v1756
    %v1913 = vpack.c.b16 %v1761, %v1757
    %v1914 = vpack.c.b16 %v1762, %v1758
    %v1915 = vpack.c.b16 %v1763, %v1759
    %v1916 = vpack.c.b16 %v1768, %v1764
    %v1917 = vpack.c.b16 %v1769, %v1765
    %v1918 = vpack.c.b16 %v1770, %v1766
    %v1919 = vpack.c.b16 %v1771, %v1767
    %v1920 = vpack.c.b16 %v1776, %v1772
    %v1921 = vpack.c.b16 %v1777, %v1773
    %v1922 = vpack.c.b16 %v1778, %v1774
    %v1923 = vpack.c.b16 %v1779, %v1775
    %v1924 = vpack.c.b16 %v1784, %v1780
    %v1925 = vpack.c.b16 %v1785, %v1781
    %v1926 = vpack.c.b16 %v1786, %v1782
    %v1927 = vpack.c.b16 %v1787, %v1783
    %v1928 = vpack.c.b16 %v1792, %v1788
    %v1929 = vpack.c.b16 %v1793, %v1789
    %v1930 = vpack.c.b16 %v1794, %v1790
    %v1931 = vpack.c.b16 %v1795, %v1791
    %v1932 = vpack.c.b16 %v1800, %v1796
    %v1933 = vpack.c.b16 %v1801, %v1797
    %v1934 = vpack.c.b16 %v1802, %v1798
    %v1935 = vpack.c.b16 %v1803, %v1799
    %v1936 = vpack.c.b16 %v1808, %v1804
    %v1937 = vpack.c.b16 %v1809, %v1805
    %v1938 = vpack.c.b16 %v1810, %v1806
    %v1939 = vpack.c.b16 %v1811, %v1807
    %2068 = vmatpush.bf16.msra.mxu0 %v1840
    %2069 = vmatpush.bf16.msra.mxu0 %v1836
    %2070 = vmatpush.bf16.msra.mxu0 %v1832
    %2071 = vmatpush.bf16.msra.mxu0 %v1828
    %2072 = vmatpush.bf16.msra.mxu0 %v1824
    %2073 = vmatpush.bf16.msra.mxu0 %v1820
    %2074 = vmatpush.bf16.msra.mxu0 %v1816
    %2075 = vmatpush.bf16.msra.mxu0 %v1812
    %2076 = vmatmul.bf16.gmra.mxu0 %v1265
    %v2077 = vpop.f32.mrf.mxu0
    %v2078 = vadd.f32 %v1420, %v2077
    %v2079 = vpop.f32.mrf.mxu0
    %2080 = vdwg.mxu0
    %2081 = vmatpush.bf16.msra.mxu0 %v1872
    %2082 = vmatpush.bf16.msra.mxu0 %v1868
    %2083 = vmatpush.bf16.msra.mxu0 %v1864
    %2084 = vmatpush.bf16.msra.mxu0 %v1860
    %2085 = vmatpush.bf16.msra.mxu0 %v1856
    %2086 = vmatpush.bf16.msra.mxu0 %v1852
    %2087 = vmatpush.bf16.msra.mxu0 %v1848
    %2088 = vmatpush.bf16.msra.mxu0 %v1844
    %2089 = vmatmul.bf16.gmra.mxu0 %v1266
    %v2090 = vpop.f32.mrf.mxu0
    %v2091 = vadd.f32 %v2078, %v2090
    %v2092 = vpop.f32.mrf.mxu0
    %2093 = vdwg.mxu0
    %2094 = vmatpush.bf16.msra.mxu0 %v1904
    %2095 = vmatpush.bf16.msra.mxu0 %v1900
    %2096 = vmatpush.bf16.msra.mxu0 %v1896
    %2097 = vmatpush.bf16.msra.mxu0 %v1892
    %2098 = vmatpush.bf16.msra.mxu0 %v1888
    %2099 = vmatpush.bf16.msra.mxu0 %v1884
    %2100 = vmatpush.bf16.msra.mxu0 %v1880
    %2101 = vmatpush.bf16.msra.mxu0 %v1876
    %2102 = vmatmul.bf16.gmra.mxu0 %v1267
    %v2103 = vpop.f32.mrf.mxu0
    %v2104 = vadd.f32 %v2091, %v2103
    %v2105 = vpop.f32.mrf.mxu0
    %2106 = vdwg.mxu0
    %2107 = vmatpush.bf16.msra.mxu0 %v1936
    %2108 = vmatpush.bf16.msra.mxu0 %v1932
    %2109 = vmatpush.bf16.msra.mxu0 %v1928
    %2110 = vmatpush.bf16.msra.mxu0 %v1924
    %2111 = vmatpush.bf16.msra.mxu0 %v1920
    %2112 = vmatpush.bf16.msra.mxu0 %v1916
    %2113 = vmatpush.bf16.msra.mxu0 %v1912
    %2114 = vmatpush.bf16.msra.mxu0 %v1908
    %2115 = vmatmul.bf16.gmra.mxu0 %v1268
    %v2116 = vpop.f32.mrf.mxu0
    %v2117 = vadd.f32 %v2104, %v2116
    %v2118 = vpop.f32.mrf.mxu0
    %2119 = vdwg.mxu0
    %2120 = vmatpush.bf16.msra.mxu0 %v1841
    %2121 = vmatpush.bf16.msra.mxu0 %v1837
    %2122 = vmatpush.bf16.msra.mxu0 %v1833
    %2123 = vmatpush.bf16.msra.mxu0 %v1829
    %2124 = vmatpush.bf16.msra.mxu0 %v1825
    %2125 = vmatpush.bf16.msra.mxu0 %v1821
    %2126 = vmatpush.bf16.msra.mxu0 %v1817
    %2127 = vmatpush.bf16.msra.mxu0 %v1813
    %2128 = vmatmul.bf16.gmra.mxu0 %v1265
    %v2129 = vpop.f32.mrf.mxu0
    %v2130 = vadd.f32 %v1421, %v2129
    %v2131 = vpop.f32.mrf.mxu0
    %2132 = vdwg.mxu0
    %2133 = vmatpush.bf16.msra.mxu0 %v1873
    %2134 = vmatpush.bf16.msra.mxu0 %v1869
    %2135 = vmatpush.bf16.msra.mxu0 %v1865
    %2136 = vmatpush.bf16.msra.mxu0 %v1861
    %2137 = vmatpush.bf16.msra.mxu0 %v1857
    %2138 = vmatpush.bf16.msra.mxu0 %v1853
    %2139 = vmatpush.bf16.msra.mxu0 %v1849
    %2140 = vmatpush.bf16.msra.mxu0 %v1845
    %2141 = vmatmul.bf16.gmra.mxu0 %v1266
    %v2142 = vpop.f32.mrf.mxu0
    %v2143 = vadd.f32 %v2130, %v2142
    %v2144 = vpop.f32.mrf.mxu0
    %2145 = vdwg.mxu0
    %2146 = vmatpush.bf16.msra.mxu0 %v1905
    %2147 = vmatpush.bf16.msra.mxu0 %v1901
    %2148 = vmatpush.bf16.msra.mxu0 %v1897
    %2149 = vmatpush.bf16.msra.mxu0 %v1893
    %2150 = vmatpush.bf16.msra.mxu0 %v1889
    %2151 = vmatpush.bf16.msra.mxu0 %v1885
    %2152 = vmatpush.bf16.msra.mxu0 %v1881
    %2153 = vmatpush.bf16.msra.mxu0 %v1877
    %2154 = vmatmul.bf16.gmra.mxu0 %v1267
    %v2155 = vpop.f32.mrf.mxu0
    %v2156 = vadd.f32 %v2143, %v2155
    %v2157 = vpop.f32.mrf.mxu0
    %2158 = vdwg.mxu0
    %2159 = vmatpush.bf16.msra.mxu0 %v1937
    %2160 = vmatpush.bf16.msra.mxu0 %v1933
    %2161 = vmatpush.bf16.msra.mxu0 %v1929
    %2162 = vmatpush.bf16.msra.mxu0 %v1925
    %2163 = vmatpush.bf16.msra.mxu0 %v1921
    %2164 = vmatpush.bf16.msra.mxu0 %v1917
    %2165 = vmatpush.bf16.msra.mxu0 %v1913
    %2166 = vmatpush.bf16.msra.mxu0 %v1909
    %2167 = vmatmul.bf16.gmra.mxu0 %v1268
    %v2168 = vpop.f32.mrf.mxu0
    %v2169 = vadd.f32 %v2156, %v2168
    %v2170 = vpop.f32.mrf.mxu0
    %2171 = vdwg.mxu0
    %2172 = vmatpush.bf16.msra.mxu0 %v1842
    %2173 = vmatpush.bf16.msra.mxu0 %v1838
    %2174 = vmatpush.bf16.msra.mxu0 %v1834
    %2175 = vmatpush.bf16.msra.mxu0 %v1830
    %2176 = vmatpush.bf16.msra.mxu0 %v1826
    %2177 = vmatpush.bf16.msra.mxu0 %v1822
    %2178 = vmatpush.bf16.msra.mxu0 %v1818
    %2179 = vmatpush.bf16.msra.mxu0 %v1814
    %2180 = vmatmul.bf16.gmra.mxu0 %v1265
    %v2181 = vpop.f32.mrf.mxu0
    %v2182 = vadd.f32 %v1422, %v2181
    %v2183 = vpop.f32.mrf.mxu0
    %2184 = vdwg.mxu0
    %2185 = vmatpush.bf16.msra.mxu0 %v1874
    %2186 = vmatpush.bf16.msra.mxu0 %v1870
    %2187 = vmatpush.bf16.msra.mxu0 %v1866
    %2188 = vmatpush.bf16.msra.mxu0 %v1862
    %2189 = vmatpush.bf16.msra.mxu0 %v1858
    %2190 = vmatpush.bf16.msra.mxu0 %v1854
    %2191 = vmatpush.bf16.msra.mxu0 %v1850
    %2192 = vmatpush.bf16.msra.mxu0 %v1846
    %2193 = vmatmul.bf16.gmra.mxu0 %v1266
    %v2194 = vpop.f32.mrf.mxu0
    %v2195 = vadd.f32 %v2182, %v2194
    %v2196 = vpop.f32.mrf.mxu0
    %2197 = vdwg.mxu0
    %2198 = vmatpush.bf16.msra.mxu0 %v1906
    %2199 = vmatpush.bf16.msra.mxu0 %v1902
    %2200 = vmatpush.bf16.msra.mxu0 %v1898
    %2201 = vmatpush.bf16.msra.mxu0 %v1894
    %2202 = vmatpush.bf16.msra.mxu0 %v1890
    %2203 = vmatpush.bf16.msra.mxu0 %v1886
    %2204 = vmatpush.bf16.msra.mxu0 %v1882
    %2205 = vmatpush.bf16.msra.mxu0 %v1878
    %2206 = vmatmul.bf16.gmra.mxu0 %v1267
    %v2207 = vpop.f32.mrf.mxu0
    %v2208 = vadd.f32 %v2195, %v2207
    %v2209 = vpop.f32.mrf.mxu0
    %2210 = vdwg.mxu0
    %2211 = vmatpush.bf16.msra.mxu0 %v1938
    %2212 = vmatpush.bf16.msra.mxu0 %v1934
    %2213 = vmatpush.bf16.msra.mxu0 %v1930
    %2214 = vmatpush.bf16.msra.mxu0 %v1926
    %2215 = vmatpush.bf16.msra.mxu0 %v1922
    %2216 = vmatpush.bf16.msra.mxu0 %v1918
    %2217 = vmatpush.bf16.msra.mxu0 %v1914
    %2218 = vmatpush.bf16.msra.mxu0 %v1910
    %2219 = vmatmul.bf16.gmra.mxu0 %v1268
    %v2220 = vpop.f32.mrf.mxu0
    %v2221 = vadd.f32 %v2208, %v2220
    %v2222 = vpop.f32.mrf.mxu0
    %2223 = vdwg.mxu0
    %2224 = vmatpush.bf16.msra.mxu0 %v1843
    %2225 = vmatpush.bf16.msra.mxu0 %v1839
    %2226 = vmatpush.bf16.msra.mxu0 %v1835
    %2227 = vmatpush.bf16.msra.mxu0 %v1831
    %2228 = vmatpush.bf16.msra.mxu0 %v1827
    %2229 = vmatpush.bf16.msra.mxu0 %v1823
    %2230 = vmatpush.bf16.msra.mxu0 %v1819
    %2231 = vmatpush.bf16.msra.mxu0 %v1815
    %2232 = vmatmul.bf16.gmra.mxu0 %v1265
    %v2233 = vpop.f32.mrf.mxu0
    %v2234 = vadd.f32 %v1423, %v2233
    %v2235 = vpop.f32.mrf.mxu0
    %2236 = vdwg.mxu0
    %2237 = vmatpush.bf16.msra.mxu0 %v1875
    %2238 = vmatpush.bf16.msra.mxu0 %v1871
    %2239 = vmatpush.bf16.msra.mxu0 %v1867
    %2240 = vmatpush.bf16.msra.mxu0 %v1863
    %2241 = vmatpush.bf16.msra.mxu0 %v1859
    %2242 = vmatpush.bf16.msra.mxu0 %v1855
    %2243 = vmatpush.bf16.msra.mxu0 %v1851
    %2244 = vmatpush.bf16.msra.mxu0 %v1847
    %2245 = vmatmul.bf16.gmra.mxu0 %v1266
    %v2246 = vpop.f32.mrf.mxu0
    %v2247 = vadd.f32 %v2234, %v2246
    %v2248 = vpop.f32.mrf.mxu0
    %2249 = vdwg.mxu0
    %2250 = vmatpush.bf16.msra.mxu0 %v1907
    %2251 = vmatpush.bf16.msra.mxu0 %v1903
    %2252 = vmatpush.bf16.msra.mxu0 %v1899
    %2253 = vmatpush.bf16.msra.mxu0 %v1895
    %2254 = vmatpush.bf16.msra.mxu0 %v1891
    %2255 = vmatpush.bf16.msra.mxu0 %v1887
    %2256 = vmatpush.bf16.msra.mxu0 %v1883
    %2257 = vmatpush.bf16.msra.mxu0 %v1879
    %2258 = vmatmul.bf16.gmra.mxu0 %v1267
    %v2259 = vpop.f32.mrf.mxu0
    %v2260 = vadd.f32 %v2247, %v2259
    %v2261 = vpop.f32.mrf.mxu0
    %2262 = vdwg.mxu0
    %2263 = vmatpush.bf16.msra.mxu0 %v1939
    %2264 = vmatpush.bf16.msra.mxu0 %v1935
    %2265 = vmatpush.bf16.msra.mxu0 %v1931
    %2266 = vmatpush.bf16.msra.mxu0 %v1927
    %2267 = vmatpush.bf16.msra.mxu0 %v1923
    %2268 = vmatpush.bf16.msra.mxu0 %v1919
    %2269 = vmatpush.bf16.msra.mxu0 %v1915
    %2270 = vmatpush.bf16.msra.mxu0 %v1911
    %2271 = vmatmul.bf16.gmra.mxu0 %v1268
    %v2272 = vpop.f32.mrf.mxu0
    %v2273 = vadd.f32 %v2260, %v2272
    %v2274 = vpop.f32.mrf.mxu0
    %2275 = vdwg.mxu0
    %v2276 = vrot.slane %v2117, 4
    %v2277 = vadd.f32 %v2117, %v2276
    %v2278 = vrot.slane %v2277, 2
    %v2279 = vadd.f32 %v2277, %v2278
    %v2280 = vrot.slane %v2279, 1
    %v2281 = vadd.f32 %v2279, %v2280
    %v2282 = vrot.slane %v2169, 4
    %v2283 = vadd.f32 %v2169, %v2282
    %v2284 = vrot.slane %v2283, 2
    %v2285 = vadd.f32 %v2283, %v2284
    %v2286 = vrot.slane %v2285, 1
    %v2287 = vadd.f32 %v2285, %v2286
    %v2288 = vrot.slane %v2221, 4
    %v2289 = vadd.f32 %v2221, %v2288
    %v2290 = vrot.slane %v2289, 2
    %v2291 = vadd.f32 %v2289, %v2290
    %v2292 = vrot.slane %v2291, 1
    %v2293 = vadd.f32 %v2291, %v2292
    %v2294 = vrot.slane %v2273, 4
    %v2295 = vadd.f32 %v2273, %v2294
    %v2296 = vrot.slane %v2295, 2
    %v2297 = vadd.f32 %v2295, %v2296
    %v2298 = vrot.slane %v2297, 1
    %v2299 = vadd.f32 %v2297, %v2298
    %v2300 = vmul.f32 %v2281, %v1119
    %v2301 = vmul.f32 %v2287, %v1119
    %v2302 = vmul.f32 %v2293, %v1119
    %v2303 = vmul.f32 %v2299, %v1119
    %v2304 = vsub.f32 %v2117, %v2300
    %v2305 = vsub.f32 %v2169, %v2301
    %v2306 = vsub.f32 %v2221, %v2302
    %v2307 = vsub.f32 %v2273, %v2303
    %v2308 = vmul.f32 %v2304, %v2304
    %v2309 = vmul.f32 %v2305, %v2305
    %v2310 = vmul.f32 %v2306, %v2306
    %v2311 = vmul.f32 %v2307, %v2307
    %v2312 = vrot.slane %v2308, 4
    %v2313 = vadd.f32 %v2308, %v2312
    %v2314 = vrot.slane %v2313, 2
    %v2315 = vadd.f32 %v2313, %v2314
    %v2316 = vrot.slane %v2315, 1
    %v2317 = vadd.f32 %v2315, %v2316
    %v2318 = vrot.slane %v2309, 4
    %v2319 = vadd.f32 %v2309, %v2318
    %v2320 = vrot.slane %v2319, 2
    %v2321 = vadd.f32 %v2319, %v2320
    %v2322 = vrot.slane %v2321, 1
    %v2323 = vadd.f32 %v2321, %v2322
    %v2324 = vrot.slane %v2310, 4
    %v2325 = vadd.f32 %v2310, %v2324
    %v2326 = vrot.slane %v2325, 2
    %v2327 = vadd.f32 %v2325, %v2326
    %v2328 = vrot.slane %v2327, 1
    %v2329 = vadd.f32 %v2327, %v2328
    %v2330 = vrot.slane %v2311, 4
    %v2331 = vadd.f32 %v2311, %v2330
    %v2332 = vrot.slane %v2331, 2
    %v2333 = vadd.f32 %v2331, %v2332
    %v2334 = vrot.slane %v2333, 1
    %v2335 = vadd.f32 %v2333, %v2334
    %v2336 = vmul.f32 %v2317, %v1119
    %v2337 = vmul.f32 %v2323, %v1119
    %v2338 = vmul.f32 %v2329, %v1119
    %v2339 = vmul.f32 %v2335, %v1119
    %v2340 = vadd.f32 %v2336, 1e-05
    %v2341 = vadd.f32 %v2337, 1e-05
    %v2342 = vadd.f32 %v2338, 1e-05
    %v2343 = vadd.f32 %v2339, 1e-05
    %v2344 = vrsqrt.pop %v2340
    %v2345 = vmul.f32 %v2344, %v2340
    %v2346 = vmul.f32 %v2345, %v2344
    %v2347 = vmul.f32 0.5, %v2346
    %v2348 = vsub.f32 1.5, %v2347
    %v2349 = vmul.f32 %v2344, %v2348
    %vm2350 = vweird.f32 %v2340
    %vm2351 = vweird.f32 %v2344
    %vm2352 = vmor %vm2350, %vm2351
    %v2353 = vsel %vm2352, %v2344, %v2349
    %v2354 = vrsqrt.pop %v2341
    %v2355 = vmul.f32 %v2354, %v2341
    %v2356 = vmul.f32 %v2355, %v2354
    %v2357 = vmul.f32 0.5, %v2356
    %v2358 = vsub.f32 1.5, %v2357
    %v2359 = vmul.f32 %v2354, %v2358
    %vm2360 = vweird.f32 %v2341
    %vm2361 = vweird.f32 %v2354
    %vm2362 = vmor %vm2360, %vm2361
    %v2363 = vsel %vm2362, %v2354, %v2359
    %v2364 = vrsqrt.pop %v2342
    %v2365 = vmul.f32 %v2364, %v2342
    %v2366 = vmul.f32 %v2365, %v2364
    %v2367 = vmul.f32 0.5, %v2366
    %v2368 = vsub.f32 1.5, %v2367
    %v2369 = vmul.f32 %v2364, %v2368
    %vm2370 = vweird.f32 %v2342
    %vm2371 = vweird.f32 %v2364
    %vm2372 = vmor %vm2370, %vm2371
    %v2373 = vsel %vm2372, %v2364, %v2369
    %v2374 = vrsqrt.pop %v2343
    %v2375 = vmul.f32 %v2374, %v2343
    %v2376 = vmul.f32 %v2375, %v2374
    %v2377 = vmul.f32 0.5, %v2376
    %v2378 = vsub.f32 1.5, %v2377
    %v2379 = vmul.f32 %v2374, %v2378
    %vm2380 = vweird.f32 %v2343
    %vm2381 = vweird.f32 %v2374
    %vm2382 = vmor %vm2380, %vm2381
    %v2383 = vsel %vm2382, %v2374, %v2379
    %v2388 = vrot.slane %v2363, 7
    %v2389 = vrot.slane %v2373, 6
    %v2390 = vrot.slane %v2383, 5
    %v2391 = vsel %vm1211, %v2353, %v2388
    %v2392 = vsel %vm1213, %v2389, %v2390
    %v2393 = vsel %vm1215, %v2391, %v2392
    %v2395 = vmul.f32 %v1416, %v2393
    %v2397 = vperm.slane %v2395, 0
    %v2398 = vperm.slane %v2395, 1
    %v2399 = vperm.slane %v2395, 2
    %v2400 = vperm.slane %v2395, 3
    %v2405 = vmul.f32 %v2300, %v2397
    %v2406 = vmul.f32 %v2301, %v2398
    %v2407 = vmul.f32 %v2302, %v2399
    %v2408 = vmul.f32 %v2303, %v2400
    %v2413 = vrot.slane %v2406, 7
    %v2414 = vrot.slane %v2407, 6
    %v2415 = vrot.slane %v2408, 5
    %v2416 = vsel %vm1211, %v2405, %v2413
    %v2417 = vsel %vm1213, %v2414, %v2415
    %v2418 = vsel %vm1215, %v2416, %v2417
    %v2420 = vsub.f32 %v1418, %v2418
    %v2421 = vmul.f32 %v2117, %v2397
    %v2422 = vmul.f32 %v2169, %v2398
    %v2423 = vmul.f32 %v2221, %v2399
    %v2424 = vmul.f32 %v2273, %v2400
    %v2426 = vperm.slane %v2420, 0
    %v2427 = vperm.slane %v2420, 1
    %v2428 = vperm.slane %v2420, 2
    %v2429 = vperm.slane %v2420, 3
    %v2434 = vadd.f32 %v2421, %v2426
    %v2435 = vadd.f32 %v2422, %v2427
    %v2436 = vadd.f32 %v2423, %v2428
    %v2437 = vadd.f32 %v2424, %v2429
    %v2438 = vmax.f32 %v2434, 0.0
    %v2439 = vmax.f32 %v2435, 0.0
    %v2440 = vmax.f32 %v2436, 0.0
    %v2441 = vmax.f32 %v2437, 0.0
    %v2442 = vpack.c.bf16 %v2438, %v2438
    %v2443 = vpack.c.bf16 %v2439, %v2439
    %v2444 = vpack.c.bf16 %v2440, %v2440
    %v2445 = vpack.c.bf16 %v2441, %v2441
    %s2446 = scalar_lea.hbm %s1, 3072
    // Predicated region
    $region38: #{domain_classifier_forward.1} parent=1 // pred_check
      _
    $region39: #{domain_classifier_forward.1} parent=1 // pred_check_branch
      %2448 = sbr.rel target = $region41
    $region40: #{domain_classifier_forward.1} parent=1 // pred_region
      %2449 = sst [smem:[#allocation11]] [#allocation18]
      %2450 = sst [smem:[#allocation12]] [#allocation17]
    $region41: #{domain_classifier_forward.1} parent=1 // pred_fallthru
      _
    %2452 = shalt.err (0)
    %s2454 = sshll.u32 %s2446, 4
    %s2455 = int_to_ptr.hbm [resolvable:$true] %s2454
    %s2456 = sshll.u32 %s80, 4
    %s2457 = int_to_ptr.vmem [resolvable:$true] %s2456
    %2459 = dma.hbm_to_vmem [thread:$0]  %s2455, 16384, %s2457, %s81
    %s2460 = sshll.u32 %s96, 4
    %2461 = dma.done [#allocation3], %s2460
    %v2462 = vld [vmem:[#allocation2] sm:$0xff]
    %v2463 = vld [vmem:[#allocation2 + $0x8] sm:$0xff]
    %v2464 = vld [vmem:[#allocation2 + $0x10] sm:$0xff]
    %v2465 = vld [vmem:[#allocation2 + $0x18] sm:$0xff]
    %v2466 = vld [vmem:[#allocation2 + $0x20] sm:$0xff]
    %v2467 = vld [vmem:[#allocation2 + $0x28] sm:$0xff]
    %v2468 = vld [vmem:[#allocation2 + $0x30] sm:$0xff]
    %v2469 = vld [vmem:[#allocation2 + $0x38] sm:$0xff]
    %v2470 = vld [vmem:[#allocation2 + $0x40] sm:$0xff]
    %v2471 = vld [vmem:[#allocation2 + $0x48] sm:$0xff]
    %v2472 = vld [vmem:[#allocation2 + $0x50] sm:$0xff]
    %v2473 = vld [vmem:[#allocation2 + $0x58] sm:$0xff]
    %v2474 = vld [vmem:[#allocation2 + $0x60] sm:$0xff]
    %v2475 = vld [vmem:[#allocation2 + $0x68] sm:$0xff]
    %v2476 = vld [vmem:[#allocation2 + $0x70] sm:$0xff]
    %v2477 = vld [vmem:[#allocation2 + $0x78] sm:$0xff]
    %v2478 = vld [vmem:[#allocation2 + $0x80] sm:$0xff]
    %v2479 = vld [vmem:[#allocation2 + $0x88] sm:$0xff]
    %v2480 = vld [vmem:[#allocation2 + $0x90] sm:$0xff]
    %v2481 = vld [vmem:[#allocation2 + $0x98] sm:$0xff]
    %v2482 = vld [vmem:[#allocation2 + $0xa0] sm:$0xff]
    %v2483 = vld [vmem:[#allocation2 + $0xa8] sm:$0xff]
    %v2484 = vld [vmem:[#allocation2 + $0xb0] sm:$0xff]
    %v2485 = vld [vmem:[#allocation2 + $0xb8] sm:$0xff]
    %v2486 = vld [vmem:[#allocation2 + $0xc0] sm:$0xff]
    %v2487 = vld [vmem:[#allocation2 + $0xc8] sm:$0xff]
    %v2488 = vld [vmem:[#allocation2 + $0xd0] sm:$0xff]
    %v2489 = vld [vmem:[#allocation2 + $0xd8] sm:$0xff]
    %v2490 = vld [vmem:[#allocation2 + $0xe0] sm:$0xff]
    %v2491 = vld [vmem:[#allocation2 + $0xe8] sm:$0xff]
    %v2492 = vld [vmem:[#allocation2 + $0xf0] sm:$0xff]
    %v2493 = vld [vmem:[#allocation2 + $0xf8] sm:$0xff]
    %v2494 = vld [vmem:[#allocation2 + $0x100] sm:$0xff]
    %v2495 = vld [vmem:[#allocation2 + $0x108] sm:$0xff]
    %v2496 = vld [vmem:[#allocation2 + $0x110] sm:$0xff]
    %v2497 = vld [vmem:[#allocation2 + $0x118] sm:$0xff]
    %v2498 = vld [vmem:[#allocation2 + $0x120] sm:$0xff]
    %v2499 = vld [vmem:[#allocation2 + $0x128] sm:$0xff]
    %v2500 = vld [vmem:[#allocation2 + $0x130] sm:$0xff]
    %v2501 = vld [vmem:[#allocation2 + $0x138] sm:$0xff]
    %v2502 = vld [vmem:[#allocation2 + $0x140] sm:$0xff]
    %v2503 = vld [vmem:[#allocation2 + $0x148] sm:$0xff]
    %v2504 = vld [vmem:[#allocation2 + $0x150] sm:$0xff]
    %v2505 = vld [vmem:[#allocation2 + $0x158] sm:$0xff]
    %v2506 = vld [vmem:[#allocation2 + $0x160] sm:$0xff]
    %v2507 = vld [vmem:[#allocation2 + $0x168] sm:$0xff]
    %v2508 = vld [vmem:[#allocation2 + $0x170] sm:$0xff]
    %v2509 = vld [vmem:[#allocation2 + $0x178] sm:$0xff]
    %v2510 = vld [vmem:[#allocation2 + $0x180] sm:$0xff]
    %v2511 = vld [vmem:[#allocation2 + $0x188] sm:$0xff]
    %v2512 = vld [vmem:[#allocation2 + $0x190] sm:$0xff]
    %v2513 = vld [vmem:[#allocation2 + $0x198] sm:$0xff]
    %v2514 = vld [vmem:[#allocation2 + $0x1a0] sm:$0xff]
    %v2515 = vld [vmem:[#allocation2 + $0x1a8] sm:$0xff]
    %v2516 = vld [vmem:[#allocation2 + $0x1b0] sm:$0xff]
    %v2517 = vld [vmem:[#allocation2 + $0x1b8] sm:$0xff]
    %v2518 = vld [vmem:[#allocation2 + $0x1c0] sm:$0xff]
    %v2519 = vld [vmem:[#allocation2 + $0x1c8] sm:$0xff]
    %v2520 = vld [vmem:[#allocation2 + $0x1d0] sm:$0xff]
    %v2521 = vld [vmem:[#allocation2 + $0x1d8] sm:$0xff]
    %v2522 = vld [vmem:[#allocation2 + $0x1e0] sm:$0xff]
    %v2523 = vld [vmem:[#allocation2 + $0x1e8] sm:$0xff]
    %v2524 = vld [vmem:[#allocation2 + $0x1f0] sm:$0xff]
    %v2525 = vld [vmem:[#allocation2 + $0x1f8] sm:$0xff]
    %v2526 = vld [vmem:[#allocation2 + $0x200] sm:$0xff]
    %v2527 = vld [vmem:[#allocation2 + $0x208] sm:$0xff]
    %v2528 = vld [vmem:[#allocation2 + $0x210] sm:$0xff]
    %v2529 = vld [vmem:[#allocation2 + $0x218] sm:$0xff]
    %v2530 = vld [vmem:[#allocation2 + $0x220] sm:$0xff]
    %v2531 = vld [vmem:[#allocation2 + $0x228] sm:$0xff]
    %v2532 = vld [vmem:[#allocation2 + $0x230] sm:$0xff]
    %v2533 = vld [vmem:[#allocation2 + $0x238] sm:$0xff]
    %v2534 = vld [vmem:[#allocation2 + $0x240] sm:$0xff]
    %v2535 = vld [vmem:[#allocation2 + $0x248] sm:$0xff]
    %v2536 = vld [vmem:[#allocation2 + $0x250] sm:$0xff]
    %v2537 = vld [vmem:[#allocation2 + $0x258] sm:$0xff]
    %v2538 = vld [vmem:[#allocation2 + $0x260] sm:$0xff]
    %v2539 = vld [vmem:[#allocation2 + $0x268] sm:$0xff]
    %v2540 = vld [vmem:[#allocation2 + $0x270] sm:$0xff]
    %v2541 = vld [vmem:[#allocation2 + $0x278] sm:$0xff]
    %v2542 = vld [vmem:[#allocation2 + $0x280] sm:$0xff]
    %v2543 = vld [vmem:[#allocation2 + $0x288] sm:$0xff]
    %v2544 = vld [vmem:[#allocation2 + $0x290] sm:$0xff]
    %v2545 = vld [vmem:[#allocation2 + $0x298] sm:$0xff]
    %v2546 = vld [vmem:[#allocation2 + $0x2a0] sm:$0xff]
    %v2547 = vld [vmem:[#allocation2 + $0x2a8] sm:$0xff]
    %v2548 = vld [vmem:[#allocation2 + $0x2b0] sm:$0xff]
    %v2549 = vld [vmem:[#allocation2 + $0x2b8] sm:$0xff]
    %v2550 = vld [vmem:[#allocation2 + $0x2c0] sm:$0xff]
    %v2551 = vld [vmem:[#allocation2 + $0x2c8] sm:$0xff]
    %v2552 = vld [vmem:[#allocation2 + $0x2d0] sm:$0xff]
    %v2553 = vld [vmem:[#allocation2 + $0x2d8] sm:$0xff]
    %v2554 = vld [vmem:[#allocation2 + $0x2e0] sm:$0xff]
    %v2555 = vld [vmem:[#allocation2 + $0x2e8] sm:$0xff]
    %v2556 = vld [vmem:[#allocation2 + $0x2f0] sm:$0xff]
    %v2557 = vld [vmem:[#allocation2 + $0x2f8] sm:$0xff]
    %v2558 = vld [vmem:[#allocation2 + $0x300] sm:$0xff]
    %v2559 = vld [vmem:[#allocation2 + $0x308] sm:$0xff]
    %v2560 = vld [vmem:[#allocation2 + $0x310] sm:$0xff]
    %v2561 = vld [vmem:[#allocation2 + $0x318] sm:$0xff]
    %v2562 = vld [vmem:[#allocation2 + $0x320] sm:$0xff]
    %v2563 = vld [vmem:[#allocation2 + $0x328] sm:$0xff]
    %v2564 = vld [vmem:[#allocation2 + $0x330] sm:$0xff]
    %v2565 = vld [vmem:[#allocation2 + $0x338] sm:$0xff]
    %v2566 = vld [vmem:[#allocation2 + $0x340] sm:$0xff]
    %v2567 = vld [vmem:[#allocation2 + $0x348] sm:$0xff]
    %v2568 = vld [vmem:[#allocation2 + $0x350] sm:$0xff]
    %v2569 = vld [vmem:[#allocation2 + $0x358] sm:$0xff]
    %v2570 = vld [vmem:[#allocation2 + $0x360] sm:$0xff]
    %v2571 = vld [vmem:[#allocation2 + $0x368] sm:$0xff]
    %v2572 = vld [vmem:[#allocation2 + $0x370] sm:$0xff]
    %v2573 = vld [vmem:[#allocation2 + $0x378] sm:$0xff]
    %v2574 = vld [vmem:[#allocation2 + $0x380] sm:$0xff]
    %v2575 = vld [vmem:[#allocation2 + $0x388] sm:$0xff]
    %v2576 = vld [vmem:[#allocation2 + $0x390] sm:$0xff]
    %v2577 = vld [vmem:[#allocation2 + $0x398] sm:$0xff]
    %v2578 = vld [vmem:[#allocation2 + $0x3a0] sm:$0xff]
    %v2579 = vld [vmem:[#allocation2 + $0x3a8] sm:$0xff]
    %v2580 = vld [vmem:[#allocation2 + $0x3b0] sm:$0xff]
    %v2581 = vld [vmem:[#allocation2 + $0x3b8] sm:$0xff]
    %v2582 = vld [vmem:[#allocation2 + $0x3c0] sm:$0xff]
    %v2583 = vld [vmem:[#allocation2 + $0x3c8] sm:$0xff]
    %v2584 = vld [vmem:[#allocation2 + $0x3d0] sm:$0xff]
    %v2585 = vld [vmem:[#allocation2 + $0x3d8] sm:$0xff]
    %v2586 = vld [vmem:[#allocation2 + $0x3e0] sm:$0xff]
    %v2587 = vld [vmem:[#allocation2 + $0x3e8] sm:$0xff]
    %v2588 = vld [vmem:[#allocation2 + $0x3f0] sm:$0xff]
    %v2589 = vld [vmem:[#allocation2 + $0x3f8] sm:$0xff]
    %s2590 = scalar_lea.vmem [#allocation6], 2
    %v2591 = vld [vmem:[%s2590] ss:$8 sm:$0xf]
    %s2592 = scalar_lea.vmem [#allocation6], 6
    %v2593 = vld [vmem:[%s2592] ss:$8 sm:$0xf]
    %s2594 = scalar_lea.vmem [#allocation6], 34
    %v2595 = vld [vmem:[%s2594] ss:$8 sm:$0xf]
    %v2597 = vperm.slane %v2591, 0
    %v2598 = vperm.slane %v2591, 1
    %v2599 = vperm.slane %v2591, 2
    %v2600 = vperm.slane %v2591, 3
    %v2733 = vunpack.c.l.b16 %v2462
    %v2734 = vunpack.c.h.b16 %v2462
    %v2735 = vunpack.c.l.b16 %v2463
    %v2736 = vunpack.c.h.b16 %v2463
    %v2737 = vunpack.c.l.b16 %v2464
    %v2738 = vunpack.c.h.b16 %v2464
    %v2739 = vunpack.c.l.b16 %v2465
    %v2740 = vunpack.c.h.b16 %v2465
    %v2741 = vunpack.c.l.b16 %v2466
    %v2742 = vunpack.c.h.b16 %v2466
    %v2743 = vunpack.c.l.b16 %v2467
    %v2744 = vunpack.c.h.b16 %v2467
    %v2745 = vunpack.c.l.b16 %v2468
    %v2746 = vunpack.c.h.b16 %v2468
    %v2747 = vunpack.c.l.b16 %v2469
    %v2748 = vunpack.c.h.b16 %v2469
    %v2749 = vunpack.c.l.b16 %v2470
    %v2750 = vunpack.c.h.b16 %v2470
    %v2751 = vunpack.c.l.b16 %v2471
    %v2752 = vunpack.c.h.b16 %v2471
    %v2753 = vunpack.c.l.b16 %v2472
    %v2754 = vunpack.c.h.b16 %v2472
    %v2755 = vunpack.c.l.b16 %v2473
    %v2756 = vunpack.c.h.b16 %v2473
    %v2757 = vunpack.c.l.b16 %v2474
    %v2758 = vunpack.c.h.b16 %v2474
    %v2759 = vunpack.c.l.b16 %v2475
    %v2760 = vunpack.c.h.b16 %v2475
    %v2761 = vunpack.c.l.b16 %v2476
    %v2762 = vunpack.c.h.b16 %v2476
    %v2763 = vunpack.c.l.b16 %v2477
    %v2764 = vunpack.c.h.b16 %v2477
    %v2765 = vunpack.c.l.b16 %v2478
    %v2766 = vunpack.c.h.b16 %v2478
    %v2767 = vunpack.c.l.b16 %v2479
    %v2768 = vunpack.c.h.b16 %v2479
    %v2769 = vunpack.c.l.b16 %v2480
    %v2770 = vunpack.c.h.b16 %v2480
    %v2771 = vunpack.c.l.b16 %v2481
    %v2772 = vunpack.c.h.b16 %v2481
    %v2773 = vunpack.c.l.b16 %v2482
    %v2774 = vunpack.c.h.b16 %v2482
    %v2775 = vunpack.c.l.b16 %v2483
    %v2776 = vunpack.c.h.b16 %v2483
    %v2777 = vunpack.c.l.b16 %v2484
    %v2778 = vunpack.c.h.b16 %v2484
    %v2779 = vunpack.c.l.b16 %v2485
    %v2780 = vunpack.c.h.b16 %v2485
    %v2781 = vunpack.c.l.b16 %v2486
    %v2782 = vunpack.c.h.b16 %v2486
    %v2783 = vunpack.c.l.b16 %v2487
    %v2784 = vunpack.c.h.b16 %v2487
    %v2785 = vunpack.c.l.b16 %v2488
    %v2786 = vunpack.c.h.b16 %v2488
    %v2787 = vunpack.c.l.b16 %v2489
    %v2788 = vunpack.c.h.b16 %v2489
    %v2789 = vunpack.c.l.b16 %v2490
    %v2790 = vunpack.c.h.b16 %v2490
    %v2791 = vunpack.c.l.b16 %v2491
    %v2792 = vunpack.c.h.b16 %v2491
    %v2793 = vunpack.c.l.b16 %v2492
    %v2794 = vunpack.c.h.b16 %v2492
    %v2795 = vunpack.c.l.b16 %v2493
    %v2796 = vunpack.c.h.b16 %v2493
    %v2797 = vunpack.c.l.b16 %v2494
    %v2798 = vunpack.c.h.b16 %v2494
    %v2799 = vunpack.c.l.b16 %v2495
    %v2800 = vunpack.c.h.b16 %v2495
    %v2801 = vunpack.c.l.b16 %v2496
    %v2802 = vunpack.c.h.b16 %v2496
    %v2803 = vunpack.c.l.b16 %v2497
    %v2804 = vunpack.c.h.b16 %v2497
    %v2805 = vunpack.c.l.b16 %v2498
    %v2806 = vunpack.c.h.b16 %v2498
    %v2807 = vunpack.c.l.b16 %v2499
    %v2808 = vunpack.c.h.b16 %v2499
    %v2809 = vunpack.c.l.b16 %v2500
    %v2810 = vunpack.c.h.b16 %v2500
    %v2811 = vunpack.c.l.b16 %v2501
    %v2812 = vunpack.c.h.b16 %v2501
    %v2813 = vunpack.c.l.b16 %v2502
    %v2814 = vunpack.c.h.b16 %v2502
    %v2815 = vunpack.c.l.b16 %v2503
    %v2816 = vunpack.c.h.b16 %v2503
    %v2817 = vunpack.c.l.b16 %v2504
    %v2818 = vunpack.c.h.b16 %v2504
    %v2819 = vunpack.c.l.b16 %v2505
    %v2820 = vunpack.c.h.b16 %v2505
    %v2821 = vunpack.c.l.b16 %v2506
    %v2822 = vunpack.c.h.b16 %v2506
    %v2823 = vunpack.c.l.b16 %v2507
    %v2824 = vunpack.c.h.b16 %v2507
    %v2825 = vunpack.c.l.b16 %v2508
    %v2826 = vunpack.c.h.b16 %v2508
    %v2827 = vunpack.c.l.b16 %v2509
    %v2828 = vunpack.c.h.b16 %v2509
    %v2829 = vunpack.c.l.b16 %v2510
    %v2830 = vunpack.c.h.b16 %v2510
    %v2831 = vunpack.c.l.b16 %v2511
    %v2832 = vunpack.c.h.b16 %v2511
    %v2833 = vunpack.c.l.b16 %v2512
    %v2834 = vunpack.c.h.b16 %v2512
    %v2835 = vunpack.c.l.b16 %v2513
    %v2836 = vunpack.c.h.b16 %v2513
    %v2837 = vunpack.c.l.b16 %v2514
    %v2838 = vunpack.c.h.b16 %v2514
    %v2839 = vunpack.c.l.b16 %v2515
    %v2840 = vunpack.c.h.b16 %v2515
    %v2841 = vunpack.c.l.b16 %v2516
    %v2842 = vunpack.c.h.b16 %v2516
    %v2843 = vunpack.c.l.b16 %v2517
    %v2844 = vunpack.c.h.b16 %v2517
    %v2845 = vunpack.c.l.b16 %v2518
    %v2846 = vunpack.c.h.b16 %v2518
    %v2847 = vunpack.c.l.b16 %v2519
    %v2848 = vunpack.c.h.b16 %v2519
    %v2849 = vunpack.c.l.b16 %v2520
    %v2850 = vunpack.c.h.b16 %v2520
    %v2851 = vunpack.c.l.b16 %v2521
    %v2852 = vunpack.c.h.b16 %v2521
    %v2853 = vunpack.c.l.b16 %v2522
    %v2854 = vunpack.c.h.b16 %v2522
    %v2855 = vunpack.c.l.b16 %v2523
    %v2856 = vunpack.c.h.b16 %v2523
    %v2857 = vunpack.c.l.b16 %v2524
    %v2858 = vunpack.c.h.b16 %v2524
    %v2859 = vunpack.c.l.b16 %v2525
    %v2860 = vunpack.c.h.b16 %v2525
    %v2861 = vunpack.c.l.b16 %v2526
    %v2862 = vunpack.c.h.b16 %v2526
    %v2863 = vunpack.c.l.b16 %v2527
    %v2864 = vunpack.c.h.b16 %v2527
    %v2865 = vunpack.c.l.b16 %v2528
    %v2866 = vunpack.c.h.b16 %v2528
    %v2867 = vunpack.c.l.b16 %v2529
    %v2868 = vunpack.c.h.b16 %v2529
    %v2869 = vunpack.c.l.b16 %v2530
    %v2870 = vunpack.c.h.b16 %v2530
    %v2871 = vunpack.c.l.b16 %v2531
    %v2872 = vunpack.c.h.b16 %v2531
    %v2873 = vunpack.c.l.b16 %v2532
    %v2874 = vunpack.c.h.b16 %v2532
    %v2875 = vunpack.c.l.b16 %v2533
    %v2876 = vunpack.c.h.b16 %v2533
    %v2877 = vunpack.c.l.b16 %v2534
    %v2878 = vunpack.c.h.b16 %v2534
    %v2879 = vunpack.c.l.b16 %v2535
    %v2880 = vunpack.c.h.b16 %v2535
    %v2881 = vunpack.c.l.b16 %v2536
    %v2882 = vunpack.c.h.b16 %v2536
    %v2883 = vunpack.c.l.b16 %v2537
    %v2884 = vunpack.c.h.b16 %v2537
    %v2885 = vunpack.c.l.b16 %v2538
    %v2886 = vunpack.c.h.b16 %v2538
    %v2887 = vunpack.c.l.b16 %v2539
    %v2888 = vunpack.c.h.b16 %v2539
    %v2889 = vunpack.c.l.b16 %v2540
    %v2890 = vunpack.c.h.b16 %v2540
    %v2891 = vunpack.c.l.b16 %v2541
    %v2892 = vunpack.c.h.b16 %v2541
    %v2893 = vunpack.c.l.b16 %v2542
    %v2894 = vunpack.c.h.b16 %v2542
    %v2895 = vunpack.c.l.b16 %v2543
    %v2896 = vunpack.c.h.b16 %v2543
    %v2897 = vunpack.c.l.b16 %v2544
    %v2898 = vunpack.c.h.b16 %v2544
    %v2899 = vunpack.c.l.b16 %v2545
    %v2900 = vunpack.c.h.b16 %v2545
    %v2901 = vunpack.c.l.b16 %v2546
    %v2902 = vunpack.c.h.b16 %v2546
    %v2903 = vunpack.c.l.b16 %v2547
    %v2904 = vunpack.c.h.b16 %v2547
    %v2905 = vunpack.c.l.b16 %v2548
    %v2906 = vunpack.c.h.b16 %v2548
    %v2907 = vunpack.c.l.b16 %v2549
    %v2908 = vunpack.c.h.b16 %v2549
    %v2909 = vunpack.c.l.b16 %v2550
    %v2910 = vunpack.c.h.b16 %v2550
    %v2911 = vunpack.c.l.b16 %v2551
    %v2912 = vunpack.c.h.b16 %v2551
    %v2913 = vunpack.c.l.b16 %v2552
    %v2914 = vunpack.c.h.b16 %v2552
    %v2915 = vunpack.c.l.b16 %v2553
    %v2916 = vunpack.c.h.b16 %v2553
    %v2917 = vunpack.c.l.b16 %v2554
    %v2918 = vunpack.c.h.b16 %v2554
    %v2919 = vunpack.c.l.b16 %v2555
    %v2920 = vunpack.c.h.b16 %v2555
    %v2921 = vunpack.c.l.b16 %v2556
    %v2922 = vunpack.c.h.b16 %v2556
    %v2923 = vunpack.c.l.b16 %v2557
    %v2924 = vunpack.c.h.b16 %v2557
    %v2925 = vunpack.c.l.b16 %v2558
    %v2926 = vunpack.c.h.b16 %v2558
    %v2927 = vunpack.c.l.b16 %v2559
    %v2928 = vunpack.c.h.b16 %v2559
    %v2929 = vunpack.c.l.b16 %v2560
    %v2930 = vunpack.c.h.b16 %v2560
    %v2931 = vunpack.c.l.b16 %v2561
    %v2932 = vunpack.c.h.b16 %v2561
    %v2933 = vunpack.c.l.b16 %v2562
    %v2934 = vunpack.c.h.b16 %v2562
    %v2935 = vunpack.c.l.b16 %v2563
    %v2936 = vunpack.c.h.b16 %v2563
    %v2937 = vunpack.c.l.b16 %v2564
    %v2938 = vunpack.c.h.b16 %v2564
    %v2939 = vunpack.c.l.b16 %v2565
    %v2940 = vunpack.c.h.b16 %v2565
    %v2941 = vunpack.c.l.b16 %v2566
    %v2942 = vunpack.c.h.b16 %v2566
    %v2943 = vunpack.c.l.b16 %v2567
    %v2944 = vunpack.c.h.b16 %v2567
    %v2945 = vunpack.c.l.b16 %v2568
    %v2946 = vunpack.c.h.b16 %v2568
    %v2947 = vunpack.c.l.b16 %v2569
    %v2948 = vunpack.c.h.b16 %v2569
    %v2949 = vunpack.c.l.b16 %v2570
    %v2950 = vunpack.c.h.b16 %v2570
    %v2951 = vunpack.c.l.b16 %v2571
    %v2952 = vunpack.c.h.b16 %v2571
    %v2953 = vunpack.c.l.b16 %v2572
    %v2954 = vunpack.c.h.b16 %v2572
    %v2955 = vunpack.c.l.b16 %v2573
    %v2956 = vunpack.c.h.b16 %v2573
    %v2957 = vunpack.c.l.b16 %v2574
    %v2958 = vunpack.c.h.b16 %v2574
    %v2959 = vunpack.c.l.b16 %v2575
    %v2960 = vunpack.c.h.b16 %v2575
    %v2961 = vunpack.c.l.b16 %v2576
    %v2962 = vunpack.c.h.b16 %v2576
    %v2963 = vunpack.c.l.b16 %v2577
    %v2964 = vunpack.c.h.b16 %v2577
    %v2965 = vunpack.c.l.b16 %v2578
    %v2966 = vunpack.c.h.b16 %v2578
    %v2967 = vunpack.c.l.b16 %v2579
    %v2968 = vunpack.c.h.b16 %v2579
    %v2969 = vunpack.c.l.b16 %v2580
    %v2970 = vunpack.c.h.b16 %v2580
    %v2971 = vunpack.c.l.b16 %v2581
    %v2972 = vunpack.c.h.b16 %v2581
    %v2973 = vunpack.c.l.b16 %v2582
    %v2974 = vunpack.c.h.b16 %v2582
    %v2975 = vunpack.c.l.b16 %v2583
    %v2976 = vunpack.c.h.b16 %v2583
    %v2977 = vunpack.c.l.b16 %v2584
    %v2978 = vunpack.c.h.b16 %v2584
    %v2979 = vunpack.c.l.b16 %v2585
    %v2980 = vunpack.c.h.b16 %v2585
    %v2981 = vunpack.c.l.b16 %v2586
    %v2982 = vunpack.c.h.b16 %v2586
    %v2983 = vunpack.c.l.b16 %v2587
    %v2984 = vunpack.c.h.b16 %v2587
    %v2985 = vunpack.c.l.b16 %v2588
    %v2986 = vunpack.c.h.b16 %v2588
    %v2987 = vunpack.c.l.b16 %v2589
    %v2988 = vunpack.c.h.b16 %v2589
    %v2989 = vpack.c.b16 %v2737, %v2733
    %v2990 = vpack.c.b16 %v2738, %v2734
    %v2991 = vpack.c.b16 %v2739, %v2735
    %v2992 = vpack.c.b16 %v2740, %v2736
    %v2993 = vpack.c.b16 %v2745, %v2741
    %v2994 = vpack.c.b16 %v2746, %v2742
    %v2995 = vpack.c.b16 %v2747, %v2743
    %v2996 = vpack.c.b16 %v2748, %v2744
    %v2997 = vpack.c.b16 %v2753, %v2749
    %v2998 = vpack.c.b16 %v2754, %v2750
    %v2999 = vpack.c.b16 %v2755, %v2751
    %v3000 = vpack.c.b16 %v2756, %v2752
    %v3001 = vpack.c.b16 %v2761, %v2757
    %v3002 = vpack.c.b16 %v2762, %v2758
    %v3003 = vpack.c.b16 %v2763, %v2759
    %v3004 = vpack.c.b16 %v2764, %v2760
    %v3005 = vpack.c.b16 %v2769, %v2765
    %v3006 = vpack.c.b16 %v2770, %v2766
    %v3007 = vpack.c.b16 %v2771, %v2767
    %v3008 = vpack.c.b16 %v2772, %v2768
    %v3009 = vpack.c.b16 %v2777, %v2773
    %v3010 = vpack.c.b16 %v2778, %v2774
    %v3011 = vpack.c.b16 %v2779, %v2775
    %v3012 = vpack.c.b16 %v2780, %v2776
    %v3013 = vpack.c.b16 %v2785, %v2781
    %v3014 = vpack.c.b16 %v2786, %v2782
    %v3015 = vpack.c.b16 %v2787, %v2783
    %v3016 = vpack.c.b16 %v2788, %v2784
    %v3017 = vpack.c.b16 %v2793, %v2789
    %v3018 = vpack.c.b16 %v2794, %v2790
    %v3019 = vpack.c.b16 %v2795, %v2791
    %v3020 = vpack.c.b16 %v2796, %v2792
    %v3021 = vpack.c.b16 %v2801, %v2797
    %v3022 = vpack.c.b16 %v2802, %v2798
    %v3023 = vpack.c.b16 %v2803, %v2799
    %v3024 = vpack.c.b16 %v2804, %v2800
    %v3025 = vpack.c.b16 %v2809, %v2805
    %v3026 = vpack.c.b16 %v2810, %v2806
    %v3027 = vpack.c.b16 %v2811, %v2807
    %v3028 = vpack.c.b16 %v2812, %v2808
    %v3029 = vpack.c.b16 %v2817, %v2813
    %v3030 = vpack.c.b16 %v2818, %v2814
    %v3031 = vpack.c.b16 %v2819, %v2815
    %v3032 = vpack.c.b16 %v2820, %v2816
    %v3033 = vpack.c.b16 %v2825, %v2821
    %v3034 = vpack.c.b16 %v2826, %v2822
    %v3035 = vpack.c.b16 %v2827, %v2823
    %v3036 = vpack.c.b16 %v2828, %v2824
    %v3037 = vpack.c.b16 %v2833, %v2829
    %v3038 = vpack.c.b16 %v2834, %v2830
    %v3039 = vpack.c.b16 %v2835, %v2831
    %v3040 = vpack.c.b16 %v2836, %v2832
    %v3041 = vpack.c.b16 %v2841, %v2837
    %v3042 = vpack.c.b16 %v2842, %v2838
    %v3043 = vpack.c.b16 %v2843, %v2839
    %v3044 = vpack.c.b16 %v2844, %v2840
    %v3045 = vpack.c.b16 %v2849, %v2845
    %v3046 = vpack.c.b16 %v2850, %v2846
    %v3047 = vpack.c.b16 %v2851, %v2847
    %v3048 = vpack.c.b16 %v2852, %v2848
    %v3049 = vpack.c.b16 %v2857, %v2853
    %v3050 = vpack.c.b16 %v2858, %v2854
    %v3051 = vpack.c.b16 %v2859, %v2855
    %v3052 = vpack.c.b16 %v2860, %v2856
    %v3053 = vpack.c.b16 %v2865, %v2861
    %v3054 = vpack.c.b16 %v2866, %v2862
    %v3055 = vpack.c.b16 %v2867, %v2863
    %v3056 = vpack.c.b16 %v2868, %v2864
    %v3057 = vpack.c.b16 %v2873, %v2869
    %v3058 = vpack.c.b16 %v2874, %v2870
    %v3059 = vpack.c.b16 %v2875, %v2871
    %v3060 = vpack.c.b16 %v2876, %v2872
    %v3061 = vpack.c.b16 %v2881, %v2877
    %v3062 = vpack.c.b16 %v2882, %v2878
    %v3063 = vpack.c.b16 %v2883, %v2879
    %v3064 = vpack.c.b16 %v2884, %v2880
    %v3065 = vpack.c.b16 %v2889, %v2885
    %v3066 = vpack.c.b16 %v2890, %v2886
    %v3067 = vpack.c.b16 %v2891, %v2887
    %v3068 = vpack.c.b16 %v2892, %v2888
    %v3069 = vpack.c.b16 %v2897, %v2893
    %v3070 = vpack.c.b16 %v2898, %v2894
    %v3071 = vpack.c.b16 %v2899, %v2895
    %v3072 = vpack.c.b16 %v2900, %v2896
    %v3073 = vpack.c.b16 %v2905, %v2901
    %v3074 = vpack.c.b16 %v2906, %v2902
    %v3075 = vpack.c.b16 %v2907, %v2903
    %v3076 = vpack.c.b16 %v2908, %v2904
    %v3077 = vpack.c.b16 %v2913, %v2909
    %v3078 = vpack.c.b16 %v2914, %v2910
    %v3079 = vpack.c.b16 %v2915, %v2911
    %v3080 = vpack.c.b16 %v2916, %v2912
    %v3081 = vpack.c.b16 %v2921, %v2917
    %v3082 = vpack.c.b16 %v2922, %v2918
    %v3083 = vpack.c.b16 %v2923, %v2919
    %v3084 = vpack.c.b16 %v2924, %v2920
    %v3085 = vpack.c.b16 %v2929, %v2925
    %v3086 = vpack.c.b16 %v2930, %v2926
    %v3087 = vpack.c.b16 %v2931, %v2927
    %v3088 = vpack.c.b16 %v2932, %v2928
    %v3089 = vpack.c.b16 %v2937, %v2933
    %v3090 = vpack.c.b16 %v2938, %v2934
    %v3091 = vpack.c.b16 %v2939, %v2935
    %v3092 = vpack.c.b16 %v2940, %v2936
    %v3093 = vpack.c.b16 %v2945, %v2941
    %v3094 = vpack.c.b16 %v2946, %v2942
    %v3095 = vpack.c.b16 %v2947, %v2943
    %v3096 = vpack.c.b16 %v2948, %v2944
    %v3097 = vpack.c.b16 %v2953, %v2949
    %v3098 = vpack.c.b16 %v2954, %v2950
    %v3099 = vpack.c.b16 %v2955, %v2951
    %v3100 = vpack.c.b16 %v2956, %v2952
    %v3101 = vpack.c.b16 %v2961, %v2957
    %v3102 = vpack.c.b16 %v2962, %v2958
    %v3103 = vpack.c.b16 %v2963, %v2959
    %v3104 = vpack.c.b16 %v2964, %v2960
    %v3105 = vpack.c.b16 %v2969, %v2965
    %v3106 = vpack.c.b16 %v2970, %v2966
    %v3107 = vpack.c.b16 %v2971, %v2967
    %v3108 = vpack.c.b16 %v2972, %v2968
    %v3109 = vpack.c.b16 %v2977, %v2973
    %v3110 = vpack.c.b16 %v2978, %v2974
    %v3111 = vpack.c.b16 %v2979, %v2975
    %v3112 = vpack.c.b16 %v2980, %v2976
    %v3113 = vpack.c.b16 %v2985, %v2981
    %v3114 = vpack.c.b16 %v2986, %v2982
    %v3115 = vpack.c.b16 %v2987, %v2983
    %v3116 = vpack.c.b16 %v2988, %v2984
    %3245 = vmatpush.bf16.msra.mxu0 %v3017
    %3246 = vmatpush.bf16.msra.mxu0 %v3013
    %3247 = vmatpush.bf16.msra.mxu0 %v3009
    %3248 = vmatpush.bf16.msra.mxu0 %v3005
    %3249 = vmatpush.bf16.msra.mxu0 %v3001
    %3250 = vmatpush.bf16.msra.mxu0 %v2997
    %3251 = vmatpush.bf16.msra.mxu0 %v2993
    %3252 = vmatpush.bf16.msra.mxu0 %v2989
    %3253 = vmatmul.bf16.gmra.mxu0 %v2442
    %v3254 = vpop.f32.mrf.mxu0
    %v3255 = vadd.f32 %v2597, %v3254
    %v3256 = vpop.f32.mrf.mxu0
    %3257 = vdwg.mxu0
    %3258 = vmatpush.bf16.msra.mxu0 %v3049
    %3259 = vmatpush.bf16.msra.mxu0 %v3045
    %3260 = vmatpush.bf16.msra.mxu0 %v3041
    %3261 = vmatpush.bf16.msra.mxu0 %v3037
    %3262 = vmatpush.bf16.msra.mxu0 %v3033
    %3263 = vmatpush.bf16.msra.mxu0 %v3029
    %3264 = vmatpush.bf16.msra.mxu0 %v3025
    %3265 = vmatpush.bf16.msra.mxu0 %v3021
    %3266 = vmatmul.bf16.gmra.mxu0 %v2443
    %v3267 = vpop.f32.mrf.mxu0
    %v3268 = vadd.f32 %v3255, %v3267
    %v3269 = vpop.f32.mrf.mxu0
    %3270 = vdwg.mxu0
    %3271 = vmatpush.bf16.msra.mxu0 %v3081
    %3272 = vmatpush.bf16.msra.mxu0 %v3077
    %3273 = vmatpush.bf16.msra.mxu0 %v3073
    %3274 = vmatpush.bf16.msra.mxu0 %v3069
    %3275 = vmatpush.bf16.msra.mxu0 %v3065
    %3276 = vmatpush.bf16.msra.mxu0 %v3061
    %3277 = vmatpush.bf16.msra.mxu0 %v3057
    %3278 = vmatpush.bf16.msra.mxu0 %v3053
    %3279 = vmatmul.bf16.gmra.mxu0 %v2444
    %v3280 = vpop.f32.mrf.mxu0
    %v3281 = vadd.f32 %v3268, %v3280
    %v3282 = vpop.f32.mrf.mxu0
    %3283 = vdwg.mxu0
    %3284 = vmatpush.bf16.msra.mxu0 %v3113
    %3285 = vmatpush.bf16.msra.mxu0 %v3109
    %3286 = vmatpush.bf16.msra.mxu0 %v3105
    %3287 = vmatpush.bf16.msra.mxu0 %v3101
    %3288 = vmatpush.bf16.msra.mxu0 %v3097
    %3289 = vmatpush.bf16.msra.mxu0 %v3093
    %3290 = vmatpush.bf16.msra.mxu0 %v3089
    %3291 = vmatpush.bf16.msra.mxu0 %v3085
    %3292 = vmatmul.bf16.gmra.mxu0 %v2445
    %v3293 = vpop.f32.mrf.mxu0
    %v3294 = vadd.f32 %v3281, %v3293
    %v3295 = vpop.f32.mrf.mxu0
    %3296 = vdwg.mxu0
    %3297 = vmatpush.bf16.msra.mxu0 %v3018
    %3298 = vmatpush.bf16.msra.mxu0 %v3014
    %3299 = vmatpush.bf16.msra.mxu0 %v3010
    %3300 = vmatpush.bf16.msra.mxu0 %v3006
    %3301 = vmatpush.bf16.msra.mxu0 %v3002
    %3302 = vmatpush.bf16.msra.mxu0 %v2998
    %3303 = vmatpush.bf16.msra.mxu0 %v2994
    %3304 = vmatpush.bf16.msra.mxu0 %v2990
    %3305 = vmatmul.bf16.gmra.mxu0 %v2442
    %v3306 = vpop.f32.mrf.mxu0
    %v3307 = vadd.f32 %v2598, %v3306
    %v3308 = vpop.f32.mrf.mxu0
    %3309 = vdwg.mxu0
    %3310 = vmatpush.bf16.msra.mxu0 %v3050
    %3311 = vmatpush.bf16.msra.mxu0 %v3046
    %3312 = vmatpush.bf16.msra.mxu0 %v3042
    %3313 = vmatpush.bf16.msra.mxu0 %v3038
    %3314 = vmatpush.bf16.msra.mxu0 %v3034
    %3315 = vmatpush.bf16.msra.mxu0 %v3030
    %3316 = vmatpush.bf16.msra.mxu0 %v3026
    %3317 = vmatpush.bf16.msra.mxu0 %v3022
    %3318 = vmatmul.bf16.gmra.mxu0 %v2443
    %v3319 = vpop.f32.mrf.mxu0
    %v3320 = vadd.f32 %v3307, %v3319
    %v3321 = vpop.f32.mrf.mxu0
    %3322 = vdwg.mxu0
    %3323 = vmatpush.bf16.msra.mxu0 %v3082
    %3324 = vmatpush.bf16.msra.mxu0 %v3078
    %3325 = vmatpush.bf16.msra.mxu0 %v3074
    %3326 = vmatpush.bf16.msra.mxu0 %v3070
    %3327 = vmatpush.bf16.msra.mxu0 %v3066
    %3328 = vmatpush.bf16.msra.mxu0 %v3062
    %3329 = vmatpush.bf16.msra.mxu0 %v3058
    %3330 = vmatpush.bf16.msra.mxu0 %v3054
    %3331 = vmatmul.bf16.gmra.mxu0 %v2444
    %v3332 = vpop.f32.mrf.mxu0
    %v3333 = vadd.f32 %v3320, %v3332
    %v3334 = vpop.f32.mrf.mxu0
    %3335 = vdwg.mxu0
    %3336 = vmatpush.bf16.msra.mxu0 %v3114
    %3337 = vmatpush.bf16.msra.mxu0 %v3110
    %3338 = vmatpush.bf16.msra.mxu0 %v3106
    %3339 = vmatpush.bf16.msra.mxu0 %v3102
    %3340 = vmatpush.bf16.msra.mxu0 %v3098
    %3341 = vmatpush.bf16.msra.mxu0 %v3094
    %3342 = vmatpush.bf16.msra.mxu0 %v3090
    %3343 = vmatpush.bf16.msra.mxu0 %v3086
    %3344 = vmatmul.bf16.gmra.mxu0 %v2445
    %v3345 = vpop.f32.mrf.mxu0
    %v3346 = vadd.f32 %v3333, %v3345
    %v3347 = vpop.f32.mrf.mxu0
    %3348 = vdwg.mxu0
    %3349 = vmatpush.bf16.msra.mxu0 %v3019
    %3350 = vmatpush.bf16.msra.mxu0 %v3015
    %3351 = vmatpush.bf16.msra.mxu0 %v3011
    %3352 = vmatpush.bf16.msra.mxu0 %v3007
    %3353 = vmatpush.bf16.msra.mxu0 %v3003
    %3354 = vmatpush.bf16.msra.mxu0 %v2999
    %3355 = vmatpush.bf16.msra.mxu0 %v2995
    %3356 = vmatpush.bf16.msra.mxu0 %v2991
    %3357 = vmatmul.bf16.gmra.mxu0 %v2442
    %v3358 = vpop.f32.mrf.mxu0
    %v3359 = vadd.f32 %v2599, %v3358
    %v3360 = vpop.f32.mrf.mxu0
    %3361 = vdwg.mxu0
    %3362 = vmatpush.bf16.msra.mxu0 %v3051
    %3363 = vmatpush.bf16.msra.mxu0 %v3047
    %3364 = vmatpush.bf16.msra.mxu0 %v3043
    %3365 = vmatpush.bf16.msra.mxu0 %v3039
    %3366 = vmatpush.bf16.msra.mxu0 %v3035
    %3367 = vmatpush.bf16.msra.mxu0 %v3031
    %3368 = vmatpush.bf16.msra.mxu0 %v3027
    %3369 = vmatpush.bf16.msra.mxu0 %v3023
    %3370 = vmatmul.bf16.gmra.mxu0 %v2443
    %v3371 = vpop.f32.mrf.mxu0
    %v3372 = vadd.f32 %v3359, %v3371
    %v3373 = vpop.f32.mrf.mxu0
    %3374 = vdwg.mxu0
    %3375 = vmatpush.bf16.msra.mxu0 %v3083
    %3376 = vmatpush.bf16.msra.mxu0 %v3079
    %3377 = vmatpush.bf16.msra.mxu0 %v3075
    %3378 = vmatpush.bf16.msra.mxu0 %v3071
    %3379 = vmatpush.bf16.msra.mxu0 %v3067
    %3380 = vmatpush.bf16.msra.mxu0 %v3063
    %3381 = vmatpush.bf16.msra.mxu0 %v3059
    %3382 = vmatpush.bf16.msra.mxu0 %v3055
    %3383 = vmatmul.bf16.gmra.mxu0 %v2444
    %v3384 = vpop.f32.mrf.mxu0
    %v3385 = vadd.f32 %v3372, %v3384
    %v3386 = vpop.f32.mrf.mxu0
    %3387 = vdwg.mxu0
    %3388 = vmatpush.bf16.msra.mxu0 %v3115
    %3389 = vmatpush.bf16.msra.mxu0 %v3111
    %3390 = vmatpush.bf16.msra.mxu0 %v3107
    %3391 = vmatpush.bf16.msra.mxu0 %v3103
    %3392 = vmatpush.bf16.msra.mxu0 %v3099
    %3393 = vmatpush.bf16.msra.mxu0 %v3095
    %3394 = vmatpush.bf16.msra.mxu0 %v3091
    %3395 = vmatpush.bf16.msra.mxu0 %v3087
    %3396 = vmatmul.bf16.gmra.mxu0 %v2445
    %v3397 = vpop.f32.mrf.mxu0
    %v3398 = vadd.f32 %v3385, %v3397
    %v3399 = vpop.f32.mrf.mxu0
    %3400 = vdwg.mxu0
    %3401 = vmatpush.bf16.msra.mxu0 %v3020
    %3402 = vmatpush.bf16.msra.mxu0 %v3016
    %3403 = vmatpush.bf16.msra.mxu0 %v3012
    %3404 = vmatpush.bf16.msra.mxu0 %v3008
    %3405 = vmatpush.bf16.msra.mxu0 %v3004
    %3406 = vmatpush.bf16.msra.mxu0 %v3000
    %3407 = vmatpush.bf16.msra.mxu0 %v2996
    %3408 = vmatpush.bf16.msra.mxu0 %v2992
    %3409 = vmatmul.bf16.gmra.mxu0 %v2442
    %v3410 = vpop.f32.mrf.mxu0
    %v3411 = vadd.f32 %v2600, %v3410
    %v3412 = vpop.f32.mrf.mxu0
    %3413 = vdwg.mxu0
    %3414 = vmatpush.bf16.msra.mxu0 %v3052
    %3415 = vmatpush.bf16.msra.mxu0 %v3048
    %3416 = vmatpush.bf16.msra.mxu0 %v3044
    %3417 = vmatpush.bf16.msra.mxu0 %v3040
    %3418 = vmatpush.bf16.msra.mxu0 %v3036
    %3419 = vmatpush.bf16.msra.mxu0 %v3032
    %3420 = vmatpush.bf16.msra.mxu0 %v3028
    %3421 = vmatpush.bf16.msra.mxu0 %v3024
    %3422 = vmatmul.bf16.gmra.mxu0 %v2443
    %v3423 = vpop.f32.mrf.mxu0
    %v3424 = vadd.f32 %v3411, %v3423
    %v3425 = vpop.f32.mrf.mxu0
    %3426 = vdwg.mxu0
    %3427 = vmatpush.bf16.msra.mxu0 %v3084
    %3428 = vmatpush.bf16.msra.mxu0 %v3080
    %3429 = vmatpush.bf16.msra.mxu0 %v3076
    %3430 = vmatpush.bf16.msra.mxu0 %v3072
    %3431 = vmatpush.bf16.msra.mxu0 %v3068
    %3432 = vmatpush.bf16.msra.mxu0 %v3064
    %3433 = vmatpush.bf16.msra.mxu0 %v3060
    %3434 = vmatpush.bf16.msra.mxu0 %v3056
    %3435 = vmatmul.bf16.gmra.mxu0 %v2444
    %v3436 = vpop.f32.mrf.mxu0
    %v3437 = vadd.f32 %v3424, %v3436
    %v3438 = vpop.f32.mrf.mxu0
    %3439 = vdwg.mxu0
    %3440 = vmatpush.bf16.msra.mxu0 %v3116
    %3441 = vmatpush.bf16.msra.mxu0 %v3112
    %3442 = vmatpush.bf16.msra.mxu0 %v3108
    %3443 = vmatpush.bf16.msra.mxu0 %v3104
    %3444 = vmatpush.bf16.msra.mxu0 %v3100
    %3445 = vmatpush.bf16.msra.mxu0 %v3096
    %3446 = vmatpush.bf16.msra.mxu0 %v3092
    %3447 = vmatpush.bf16.msra.mxu0 %v3088
    %3448 = vmatmul.bf16.gmra.mxu0 %v2445
    %v3449 = vpop.f32.mrf.mxu0
    %v3450 = vadd.f32 %v3437, %v3449
    %v3451 = vpop.f32.mrf.mxu0
    %3452 = vdwg.mxu0
    %v3453 = vrot.slane %v3294, 4
    %v3454 = vadd.f32 %v3294, %v3453
    %v3455 = vrot.slane %v3454, 2
    %v3456 = vadd.f32 %v3454, %v3455
    %v3457 = vrot.slane %v3456, 1
    %v3458 = vadd.f32 %v3456, %v3457
    %v3459 = vrot.slane %v3346, 4
    %v3460 = vadd.f32 %v3346, %v3459
    %v3461 = vrot.slane %v3460, 2
    %v3462 = vadd.f32 %v3460, %v3461
    %v3463 = vrot.slane %v3462, 1
    %v3464 = vadd.f32 %v3462, %v3463
    %v3465 = vrot.slane %v3398, 4
    %v3466 = vadd.f32 %v3398, %v3465
    %v3467 = vrot.slane %v3466, 2
    %v3468 = vadd.f32 %v3466, %v3467
    %v3469 = vrot.slane %v3468, 1
    %v3470 = vadd.f32 %v3468, %v3469
    %v3471 = vrot.slane %v3450, 4
    %v3472 = vadd.f32 %v3450, %v3471
    %v3473 = vrot.slane %v3472, 2
    %v3474 = vadd.f32 %v3472, %v3473
    %v3475 = vrot.slane %v3474, 1
    %v3476 = vadd.f32 %v3474, %v3475
    %v3477 = vmul.f32 %v3458, %v1119
    %v3478 = vmul.f32 %v3464, %v1119
    %v3479 = vmul.f32 %v3470, %v1119
    %v3480 = vmul.f32 %v3476, %v1119
    %v3481 = vsub.f32 %v3294, %v3477
    %v3482 = vsub.f32 %v3346, %v3478
    %v3483 = vsub.f32 %v3398, %v3479
    %v3484 = vsub.f32 %v3450, %v3480
    %v3485 = vmul.f32 %v3481, %v3481
    %v3486 = vmul.f32 %v3482, %v3482
    %v3487 = vmul.f32 %v3483, %v3483
    %v3488 = vmul.f32 %v3484, %v3484
    %v3489 = vrot.slane %v3485, 4
    %v3490 = vadd.f32 %v3485, %v3489
    %v3491 = vrot.slane %v3490, 2
    %v3492 = vadd.f32 %v3490, %v3491
    %v3493 = vrot.slane %v3492, 1
    %v3494 = vadd.f32 %v3492, %v3493
    %v3495 = vrot.slane %v3486, 4
    %v3496 = vadd.f32 %v3486, %v3495
    %v3497 = vrot.slane %v3496, 2
    %v3498 = vadd.f32 %v3496, %v3497
    %v3499 = vrot.slane %v3498, 1
    %v3500 = vadd.f32 %v3498, %v3499
    %v3501 = vrot.slane %v3487, 4
    %v3502 = vadd.f32 %v3487, %v3501
    %v3503 = vrot.slane %v3502, 2
    %v3504 = vadd.f32 %v3502, %v3503
    %v3505 = vrot.slane %v3504, 1
    %v3506 = vadd.f32 %v3504, %v3505
    %v3507 = vrot.slane %v3488, 4
    %v3508 = vadd.f32 %v3488, %v3507
    %v3509 = vrot.slane %v3508, 2
    %v3510 = vadd.f32 %v3508, %v3509
    %v3511 = vrot.slane %v3510, 1
    %v3512 = vadd.f32 %v3510, %v3511
    %v3513 = vmul.f32 %v3494, %v1119
    %v3514 = vmul.f32 %v3500, %v1119
    %v3515 = vmul.f32 %v3506, %v1119
    %v3516 = vmul.f32 %v3512, %v1119
    %v3517 = vadd.f32 %v3513, 1e-05
    %v3518 = vadd.f32 %v3514, 1e-05
    %v3519 = vadd.f32 %v3515, 1e-05
    %v3520 = vadd.f32 %v3516, 1e-05
    %v3521 = vrsqrt.pop %v3517
    %v3522 = vmul.f32 %v3521, %v3517
    %v3523 = vmul.f32 %v3522, %v3521
    %v3524 = vmul.f32 0.5, %v3523
    %v3525 = vsub.f32 1.5, %v3524
    %v3526 = vmul.f32 %v3521, %v3525
    %vm3527 = vweird.f32 %v3517
    %vm3528 = vweird.f32 %v3521
    %vm3529 = vmor %vm3527, %vm3528
    %v3530 = vsel %vm3529, %v3521, %v3526
    %v3531 = vrsqrt.pop %v3518
    %v3532 = vmul.f32 %v3531, %v3518
    %v3533 = vmul.f32 %v3532, %v3531
    %v3534 = vmul.f32 0.5, %v3533
    %v3535 = vsub.f32 1.5, %v3534
    %v3536 = vmul.f32 %v3531, %v3535
    %vm3537 = vweird.f32 %v3518
    %vm3538 = vweird.f32 %v3531
    %vm3539 = vmor %vm3537, %vm3538
    %v3540 = vsel %vm3539, %v3531, %v3536
    %v3541 = vrsqrt.pop %v3519
    %v3542 = vmul.f32 %v3541, %v3519
    %v3543 = vmul.f32 %v3542, %v3541
    %v3544 = vmul.f32 0.5, %v3543
    %v3545 = vsub.f32 1.5, %v3544
    %v3546 = vmul.f32 %v3541, %v3545
    %vm3547 = vweird.f32 %v3519
    %vm3548 = vweird.f32 %v3541
    %vm3549 = vmor %vm3547, %vm3548
    %v3550 = vsel %vm3549, %v3541, %v3546
    %v3551 = vrsqrt.pop %v3520
    %v3552 = vmul.f32 %v3551, %v3520
    %v3553 = vmul.f32 %v3552, %v3551
    %v3554 = vmul.f32 0.5, %v3553
    %v3555 = vsub.f32 1.5, %v3554
    %v3556 = vmul.f32 %v3551, %v3555
    %vm3557 = vweird.f32 %v3520
    %vm3558 = vweird.f32 %v3551
    %vm3559 = vmor %vm3557, %vm3558
    %v3560 = vsel %vm3559, %v3551, %v3556
    %v3565 = vrot.slane %v3540, 7
    %v3566 = vrot.slane %v3550, 6
    %v3567 = vrot.slane %v3560, 5
    %v3568 = vsel %vm1211, %v3530, %v3565
    %v3569 = vsel %vm1213, %v3566, %v3567
    %v3570 = vsel %vm1215, %v3568, %v3569
    %v3572 = vmul.f32 %v2593, %v3570
    %v3574 = vperm.slane %v3572, 0
    %v3575 = vperm.slane %v3572, 1
    %v3576 = vperm.slane %v3572, 2
    %v3577 = vperm.slane %v3572, 3
    %v3582 = vmul.f32 %v3477, %v3574
    %v3583 = vmul.f32 %v3478, %v3575
    %v3584 = vmul.f32 %v3479, %v3576
    %v3585 = vmul.f32 %v3480, %v3577
    %v3590 = vrot.slane %v3583, 7
    %v3591 = vrot.slane %v3584, 6
    %v3592 = vrot.slane %v3585, 5
    %v3593 = vsel %vm1211, %v3582, %v3590
    %v3594 = vsel %vm1213, %v3591, %v3592
    %v3595 = vsel %vm1215, %v3593, %v3594
    %v3597 = vsub.f32 %v2595, %v3595
    %v3598 = vmul.f32 %v3294, %v3574
    %v3599 = vmul.f32 %v3346, %v3575
    %v3600 = vmul.f32 %v3398, %v3576
    %v3601 = vmul.f32 %v3450, %v3577
    %v3603 = vperm.slane %v3597, 0
    %v3604 = vperm.slane %v3597, 1
    %v3605 = vperm.slane %v3597, 2
    %v3606 = vperm.slane %v3597, 3
    %v3611 = vadd.f32 %v3598, %v3603
    %v3612 = vadd.f32 %v3599, %v3604
    %v3613 = vadd.f32 %v3600, %v3605
    %v3614 = vadd.f32 %v3601, %v3606
    %v3615 = vmax.f32 %v3611, 0.0
    %v3616 = vmax.f32 %v3612, 0.0
    %v3617 = vmax.f32 %v3613, 0.0
    %v3618 = vmax.f32 %v3614, 0.0
    %v3619 = vpack.c.bf16 %v3615, %v3615
    %v3620 = vpack.c.bf16 %v3616, %v3616
    %v3621 = vpack.c.bf16 %v3617, %v3617
    %v3622 = vpack.c.bf16 %v3618, %v3618
    %s3623 = sshll.u32 %s96, 4
    %3624 = dma.done %s81, %s3623
    %v3625 = vld [vmem:[%s80] sm:$0xff]
    %v3626 = vld [vmem:[%s80 + $0x8] sm:$0xff]
    %v3627 = vld [vmem:[%s80 + $0x10] sm:$0xff]
    %v3628 = vld [vmem:[%s80 + $0x18] sm:$0xff]
    %v3629 = vld [vmem:[%s80 + $0x20] sm:$0xff]
    %v3630 = vld [vmem:[%s80 + $0x28] sm:$0xff]
    %v3631 = vld [vmem:[%s80 + $0x30] sm:$0xff]
    %v3632 = vld [vmem:[%s80 + $0x38] sm:$0xff]
    %v3633 = vld [vmem:[%s80 + $0x40] sm:$0xff]
    %v3634 = vld [vmem:[%s80 + $0x48] sm:$0xff]
    %v3635 = vld [vmem:[%s80 + $0x50] sm:$0xff]
    %v3636 = vld [vmem:[%s80 + $0x58] sm:$0xff]
    %v3637 = vld [vmem:[%s80 + $0x60] sm:$0xff]
    %v3638 = vld [vmem:[%s80 + $0x68] sm:$0xff]
    %v3639 = vld [vmem:[%s80 + $0x70] sm:$0xff]
    %v3640 = vld [vmem:[%s80 + $0x78] sm:$0xff]
    %v3641 = vld [vmem:[%s80 + $0x80] sm:$0xff]
    %v3642 = vld [vmem:[%s80 + $0x88] sm:$0xff]
    %v3643 = vld [vmem:[%s80 + $0x90] sm:$0xff]
    %v3644 = vld [vmem:[%s80 + $0x98] sm:$0xff]
    %v3645 = vld [vmem:[%s80 + $0xa0] sm:$0xff]
    %v3646 = vld [vmem:[%s80 + $0xa8] sm:$0xff]
    %v3647 = vld [vmem:[%s80 + $0xb0] sm:$0xff]
    %v3648 = vld [vmem:[%s80 + $0xb8] sm:$0xff]
    %v3649 = vld [vmem:[%s80 + $0xc0] sm:$0xff]
    %v3650 = vld [vmem:[%s80 + $0xc8] sm:$0xff]
    %v3651 = vld [vmem:[%s80 + $0xd0] sm:$0xff]
    %v3652 = vld [vmem:[%s80 + $0xd8] sm:$0xff]
    %v3653 = vld [vmem:[%s80 + $0xe0] sm:$0xff]
    %v3654 = vld [vmem:[%s80 + $0xe8] sm:$0xff]
    %v3655 = vld [vmem:[%s80 + $0xf0] sm:$0xff]
    %v3656 = vld [vmem:[%s80 + $0xf8] sm:$0xff]
    %v3657 = vld [vmem:[%s80 + $0x100] sm:$0xff]
    %v3658 = vld [vmem:[%s80 + $0x108] sm:$0xff]
    %v3659 = vld [vmem:[%s80 + $0x110] sm:$0xff]
    %v3660 = vld [vmem:[%s80 + $0x118] sm:$0xff]
    %v3661 = vld [vmem:[%s80 + $0x120] sm:$0xff]
    %v3662 = vld [vmem:[%s80 + $0x128] sm:$0xff]
    %v3663 = vld [vmem:[%s80 + $0x130] sm:$0xff]
    %v3664 = vld [vmem:[%s80 + $0x138] sm:$0xff]
    %v3665 = vld [vmem:[%s80 + $0x140] sm:$0xff]
    %v3666 = vld [vmem:[%s80 + $0x148] sm:$0xff]
    %v3667 = vld [vmem:[%s80 + $0x150] sm:$0xff]
    %v3668 = vld [vmem:[%s80 + $0x158] sm:$0xff]
    %v3669 = vld [vmem:[%s80 + $0x160] sm:$0xff]
    %v3670 = vld [vmem:[%s80 + $0x168] sm:$0xff]
    %v3671 = vld [vmem:[%s80 + $0x170] sm:$0xff]
    %v3672 = vld [vmem:[%s80 + $0x178] sm:$0xff]
    %v3673 = vld [vmem:[%s80 + $0x180] sm:$0xff]
    %v3674 = vld [vmem:[%s80 + $0x188] sm:$0xff]
    %v3675 = vld [vmem:[%s80 + $0x190] sm:$0xff]
    %v3676 = vld [vmem:[%s80 + $0x198] sm:$0xff]
    %v3677 = vld [vmem:[%s80 + $0x1a0] sm:$0xff]
    %v3678 = vld [vmem:[%s80 + $0x1a8] sm:$0xff]
    %v3679 = vld [vmem:[%s80 + $0x1b0] sm:$0xff]
    %v3680 = vld [vmem:[%s80 + $0x1b8] sm:$0xff]
    %v3681 = vld [vmem:[%s80 + $0x1c0] sm:$0xff]
    %v3682 = vld [vmem:[%s80 + $0x1c8] sm:$0xff]
    %v3683 = vld [vmem:[%s80 + $0x1d0] sm:$0xff]
    %v3684 = vld [vmem:[%s80 + $0x1d8] sm:$0xff]
    %v3685 = vld [vmem:[%s80 + $0x1e0] sm:$0xff]
    %v3686 = vld [vmem:[%s80 + $0x1e8] sm:$0xff]
    %v3687 = vld [vmem:[%s80 + $0x1f0] sm:$0xff]
    %v3688 = vld [vmem:[%s80 + $0x1f8] sm:$0xff]
    %v3689 = vld [vmem:[%s80 + $0x200] sm:$0xff]
    %v3690 = vld [vmem:[%s80 + $0x208] sm:$0xff]
    %v3691 = vld [vmem:[%s80 + $0x210] sm:$0xff]
    %v3692 = vld [vmem:[%s80 + $0x218] sm:$0xff]
    %v3693 = vld [vmem:[%s80 + $0x220] sm:$0xff]
    %v3694 = vld [vmem:[%s80 + $0x228] sm:$0xff]
    %v3695 = vld [vmem:[%s80 + $0x230] sm:$0xff]
    %v3696 = vld [vmem:[%s80 + $0x238] sm:$0xff]
    %v3697 = vld [vmem:[%s80 + $0x240] sm:$0xff]
    %v3698 = vld [vmem:[%s80 + $0x248] sm:$0xff]
    %v3699 = vld [vmem:[%s80 + $0x250] sm:$0xff]
    %v3700 = vld [vmem:[%s80 + $0x258] sm:$0xff]
    %v3701 = vld [vmem:[%s80 + $0x260] sm:$0xff]
    %v3702 = vld [vmem:[%s80 + $0x268] sm:$0xff]
    %v3703 = vld [vmem:[%s80 + $0x270] sm:$0xff]
    %v3704 = vld [vmem:[%s80 + $0x278] sm:$0xff]
    %v3705 = vld [vmem:[%s80 + $0x280] sm:$0xff]
    %v3706 = vld [vmem:[%s80 + $0x288] sm:$0xff]
    %v3707 = vld [vmem:[%s80 + $0x290] sm:$0xff]
    %v3708 = vld [vmem:[%s80 + $0x298] sm:$0xff]
    %v3709 = vld [vmem:[%s80 + $0x2a0] sm:$0xff]
    %v3710 = vld [vmem:[%s80 + $0x2a8] sm:$0xff]
    %v3711 = vld [vmem:[%s80 + $0x2b0] sm:$0xff]
    %v3712 = vld [vmem:[%s80 + $0x2b8] sm:$0xff]
    %v3713 = vld [vmem:[%s80 + $0x2c0] sm:$0xff]
    %v3714 = vld [vmem:[%s80 + $0x2c8] sm:$0xff]
    %v3715 = vld [vmem:[%s80 + $0x2d0] sm:$0xff]
    %v3716 = vld [vmem:[%s80 + $0x2d8] sm:$0xff]
    %v3717 = vld [vmem:[%s80 + $0x2e0] sm:$0xff]
    %v3718 = vld [vmem:[%s80 + $0x2e8] sm:$0xff]
    %v3719 = vld [vmem:[%s80 + $0x2f0] sm:$0xff]
    %v3720 = vld [vmem:[%s80 + $0x2f8] sm:$0xff]
    %v3721 = vld [vmem:[%s80 + $0x300] sm:$0xff]
    %v3722 = vld [vmem:[%s80 + $0x308] sm:$0xff]
    %v3723 = vld [vmem:[%s80 + $0x310] sm:$0xff]
    %v3724 = vld [vmem:[%s80 + $0x318] sm:$0xff]
    %v3725 = vld [vmem:[%s80 + $0x320] sm:$0xff]
    %v3726 = vld [vmem:[%s80 + $0x328] sm:$0xff]
    %v3727 = vld [vmem:[%s80 + $0x330] sm:$0xff]
    %v3728 = vld [vmem:[%s80 + $0x338] sm:$0xff]
    %v3729 = vld [vmem:[%s80 + $0x340] sm:$0xff]
    %v3730 = vld [vmem:[%s80 + $0x348] sm:$0xff]
    %v3731 = vld [vmem:[%s80 + $0x350] sm:$0xff]
    %v3732 = vld [vmem:[%s80 + $0x358] sm:$0xff]
    %v3733 = vld [vmem:[%s80 + $0x360] sm:$0xff]
    %v3734 = vld [vmem:[%s80 + $0x368] sm:$0xff]
    %v3735 = vld [vmem:[%s80 + $0x370] sm:$0xff]
    %v3736 = vld [vmem:[%s80 + $0x378] sm:$0xff]
    %v3737 = vld [vmem:[%s80 + $0x380] sm:$0xff]
    %v3738 = vld [vmem:[%s80 + $0x388] sm:$0xff]
    %v3739 = vld [vmem:[%s80 + $0x390] sm:$0xff]
    %v3740 = vld [vmem:[%s80 + $0x398] sm:$0xff]
    %v3741 = vld [vmem:[%s80 + $0x3a0] sm:$0xff]
    %v3742 = vld [vmem:[%s80 + $0x3a8] sm:$0xff]
    %v3743 = vld [vmem:[%s80 + $0x3b0] sm:$0xff]
    %v3744 = vld [vmem:[%s80 + $0x3b8] sm:$0xff]
    %v3745 = vld [vmem:[%s80 + $0x3c0] sm:$0xff]
    %v3746 = vld [vmem:[%s80 + $0x3c8] sm:$0xff]
    %v3747 = vld [vmem:[%s80 + $0x3d0] sm:$0xff]
    %v3748 = vld [vmem:[%s80 + $0x3d8] sm:$0xff]
    %v3749 = vld [vmem:[%s80 + $0x3e0] sm:$0xff]
    %v3750 = vld [vmem:[%s80 + $0x3e8] sm:$0xff]
    %v3751 = vld [vmem:[%s80 + $0x3f0] sm:$0xff]
    %v3752 = vld [vmem:[%s80 + $0x3f8] sm:$0xff]
    %s3753 = scalar_lea.vmem [#allocation6], 3
    %v3754 = vld [vmem:[%s3753] ss:$8 sm:$0xf]
    %s3755 = scalar_lea.vmem [#allocation6], 7
    %v3756 = vld [vmem:[%s3755] ss:$8 sm:$0xf]
    %s3757 = scalar_lea.vmem [#allocation6], 35
    %v3758 = vld [vmem:[%s3757] ss:$8 sm:$0xf]
    %v3760 = vperm.slane %v3754, 0
    %v3761 = vperm.slane %v3754, 1
    %v3762 = vperm.slane %v3754, 2
    %v3763 = vperm.slane %v3754, 3
    %v3896 = vunpack.c.l.b16 %v3625
    %v3897 = vunpack.c.h.b16 %v3625
    %v3898 = vunpack.c.l.b16 %v3626
    %v3899 = vunpack.c.h.b16 %v3626
    %v3900 = vunpack.c.l.b16 %v3627
    %v3901 = vunpack.c.h.b16 %v3627
    %v3902 = vunpack.c.l.b16 %v3628
    %v3903 = vunpack.c.h.b16 %v3628
    %v3904 = vunpack.c.l.b16 %v3629
    %v3905 = vunpack.c.h.b16 %v3629
    %v3906 = vunpack.c.l.b16 %v3630
    %v3907 = vunpack.c.h.b16 %v3630
    %v3908 = vunpack.c.l.b16 %v3631
    %v3909 = vunpack.c.h.b16 %v3631
    %v3910 = vunpack.c.l.b16 %v3632
    %v3911 = vunpack.c.h.b16 %v3632
    %v3912 = vunpack.c.l.b16 %v3633
    %v3913 = vunpack.c.h.b16 %v3633
    %v3914 = vunpack.c.l.b16 %v3634
    %v3915 = vunpack.c.h.b16 %v3634
    %v3916 = vunpack.c.l.b16 %v3635
    %v3917 = vunpack.c.h.b16 %v3635
    %v3918 = vunpack.c.l.b16 %v3636
    %v3919 = vunpack.c.h.b16 %v3636
    %v3920 = vunpack.c.l.b16 %v3637
    %v3921 = vunpack.c.h.b16 %v3637
    %v3922 = vunpack.c.l.b16 %v3638
    %v3923 = vunpack.c.h.b16 %v3638
    %v3924 = vunpack.c.l.b16 %v3639
    %v3925 = vunpack.c.h.b16 %v3639
    %v3926 = vunpack.c.l.b16 %v3640
    %v3927 = vunpack.c.h.b16 %v3640
    %v3928 = vunpack.c.l.b16 %v3641
    %v3929 = vunpack.c.h.b16 %v3641
    %v3930 = vunpack.c.l.b16 %v3642
    %v3931 = vunpack.c.h.b16 %v3642
    %v3932 = vunpack.c.l.b16 %v3643
    %v3933 = vunpack.c.h.b16 %v3643
    %v3934 = vunpack.c.l.b16 %v3644
    %v3935 = vunpack.c.h.b16 %v3644
    %v3936 = vunpack.c.l.b16 %v3645
    %v3937 = vunpack.c.h.b16 %v3645
    %v3938 = vunpack.c.l.b16 %v3646
    %v3939 = vunpack.c.h.b16 %v3646
    %v3940 = vunpack.c.l.b16 %v3647
    %v3941 = vunpack.c.h.b16 %v3647
    %v3942 = vunpack.c.l.b16 %v3648
    %v3943 = vunpack.c.h.b16 %v3648
    %v3944 = vunpack.c.l.b16 %v3649
    %v3945 = vunpack.c.h.b16 %v3649
    %v3946 = vunpack.c.l.b16 %v3650
    %v3947 = vunpack.c.h.b16 %v3650
    %v3948 = vunpack.c.l.b16 %v3651
    %v3949 = vunpack.c.h.b16 %v3651
    %v3950 = vunpack.c.l.b16 %v3652
    %v3951 = vunpack.c.h.b16 %v3652
    %v3952 = vunpack.c.l.b16 %v3653
    %v3953 = vunpack.c.h.b16 %v3653
    %v3954 = vunpack.c.l.b16 %v3654
    %v3955 = vunpack.c.h.b16 %v3654
    %v3956 = vunpack.c.l.b16 %v3655
    %v3957 = vunpack.c.h.b16 %v3655
    %v3958 = vunpack.c.l.b16 %v3656
    %v3959 = vunpack.c.h.b16 %v3656
    %v3960 = vunpack.c.l.b16 %v3657
    %v3961 = vunpack.c.h.b16 %v3657
    %v3962 = vunpack.c.l.b16 %v3658
    %v3963 = vunpack.c.h.b16 %v3658
    %v3964 = vunpack.c.l.b16 %v3659
    %v3965 = vunpack.c.h.b16 %v3659
    %v3966 = vunpack.c.l.b16 %v3660
    %v3967 = vunpack.c.h.b16 %v3660
    %v3968 = vunpack.c.l.b16 %v3661
    %v3969 = vunpack.c.h.b16 %v3661
    %v3970 = vunpack.c.l.b16 %v3662
    %v3971 = vunpack.c.h.b16 %v3662
    %v3972 = vunpack.c.l.b16 %v3663
    %v3973 = vunpack.c.h.b16 %v3663
    %v3974 = vunpack.c.l.b16 %v3664
    %v3975 = vunpack.c.h.b16 %v3664
    %v3976 = vunpack.c.l.b16 %v3665
    %v3977 = vunpack.c.h.b16 %v3665
    %v3978 = vunpack.c.l.b16 %v3666
    %v3979 = vunpack.c.h.b16 %v3666
    %v3980 = vunpack.c.l.b16 %v3667
    %v3981 = vunpack.c.h.b16 %v3667
    %v3982 = vunpack.c.l.b16 %v3668
    %v3983 = vunpack.c.h.b16 %v3668
    %v3984 = vunpack.c.l.b16 %v3669
    %v3985 = vunpack.c.h.b16 %v3669
    %v3986 = vunpack.c.l.b16 %v3670
    %v3987 = vunpack.c.h.b16 %v3670
    %v3988 = vunpack.c.l.b16 %v3671
    %v3989 = vunpack.c.h.b16 %v3671
    %v3990 = vunpack.c.l.b16 %v3672
    %v3991 = vunpack.c.h.b16 %v3672
    %v3992 = vunpack.c.l.b16 %v3673
    %v3993 = vunpack.c.h.b16 %v3673
    %v3994 = vunpack.c.l.b16 %v3674
    %v3995 = vunpack.c.h.b16 %v3674
    %v3996 = vunpack.c.l.b16 %v3675
    %v3997 = vunpack.c.h.b16 %v3675
    %v3998 = vunpack.c.l.b16 %v3676
    %v3999 = vunpack.c.h.b16 %v3676
    %v4000 = vunpack.c.l.b16 %v3677
    %v4001 = vunpack.c.h.b16 %v3677
    %v4002 = vunpack.c.l.b16 %v3678
    %v4003 = vunpack.c.h.b16 %v3678
    %v4004 = vunpack.c.l.b16 %v3679
    %v4005 = vunpack.c.h.b16 %v3679
    %v4006 = vunpack.c.l.b16 %v3680
    %v4007 = vunpack.c.h.b16 %v3680
    %v4008 = vunpack.c.l.b16 %v3681
    %v4009 = vunpack.c.h.b16 %v3681
    %v4010 = vunpack.c.l.b16 %v3682
    %v4011 = vunpack.c.h.b16 %v3682
    %v4012 = vunpack.c.l.b16 %v3683
    %v4013 = vunpack.c.h.b16 %v3683
    %v4014 = vunpack.c.l.b16 %v3684
    %v4015 = vunpack.c.h.b16 %v3684
    %v4016 = vunpack.c.l.b16 %v3685
    %v4017 = vunpack.c.h.b16 %v3685
    %v4018 = vunpack.c.l.b16 %v3686
    %v4019 = vunpack.c.h.b16 %v3686
    %v4020 = vunpack.c.l.b16 %v3687
    %v4021 = vunpack.c.h.b16 %v3687
    %v4022 = vunpack.c.l.b16 %v3688
    %v4023 = vunpack.c.h.b16 %v3688
    %v4024 = vunpack.c.l.b16 %v3689
    %v4025 = vunpack.c.h.b16 %v3689
    %v4026 = vunpack.c.l.b16 %v3690
    %v4027 = vunpack.c.h.b16 %v3690
    %v4028 = vunpack.c.l.b16 %v3691
    %v4029 = vunpack.c.h.b16 %v3691
    %v4030 = vunpack.c.l.b16 %v3692
    %v4031 = vunpack.c.h.b16 %v3692
    %v4032 = vunpack.c.l.b16 %v3693
    %v4033 = vunpack.c.h.b16 %v3693
    %v4034 = vunpack.c.l.b16 %v3694
    %v4035 = vunpack.c.h.b16 %v3694
    %v4036 = vunpack.c.l.b16 %v3695
    %v4037 = vunpack.c.h.b16 %v3695
    %v4038 = vunpack.c.l.b16 %v3696
    %v4039 = vunpack.c.h.b16 %v3696
    %v4040 = vunpack.c.l.b16 %v3697
    %v4041 = vunpack.c.h.b16 %v3697
    %v4042 = vunpack.c.l.b16 %v3698
    %v4043 = vunpack.c.h.b16 %v3698
    %v4044 = vunpack.c.l.b16 %v3699
    %v4045 = vunpack.c.h.b16 %v3699
    %v4046 = vunpack.c.l.b16 %v3700
    %v4047 = vunpack.c.h.b16 %v3700
    %v4048 = vunpack.c.l.b16 %v3701
    %v4049 = vunpack.c.h.b16 %v3701
    %v4050 = vunpack.c.l.b16 %v3702
    %v4051 = vunpack.c.h.b16 %v3702
    %v4052 = vunpack.c.l.b16 %v3703
    %v4053 = vunpack.c.h.b16 %v3703
    %v4054 = vunpack.c.l.b16 %v3704
    %v4055 = vunpack.c.h.b16 %v3704
    %v4056 = vunpack.c.l.b16 %v3705
    %v4057 = vunpack.c.h.b16 %v3705
    %v4058 = vunpack.c.l.b16 %v3706
    %v4059 = vunpack.c.h.b16 %v3706
    %v4060 = vunpack.c.l.b16 %v3707
    %v4061 = vunpack.c.h.b16 %v3707
    %v4062 = vunpack.c.l.b16 %v3708
    %v4063 = vunpack.c.h.b16 %v3708
    %v4064 = vunpack.c.l.b16 %v3709
    %v4065 = vunpack.c.h.b16 %v3709
    %v4066 = vunpack.c.l.b16 %v3710
    %v4067 = vunpack.c.h.b16 %v3710
    %v4068 = vunpack.c.l.b16 %v3711
    %v4069 = vunpack.c.h.b16 %v3711
    %v4070 = vunpack.c.l.b16 %v3712
    %v4071 = vunpack.c.h.b16 %v3712
    %v4072 = vunpack.c.l.b16 %v3713
    %v4073 = vunpack.c.h.b16 %v3713
    %v4074 = vunpack.c.l.b16 %v3714
    %v4075 = vunpack.c.h.b16 %v3714
    %v4076 = vunpack.c.l.b16 %v3715
    %v4077 = vunpack.c.h.b16 %v3715
    %v4078 = vunpack.c.l.b16 %v3716
    %v4079 = vunpack.c.h.b16 %v3716
    %v4080 = vunpack.c.l.b16 %v3717
    %v4081 = vunpack.c.h.b16 %v3717
    %v4082 = vunpack.c.l.b16 %v3718
    %v4083 = vunpack.c.h.b16 %v3718
    %v4084 = vunpack.c.l.b16 %v3719
    %v4085 = vunpack.c.h.b16 %v3719
    %v4086 = vunpack.c.l.b16 %v3720
    %v4087 = vunpack.c.h.b16 %v3720
    %v4088 = vunpack.c.l.b16 %v3721
    %v4089 = vunpack.c.h.b16 %v3721
    %v4090 = vunpack.c.l.b16 %v3722
    %v4091 = vunpack.c.h.b16 %v3722
    %v4092 = vunpack.c.l.b16 %v3723
    %v4093 = vunpack.c.h.b16 %v3723
    %v4094 = vunpack.c.l.b16 %v3724
    %v4095 = vunpack.c.h.b16 %v3724
    %v4096 = vunpack.c.l.b16 %v3725
    %v4097 = vunpack.c.h.b16 %v3725
    %v4098 = vunpack.c.l.b16 %v3726
    %v4099 = vunpack.c.h.b16 %v3726
    %v4100 = vunpack.c.l.b16 %v3727
    %v4101 = vunpack.c.h.b16 %v3727
    %v4102 = vunpack.c.l.b16 %v3728
    %v4103 = vunpack.c.h.b16 %v3728
    %v4104 = vunpack.c.l.b16 %v3729
    %v4105 = vunpack.c.h.b16 %v3729
    %v4106 = vunpack.c.l.b16 %v3730
    %v4107 = vunpack.c.h.b16 %v3730
    %v4108 = vunpack.c.l.b16 %v3731
    %v4109 = vunpack.c.h.b16 %v3731
    %v4110 = vunpack.c.l.b16 %v3732
    %v4111 = vunpack.c.h.b16 %v3732
    %v4112 = vunpack.c.l.b16 %v3733
    %v4113 = vunpack.c.h.b16 %v3733
    %v4114 = vunpack.c.l.b16 %v3734
    %v4115 = vunpack.c.h.b16 %v3734
    %v4116 = vunpack.c.l.b16 %v3735
    %v4117 = vunpack.c.h.b16 %v3735
    %v4118 = vunpack.c.l.b16 %v3736
    %v4119 = vunpack.c.h.b16 %v3736
    %v4120 = vunpack.c.l.b16 %v3737
    %v4121 = vunpack.c.h.b16 %v3737
    %v4122 = vunpack.c.l.b16 %v3738
    %v4123 = vunpack.c.h.b16 %v3738
    %v4124 = vunpack.c.l.b16 %v3739
    %v4125 = vunpack.c.h.b16 %v3739
    %v4126 = vunpack.c.l.b16 %v3740
    %v4127 = vunpack.c.h.b16 %v3740
    %v4128 = vunpack.c.l.b16 %v3741
    %v4129 = vunpack.c.h.b16 %v3741
    %v4130 = vunpack.c.l.b16 %v3742
    %v4131 = vunpack.c.h.b16 %v3742
    %v4132 = vunpack.c.l.b16 %v3743
    %v4133 = vunpack.c.h.b16 %v3743
    %v4134 = vunpack.c.l.b16 %v3744
    %v4135 = vunpack.c.h.b16 %v3744
    %v4136 = vunpack.c.l.b16 %v3745
    %v4137 = vunpack.c.h.b16 %v3745
    %v4138 = vunpack.c.l.b16 %v3746
    %v4139 = vunpack.c.h.b16 %v3746
    %v4140 = vunpack.c.l.b16 %v3747
    %v4141 = vunpack.c.h.b16 %v3747
    %v4142 = vunpack.c.l.b16 %v3748
    %v4143 = vunpack.c.h.b16 %v3748
    %v4144 = vunpack.c.l.b16 %v3749
    %v4145 = vunpack.c.h.b16 %v3749
    %v4146 = vunpack.c.l.b16 %v3750
    %v4147 = vunpack.c.h.b16 %v3750
    %v4148 = vunpack.c.l.b16 %v3751
    %v4149 = vunpack.c.h.b16 %v3751
    %v4150 = vunpack.c.l.b16 %v3752
    %v4151 = vunpack.c.h.b16 %v3752
    %v4152 = vpack.c.b16 %v3900, %v3896
    %v4153 = vpack.c.b16 %v3901, %v3897
    %v4154 = vpack.c.b16 %v3902, %v3898
    %v4155 = vpack.c.b16 %v3903, %v3899
    %v4156 = vpack.c.b16 %v3908, %v3904
    %v4157 = vpack.c.b16 %v3909, %v3905
    %v4158 = vpack.c.b16 %v3910, %v3906
    %v4159 = vpack.c.b16 %v3911, %v3907
    %v4160 = vpack.c.b16 %v3916, %v3912
    %v4161 = vpack.c.b16 %v3917, %v3913
    %v4162 = vpack.c.b16 %v3918, %v3914
    %v4163 = vpack.c.b16 %v3919, %v3915
    %v4164 = vpack.c.b16 %v3924, %v3920
    %v4165 = vpack.c.b16 %v3925, %v3921
    %v4166 = vpack.c.b16 %v3926, %v3922
    %v4167 = vpack.c.b16 %v3927, %v3923
    %v4168 = vpack.c.b16 %v3932, %v3928
    %v4169 = vpack.c.b16 %v3933, %v3929
    %v4170 = vpack.c.b16 %v3934, %v3930
    %v4171 = vpack.c.b16 %v3935, %v3931
    %v4172 = vpack.c.b16 %v3940, %v3936
    %v4173 = vpack.c.b16 %v3941, %v3937
    %v4174 = vpack.c.b16 %v3942, %v3938
    %v4175 = vpack.c.b16 %v3943, %v3939
    %v4176 = vpack.c.b16 %v3948, %v3944
    %v4177 = vpack.c.b16 %v3949, %v3945
    %v4178 = vpack.c.b16 %v3950, %v3946
    %v4179 = vpack.c.b16 %v3951, %v3947
    %v4180 = vpack.c.b16 %v3956, %v3952
    %v4181 = vpack.c.b16 %v3957, %v3953
    %v4182 = vpack.c.b16 %v3958, %v3954
    %v4183 = vpack.c.b16 %v3959, %v3955
    %v4184 = vpack.c.b16 %v3964, %v3960
    %v4185 = vpack.c.b16 %v3965, %v3961
    %v4186 = vpack.c.b16 %v3966, %v3962
    %v4187 = vpack.c.b16 %v3967, %v3963
    %v4188 = vpack.c.b16 %v3972, %v3968
    %v4189 = vpack.c.b16 %v3973, %v3969
    %v4190 = vpack.c.b16 %v3974, %v3970
    %v4191 = vpack.c.b16 %v3975, %v3971
    %v4192 = vpack.c.b16 %v3980, %v3976
    %v4193 = vpack.c.b16 %v3981, %v3977
    %v4194 = vpack.c.b16 %v3982, %v3978
    %v4195 = vpack.c.b16 %v3983, %v3979
    %v4196 = vpack.c.b16 %v3988, %v3984
    %v4197 = vpack.c.b16 %v3989, %v3985
    %v4198 = vpack.c.b16 %v3990, %v3986
    %v4199 = vpack.c.b16 %v3991, %v3987
    %v4200 = vpack.c.b16 %v3996, %v3992
    %v4201 = vpack.c.b16 %v3997, %v3993
    %v4202 = vpack.c.b16 %v3998, %v3994
    %v4203 = vpack.c.b16 %v3999, %v3995
    %v4204 = vpack.c.b16 %v4004, %v4000
    %v4205 = vpack.c.b16 %v4005, %v4001
    %v4206 = vpack.c.b16 %v4006, %v4002
    %v4207 = vpack.c.b16 %v4007, %v4003
    %v4208 = vpack.c.b16 %v4012, %v4008
    %v4209 = vpack.c.b16 %v4013, %v4009
    %v4210 = vpack.c.b16 %v4014, %v4010
    %v4211 = vpack.c.b16 %v4015, %v4011
    %v4212 = vpack.c.b16 %v4020, %v4016
    %v4213 = vpack.c.b16 %v4021, %v4017
    %v4214 = vpack.c.b16 %v4022, %v4018
    %v4215 = vpack.c.b16 %v4023, %v4019
    %v4216 = vpack.c.b16 %v4028, %v4024
    %v4217 = vpack.c.b16 %v4029, %v4025
    %v4218 = vpack.c.b16 %v4030, %v4026
    %v4219 = vpack.c.b16 %v4031, %v4027
    %v4220 = vpack.c.b16 %v4036, %v4032
    %v4221 = vpack.c.b16 %v4037, %v4033
    %v4222 = vpack.c.b16 %v4038, %v4034
    %v4223 = vpack.c.b16 %v4039, %v4035
    %v4224 = vpack.c.b16 %v4044, %v4040
    %v4225 = vpack.c.b16 %v4045, %v4041
    %v4226 = vpack.c.b16 %v4046, %v4042
    %v4227 = vpack.c.b16 %v4047, %v4043
    %v4228 = vpack.c.b16 %v4052, %v4048
    %v4229 = vpack.c.b16 %v4053, %v4049
    %v4230 = vpack.c.b16 %v4054, %v4050
    %v4231 = vpack.c.b16 %v4055, %v4051
    %v4232 = vpack.c.b16 %v4060, %v4056
    %v4233 = vpack.c.b16 %v4061, %v4057
    %v4234 = vpack.c.b16 %v4062, %v4058
    %v4235 = vpack.c.b16 %v4063, %v4059
    %v4236 = vpack.c.b16 %v4068, %v4064
    %v4237 = vpack.c.b16 %v4069, %v4065
    %v4238 = vpack.c.b16 %v4070, %v4066
    %v4239 = vpack.c.b16 %v4071, %v4067
    %v4240 = vpack.c.b16 %v4076, %v4072
    %v4241 = vpack.c.b16 %v4077, %v4073
    %v4242 = vpack.c.b16 %v4078, %v4074
    %v4243 = vpack.c.b16 %v4079, %v4075
    %v4244 = vpack.c.b16 %v4084, %v4080
    %v4245 = vpack.c.b16 %v4085, %v4081
    %v4246 = vpack.c.b16 %v4086, %v4082
    %v4247 = vpack.c.b16 %v4087, %v4083
    %v4248 = vpack.c.b16 %v4092, %v4088
    %v4249 = vpack.c.b16 %v4093, %v4089
    %v4250 = vpack.c.b16 %v4094, %v4090
    %v4251 = vpack.c.b16 %v4095, %v4091
    %v4252 = vpack.c.b16 %v4100, %v4096
    %v4253 = vpack.c.b16 %v4101, %v4097
    %v4254 = vpack.c.b16 %v4102, %v4098
    %v4255 = vpack.c.b16 %v4103, %v4099
    %v4256 = vpack.c.b16 %v4108, %v4104
    %v4257 = vpack.c.b16 %v4109, %v4105
    %v4258 = vpack.c.b16 %v4110, %v4106
    %v4259 = vpack.c.b16 %v4111, %v4107
    %v4260 = vpack.c.b16 %v4116, %v4112
    %v4261 = vpack.c.b16 %v4117, %v4113
    %v4262 = vpack.c.b16 %v4118, %v4114
    %v4263 = vpack.c.b16 %v4119, %v4115
    %v4264 = vpack.c.b16 %v4124, %v4120
    %v4265 = vpack.c.b16 %v4125, %v4121
    %v4266 = vpack.c.b16 %v4126, %v4122
    %v4267 = vpack.c.b16 %v4127, %v4123
    %v4268 = vpack.c.b16 %v4132, %v4128
    %v4269 = vpack.c.b16 %v4133, %v4129
    %v4270 = vpack.c.b16 %v4134, %v4130
    %v4271 = vpack.c.b16 %v4135, %v4131
    %v4272 = vpack.c.b16 %v4140, %v4136
    %v4273 = vpack.c.b16 %v4141, %v4137
    %v4274 = vpack.c.b16 %v4142, %v4138
    %v4275 = vpack.c.b16 %v4143, %v4139
    %v4276 = vpack.c.b16 %v4148, %v4144
    %v4277 = vpack.c.b16 %v4149, %v4145
    %v4278 = vpack.c.b16 %v4150, %v4146
    %v4279 = vpack.c.b16 %v4151, %v4147
    %4408 = vmatpush.bf16.msra.mxu0 %v4180
    %4409 = vmatpush.bf16.msra.mxu0 %v4176
    %4410 = vmatpush.bf16.msra.mxu0 %v4172
    %4411 = vmatpush.bf16.msra.mxu0 %v4168
    %4412 = vmatpush.bf16.msra.mxu0 %v4164
    %4413 = vmatpush.bf16.msra.mxu0 %v4160
    %4414 = vmatpush.bf16.msra.mxu0 %v4156
    %4415 = vmatpush.bf16.msra.mxu0 %v4152
    %4416 = vmatmul.bf16.gmra.mxu0 %v3619
    %v4417 = vpop.f32.mrf.mxu0
    %v4418 = vadd.f32 %v3760, %v4417
    %v4419 = vpop.f32.mrf.mxu0
    %4420 = vdwg.mxu0
    %4421 = vmatpush.bf16.msra.mxu0 %v4212
    %4422 = vmatpush.bf16.msra.mxu0 %v4208
    %4423 = vmatpush.bf16.msra.mxu0 %v4204
    %4424 = vmatpush.bf16.msra.mxu0 %v4200
    %4425 = vmatpush.bf16.msra.mxu0 %v4196
    %4426 = vmatpush.bf16.msra.mxu0 %v4192
    %4427 = vmatpush.bf16.msra.mxu0 %v4188
    %4428 = vmatpush.bf16.msra.mxu0 %v4184
    %4429 = vmatmul.bf16.gmra.mxu0 %v3620
    %v4430 = vpop.f32.mrf.mxu0
    %v4431 = vadd.f32 %v4418, %v4430
    %v4432 = vpop.f32.mrf.mxu0
    %4433 = vdwg.mxu0
    %4434 = vmatpush.bf16.msra.mxu0 %v4244
    %4435 = vmatpush.bf16.msra.mxu0 %v4240
    %4436 = vmatpush.bf16.msra.mxu0 %v4236
    %4437 = vmatpush.bf16.msra.mxu0 %v4232
    %4438 = vmatpush.bf16.msra.mxu0 %v4228
    %4439 = vmatpush.bf16.msra.mxu0 %v4224
    %4440 = vmatpush.bf16.msra.mxu0 %v4220
    %4441 = vmatpush.bf16.msra.mxu0 %v4216
    %4442 = vmatmul.bf16.gmra.mxu0 %v3621
    %v4443 = vpop.f32.mrf.mxu0
    %v4444 = vadd.f32 %v4431, %v4443
    %v4445 = vpop.f32.mrf.mxu0
    %4446 = vdwg.mxu0
    %4447 = vmatpush.bf16.msra.mxu0 %v4276
    %4448 = vmatpush.bf16.msra.mxu0 %v4272
    %4449 = vmatpush.bf16.msra.mxu0 %v4268
    %4450 = vmatpush.bf16.msra.mxu0 %v4264
    %4451 = vmatpush.bf16.msra.mxu0 %v4260
    %4452 = vmatpush.bf16.msra.mxu0 %v4256
    %4453 = vmatpush.bf16.msra.mxu0 %v4252
    %4454 = vmatpush.bf16.msra.mxu0 %v4248
    %4455 = vmatmul.bf16.gmra.mxu0 %v3622
    %v4456 = vpop.f32.mrf.mxu0
    %v4457 = vadd.f32 %v4444, %v4456
    %v4458 = vpop.f32.mrf.mxu0
    %4459 = vdwg.mxu0
    %4460 = vmatpush.bf16.msra.mxu0 %v4181
    %4461 = vmatpush.bf16.msra.mxu0 %v4177
    %4462 = vmatpush.bf16.msra.mxu0 %v4173
    %4463 = vmatpush.bf16.msra.mxu0 %v4169
    %4464 = vmatpush.bf16.msra.mxu0 %v4165
    %4465 = vmatpush.bf16.msra.mxu0 %v4161
    %4466 = vmatpush.bf16.msra.mxu0 %v4157
    %4467 = vmatpush.bf16.msra.mxu0 %v4153
    %4468 = vmatmul.bf16.gmra.mxu0 %v3619
    %v4469 = vpop.f32.mrf.mxu0
    %v4470 = vadd.f32 %v3761, %v4469
    %v4471 = vpop.f32.mrf.mxu0
    %4472 = vdwg.mxu0
    %4473 = vmatpush.bf16.msra.mxu0 %v4213
    %4474 = vmatpush.bf16.msra.mxu0 %v4209
    %4475 = vmatpush.bf16.msra.mxu0 %v4205
    %4476 = vmatpush.bf16.msra.mxu0 %v4201
    %4477 = vmatpush.bf16.msra.mxu0 %v4197
    %4478 = vmatpush.bf16.msra.mxu0 %v4193
    %4479 = vmatpush.bf16.msra.mxu0 %v4189
    %4480 = vmatpush.bf16.msra.mxu0 %v4185
    %4481 = vmatmul.bf16.gmra.mxu0 %v3620
    %v4482 = vpop.f32.mrf.mxu0
    %v4483 = vadd.f32 %v4470, %v4482
    %v4484 = vpop.f32.mrf.mxu0
    %4485 = vdwg.mxu0
    %4486 = vmatpush.bf16.msra.mxu0 %v4245
    %4487 = vmatpush.bf16.msra.mxu0 %v4241
    %4488 = vmatpush.bf16.msra.mxu0 %v4237
    %4489 = vmatpush.bf16.msra.mxu0 %v4233
    %4490 = vmatpush.bf16.msra.mxu0 %v4229
    %4491 = vmatpush.bf16.msra.mxu0 %v4225
    %4492 = vmatpush.bf16.msra.mxu0 %v4221
    %4493 = vmatpush.bf16.msra.mxu0 %v4217
    %4494 = vmatmul.bf16.gmra.mxu0 %v3621
    %v4495 = vpop.f32.mrf.mxu0
    %v4496 = vadd.f32 %v4483, %v4495
    %v4497 = vpop.f32.mrf.mxu0
    %4498 = vdwg.mxu0
    %4499 = vmatpush.bf16.msra.mxu0 %v4277
    %4500 = vmatpush.bf16.msra.mxu0 %v4273
    %4501 = vmatpush.bf16.msra.mxu0 %v4269
    %4502 = vmatpush.bf16.msra.mxu0 %v4265
    %4503 = vmatpush.bf16.msra.mxu0 %v4261
    %4504 = vmatpush.bf16.msra.mxu0 %v4257
    %4505 = vmatpush.bf16.msra.mxu0 %v4253
    %4506 = vmatpush.bf16.msra.mxu0 %v4249
    %4507 = vmatmul.bf16.gmra.mxu0 %v3622
    %v4508 = vpop.f32.mrf.mxu0
    %v4509 = vadd.f32 %v4496, %v4508
    %v4510 = vpop.f32.mrf.mxu0
    %4511 = vdwg.mxu0
    %4512 = vmatpush.bf16.msra.mxu0 %v4182
    %4513 = vmatpush.bf16.msra.mxu0 %v4178
    %4514 = vmatpush.bf16.msra.mxu0 %v4174
    %4515 = vmatpush.bf16.msra.mxu0 %v4170
    %4516 = vmatpush.bf16.msra.mxu0 %v4166
    %4517 = vmatpush.bf16.msra.mxu0 %v4162
    %4518 = vmatpush.bf16.msra.mxu0 %v4158
    %4519 = vmatpush.bf16.msra.mxu0 %v4154
    %4520 = vmatmul.bf16.gmra.mxu0 %v3619
    %v4521 = vpop.f32.mrf.mxu0
    %v4522 = vadd.f32 %v3762, %v4521
    %v4523 = vpop.f32.mrf.mxu0
    %4524 = vdwg.mxu0
    %4525 = vmatpush.bf16.msra.mxu0 %v4214
    %4526 = vmatpush.bf16.msra.mxu0 %v4210
    %4527 = vmatpush.bf16.msra.mxu0 %v4206
    %4528 = vmatpush.bf16.msra.mxu0 %v4202
    %4529 = vmatpush.bf16.msra.mxu0 %v4198
    %4530 = vmatpush.bf16.msra.mxu0 %v4194
    %4531 = vmatpush.bf16.msra.mxu0 %v4190
    %4532 = vmatpush.bf16.msra.mxu0 %v4186
    %4533 = vmatmul.bf16.gmra.mxu0 %v3620
    %v4534 = vpop.f32.mrf.mxu0
    %v4535 = vadd.f32 %v4522, %v4534
    %v4536 = vpop.f32.mrf.mxu0
    %4537 = vdwg.mxu0
    %4538 = vmatpush.bf16.msra.mxu0 %v4246
    %4539 = vmatpush.bf16.msra.mxu0 %v4242
    %4540 = vmatpush.bf16.msra.mxu0 %v4238
    %4541 = vmatpush.bf16.msra.mxu0 %v4234
    %4542 = vmatpush.bf16.msra.mxu0 %v4230
    %4543 = vmatpush.bf16.msra.mxu0 %v4226
    %4544 = vmatpush.bf16.msra.mxu0 %v4222
    %4545 = vmatpush.bf16.msra.mxu0 %v4218
    %4546 = vmatmul.bf16.gmra.mxu0 %v3621
    %v4547 = vpop.f32.mrf.mxu0
    %v4548 = vadd.f32 %v4535, %v4547
    %v4549 = vpop.f32.mrf.mxu0
    %4550 = vdwg.mxu0
    %4551 = vmatpush.bf16.msra.mxu0 %v4278
    %4552 = vmatpush.bf16.msra.mxu0 %v4274
    %4553 = vmatpush.bf16.msra.mxu0 %v4270
    %4554 = vmatpush.bf16.msra.mxu0 %v4266
    %4555 = vmatpush.bf16.msra.mxu0 %v4262
    %4556 = vmatpush.bf16.msra.mxu0 %v4258
    %4557 = vmatpush.bf16.msra.mxu0 %v4254
    %4558 = vmatpush.bf16.msra.mxu0 %v4250
    %4559 = vmatmul.bf16.gmra.mxu0 %v3622
    %v4560 = vpop.f32.mrf.mxu0
    %v4561 = vadd.f32 %v4548, %v4560
    %v4562 = vpop.f32.mrf.mxu0
    %4563 = vdwg.mxu0
    %4564 = vmatpush.bf16.msra.mxu0 %v4183
    %4565 = vmatpush.bf16.msra.mxu0 %v4179
    %4566 = vmatpush.bf16.msra.mxu0 %v4175
    %4567 = vmatpush.bf16.msra.mxu0 %v4171
    %4568 = vmatpush.bf16.msra.mxu0 %v4167
    %4569 = vmatpush.bf16.msra.mxu0 %v4163
    %4570 = vmatpush.bf16.msra.mxu0 %v4159
    %4571 = vmatpush.bf16.msra.mxu0 %v4155
    %4572 = vmatmul.bf16.gmra.mxu0 %v3619
    %v4573 = vpop.f32.mrf.mxu0
    %v4574 = vadd.f32 %v3763, %v4573
    %v4575 = vpop.f32.mrf.mxu0
    %4576 = vdwg.mxu0
    %4577 = vmatpush.bf16.msra.mxu0 %v4215
    %4578 = vmatpush.bf16.msra.mxu0 %v4211
    %4579 = vmatpush.bf16.msra.mxu0 %v4207
    %4580 = vmatpush.bf16.msra.mxu0 %v4203
    %4581 = vmatpush.bf16.msra.mxu0 %v4199
    %4582 = vmatpush.bf16.msra.mxu0 %v4195
    %4583 = vmatpush.bf16.msra.mxu0 %v4191
    %4584 = vmatpush.bf16.msra.mxu0 %v4187
    %4585 = vmatmul.bf16.gmra.mxu0 %v3620
    %v4586 = vpop.f32.mrf.mxu0
    %v4587 = vadd.f32 %v4574, %v4586
    %v4588 = vpop.f32.mrf.mxu0
    %4589 = vdwg.mxu0
    %4590 = vmatpush.bf16.msra.mxu0 %v4247
    %4591 = vmatpush.bf16.msra.mxu0 %v4243
    %4592 = vmatpush.bf16.msra.mxu0 %v4239
    %4593 = vmatpush.bf16.msra.mxu0 %v4235
    %4594 = vmatpush.bf16.msra.mxu0 %v4231
    %4595 = vmatpush.bf16.msra.mxu0 %v4227
    %4596 = vmatpush.bf16.msra.mxu0 %v4223
    %4597 = vmatpush.bf16.msra.mxu0 %v4219
    %4598 = vmatmul.bf16.gmra.mxu0 %v3621
    %v4599 = vpop.f32.mrf.mxu0
    %v4600 = vadd.f32 %v4587, %v4599
    %v4601 = vpop.f32.mrf.mxu0
    %4602 = vdwg.mxu0
    %4603 = vmatpush.bf16.msra.mxu0 %v4279
    %4604 = vmatpush.bf16.msra.mxu0 %v4275
    %4605 = vmatpush.bf16.msra.mxu0 %v4271
    %4606 = vmatpush.bf16.msra.mxu0 %v4267
    %4607 = vmatpush.bf16.msra.mxu0 %v4263
    %4608 = vmatpush.bf16.msra.mxu0 %v4259
    %4609 = vmatpush.bf16.msra.mxu0 %v4255
    %4610 = vmatpush.bf16.msra.mxu0 %v4251
    %4611 = vmatmul.bf16.gmra.mxu0 %v3622
    %v4612 = vpop.f32.mrf.mxu0
    %v4613 = vadd.f32 %v4600, %v4612
    %v4614 = vpop.f32.mrf.mxu0
    %4615 = vdwg.mxu0
    %v4616 = vrot.slane %v4457, 4
    %v4617 = vadd.f32 %v4457, %v4616
    %v4618 = vrot.slane %v4617, 2
    %v4619 = vadd.f32 %v4617, %v4618
    %v4620 = vrot.slane %v4619, 1
    %v4621 = vadd.f32 %v4619, %v4620
    %v4622 = vrot.slane %v4509, 4
    %v4623 = vadd.f32 %v4509, %v4622
    %v4624 = vrot.slane %v4623, 2
    %v4625 = vadd.f32 %v4623, %v4624
    %v4626 = vrot.slane %v4625, 1
    %v4627 = vadd.f32 %v4625, %v4626
    %v4628 = vrot.slane %v4561, 4
    %v4629 = vadd.f32 %v4561, %v4628
    %v4630 = vrot.slane %v4629, 2
    %v4631 = vadd.f32 %v4629, %v4630
    %v4632 = vrot.slane %v4631, 1
    %v4633 = vadd.f32 %v4631, %v4632
    %v4634 = vrot.slane %v4613, 4
    %v4635 = vadd.f32 %v4613, %v4634
    %v4636 = vrot.slane %v4635, 2
    %v4637 = vadd.f32 %v4635, %v4636
    %v4638 = vrot.slane %v4637, 1
    %v4639 = vadd.f32 %v4637, %v4638
    %v4640 = vmul.f32 %v4621, %v1119
    %v4641 = vmul.f32 %v4627, %v1119
    %v4642 = vmul.f32 %v4633, %v1119
    %v4643 = vmul.f32 %v4639, %v1119
    %v4644 = vsub.f32 %v4457, %v4640
    %v4645 = vsub.f32 %v4509, %v4641
    %v4646 = vsub.f32 %v4561, %v4642
    %v4647 = vsub.f32 %v4613, %v4643
    %v4648 = vmul.f32 %v4644, %v4644
    %v4649 = vmul.f32 %v4645, %v4645
    %v4650 = vmul.f32 %v4646, %v4646
    %v4651 = vmul.f32 %v4647, %v4647
    %v4652 = vrot.slane %v4648, 4
    %v4653 = vadd.f32 %v4648, %v4652
    %v4654 = vrot.slane %v4653, 2
    %v4655 = vadd.f32 %v4653, %v4654
    %v4656 = vrot.slane %v4655, 1
    %v4657 = vadd.f32 %v4655, %v4656
    %v4658 = vrot.slane %v4649, 4
    %v4659 = vadd.f32 %v4649, %v4658
    %v4660 = vrot.slane %v4659, 2
    %v4661 = vadd.f32 %v4659, %v4660
    %v4662 = vrot.slane %v4661, 1
    %v4663 = vadd.f32 %v4661, %v4662
    %v4664 = vrot.slane %v4650, 4
    %v4665 = vadd.f32 %v4650, %v4664
    %v4666 = vrot.slane %v4665, 2
    %v4667 = vadd.f32 %v4665, %v4666
    %v4668 = vrot.slane %v4667, 1
    %v4669 = vadd.f32 %v4667, %v4668
    %v4670 = vrot.slane %v4651, 4
    %v4671 = vadd.f32 %v4651, %v4670
    %v4672 = vrot.slane %v4671, 2
    %v4673 = vadd.f32 %v4671, %v4672
    %v4674 = vrot.slane %v4673, 1
    %v4675 = vadd.f32 %v4673, %v4674
    %v4676 = vmul.f32 %v4657, %v1119
    %v4677 = vmul.f32 %v4663, %v1119
    %v4678 = vmul.f32 %v4669, %v1119
    %v4679 = vmul.f32 %v4675, %v1119
    %v4680 = vadd.f32 %v4676, 1e-05
    %v4681 = vadd.f32 %v4677, 1e-05
    %v4682 = vadd.f32 %v4678, 1e-05
    %v4683 = vadd.f32 %v4679, 1e-05
    %v4684 = vrsqrt.pop %v4680
    %v4685 = vmul.f32 %v4684, %v4680
    %v4686 = vmul.f32 %v4685, %v4684
    %v4687 = vmul.f32 0.5, %v4686
    %v4688 = vsub.f32 1.5, %v4687
    %v4689 = vmul.f32 %v4684, %v4688
    %vm4690 = vweird.f32 %v4680
    %vm4691 = vweird.f32 %v4684
    %vm4692 = vmor %vm4690, %vm4691
    %v4693 = vsel %vm4692, %v4684, %v4689
    %v4694 = vrsqrt.pop %v4681
    %v4695 = vmul.f32 %v4694, %v4681
    %v4696 = vmul.f32 %v4695, %v4694
    %v4697 = vmul.f32 0.5, %v4696
    %v4698 = vsub.f32 1.5, %v4697
    %v4699 = vmul.f32 %v4694, %v4698
    %vm4700 = vweird.f32 %v4681
    %vm4701 = vweird.f32 %v4694
    %vm4702 = vmor %vm4700, %vm4701
    %v4703 = vsel %vm4702, %v4694, %v4699
    %v4704 = vrsqrt.pop %v4682
    %v4705 = vmul.f32 %v4704, %v4682
    %v4706 = vmul.f32 %v4705, %v4704
    %v4707 = vmul.f32 0.5, %v4706
    %v4708 = vsub.f32 1.5, %v4707
    %v4709 = vmul.f32 %v4704, %v4708
    %vm4710 = vweird.f32 %v4682
    %vm4711 = vweird.f32 %v4704
    %vm4712 = vmor %vm4710, %vm4711
    %v4713 = vsel %vm4712, %v4704, %v4709
    %v4714 = vrsqrt.pop %v4683
    %v4715 = vmul.f32 %v4714, %v4683
    %v4716 = vmul.f32 %v4715, %v4714
    %v4717 = vmul.f32 0.5, %v4716
    %v4718 = vsub.f32 1.5, %v4717
    %v4719 = vmul.f32 %v4714, %v4718
    %vm4720 = vweird.f32 %v4683
    %vm4721 = vweird.f32 %v4714
    %vm4722 = vmor %vm4720, %vm4721
    %v4723 = vsel %vm4722, %v4714, %v4719
    %v4728 = vrot.slane %v4703, 7
    %v4729 = vrot.slane %v4713, 6
    %v4730 = vrot.slane %v4723, 5
    %v4731 = vsel %vm1211, %v4693, %v4728
    %v4732 = vsel %vm1213, %v4729, %v4730
    %v4733 = vsel %vm1215, %v4731, %v4732
    %v4735 = vmul.f32 %v3756, %v4733
    %v4737 = vperm.slane %v4735, 0
    %v4738 = vperm.slane %v4735, 1
    %v4739 = vperm.slane %v4735, 2
    %v4740 = vperm.slane %v4735, 3
    %v4745 = vmul.f32 %v4640, %v4737
    %v4746 = vmul.f32 %v4641, %v4738
    %v4747 = vmul.f32 %v4642, %v4739
    %v4748 = vmul.f32 %v4643, %v4740
    %v4753 = vrot.slane %v4746, 7
    %v4754 = vrot.slane %v4747, 6
    %v4755 = vrot.slane %v4748, 5
    %v4756 = vsel %vm1211, %v4745, %v4753
    %v4757 = vsel %vm1213, %v4754, %v4755
    %v4758 = vsel %vm1215, %v4756, %v4757
    %v4760 = vsub.f32 %v3758, %v4758
    %v4761 = vmul.f32 %v4457, %v4737
    %v4762 = vmul.f32 %v4509, %v4738
    %v4763 = vmul.f32 %v4561, %v4739
    %v4764 = vmul.f32 %v4613, %v4740
    %v4766 = vperm.slane %v4760, 0
    %v4767 = vperm.slane %v4760, 1
    %v4768 = vperm.slane %v4760, 2
    %v4769 = vperm.slane %v4760, 3
    %v4774 = vadd.f32 %v4761, %v4766
    %v4775 = vadd.f32 %v4762, %v4767
    %v4776 = vadd.f32 %v4763, %v4768
    %v4777 = vadd.f32 %v4764, %v4769
    %v4778 = vmax.f32 %v4774, 0.0
    %v4779 = vmax.f32 %v4775, 0.0
    %v4780 = vmax.f32 %v4776, 0.0
    %v4781 = vmax.f32 %v4777, 0.0
    %v4782 = vpack.c.bf16 %v4779, %v4778
    %v4783 = vpack.c.bf16 %v4781, %v4780
    %v4784 = vunpack.c.l.bf16 %v4782
    %v4785 = vunpack.c.h.bf16 %v4782
    %v4786 = vunpack.c.l.bf16 %v4783
    %v4787 = vunpack.c.h.bf16 %v4783
    %v4788 = vld [vmem:[#allocation8] sm:$0xf]
    %v4789 = vunpack.c.l.bf16 %v4788
    %v4791 = vperm.slane %v4789, 0
    %v4792 = vperm.slane %v4789, 2
    %v4793 = vperm.slane %v4789, 4
    %v4794 = vperm.slane %v4789, 6
    %v4799 = vperm.slane %v4791, 0
    %v4800 = vperm.slane %v4792, 0
    %v4801 = vperm.slane %v4793, 0
    %v4802 = vperm.slane %v4794, 0
    %v4803 = vmul.f32 %v4784, %v4799
    %v4804 = vmul.f32 %v4785, %v4800
    %v4805 = vmul.f32 %v4786, %v4801
    %v4806 = vmul.f32 %v4787, %v4802
    %v4807 = vadd.f32 %v4803, %v4804
    %v4808 = vadd.f32 %v4807, %v4805
    %v4809 = vadd.f32 %v4808, %v4806
    %4810 = vadd.xlane.f32.xlu0 %v4809
    %v4811 = vpop.xlane.xlu0 %4810
    %v4812 = vld [vmem:[#allocation6 + $0x24] ss:$0 sm:$0xff]
    %v4813 = vadd.f32 %v4811, %v4812
    %4814 = vst [vmem:[%s4] sm:$0xff] %v4813
    // Predicated region
    $region42: #{domain_classifier_forward.1} parent=1 // pred_check
      _
    $region43: #{domain_classifier_forward.1} parent=1 // pred_check_branch
      %4816 = sbr.rel (0) target = $region45
    $region44: #{domain_classifier_forward.1} parent=1 // pred_region
      _
    $region45: #{domain_classifier_forward.1} parent=1 // pred_fallthru
      _
    // Predicated region
    $region46: #{domain_classifier_forward.1} parent=1 // pred_check
      _
    $region47: #{domain_classifier_forward.1} parent=1 // pred_check_branch
      %4818 = sbr.rel (0) target = $region49
    $region48: #{domain_classifier_forward.1} parent=1 // pred_region
      _
    $region49: #{domain_classifier_forward.1} parent=1 // pred_fallthru
      _
    %4819 = vsyncpa [#allocation5], 1
    %4820 = vsyncpa [#allocation7], 1
  %4821 = vsyncmov [#allocation3]
  %s4822 = vpop.sfrf %4821
  %p4823 = scmp.eq.s32.totalorder %s4822, 0
  %p4824 = pneg %p4823
  %4826 = shalt.err (%p4824)
  %s4827 = scalar_lea.sflag [#allocation3], 1
  %4828 = vsyncmov %s4827
  %s4829 = vpop.sfrf %4828
  %p4830 = scmp.eq.s32.totalorder %s4829, 0
  %p4831 = pneg %p4830
  %4833 = shalt.err (%p4831)

</llo_original>
